<compile_context>
chip_gen: v5e
topology: v5e:2x2
jax: 0.10.0
libtpu: 0.0.40
codegen_flags: <defaults>
</compile_context>

<pallas_src>
import math
import functools

import jax
import jax.numpy as jnp
from jax.experimental import pallas as pl
from jax.experimental.pallas import tpu as pltpu

NEG_INF = -1e9


# ---------------------------------------------------------------------------
# In-kernel helpers (traced inside the Pallas kernel bodies)
# ---------------------------------------------------------------------------

def _layernorm(y, g, b, eps=1e-5):
    mean = jnp.mean(y, axis=-1, keepdims=True)
    var = jnp.mean((y - mean) ** 2, axis=-1, keepdims=True)
    return (y - mean) * jax.lax.rsqrt(var + eps) * g + b


def _mha_proj(q_flat, k_flat, v_flat, wo, bias, B, Lq, Lk, H, dh):
    """Multi-head attention with the output projection fused in.

    q_flat: (B*Lq, H*dh) f32, k_flat/v_flat: (B*Lk, H*dh) f32, wo: (H*dh, D) bf16,
    bias: additive mask broadcastable to (B, Lq, Lk) (0 = attend, -1e9 = masked).

    Heads are split with static column slices (static Python unroll over H) and the
    concat(heads) @ Wo is computed as sum_h head_h @ Wo[h*dh:(h+1)*dh, :], so the
    result is lane-dense (B*Lq, D) and no concatenation / transpose is needed.
    """
    scale = 1.0 / math.sqrt(dh)
    out = None
    for h in range(H):
        qh = q_flat[:, h * dh:(h + 1) * dh].reshape(B, Lq, dh)
        kh = k_flat[:, h * dh:(h + 1) * dh].reshape(B, Lk, dh)
        vh = v_flat[:, h * dh:(h + 1) * dh].reshape(B, Lk, dh)
        s = jnp.einsum("bqd,bkd->bqk", qh, kh,
                       preferred_element_type=jnp.float32) * scale
        s = s + bias
        s = s - jnp.max(s, axis=-1, keepdims=True)
        p = jnp.exp(s)
        p = p * pl.reciprocal(jnp.sum(p, axis=-1, keepdims=True), approx=True)
        ctx_h = jnp.einsum("bqk,bkd->bqd", p, vh,
                           preferred_element_type=jnp.float32)
        ctx_h = ctx_h.reshape(B * Lq, dh)
        contrib = jnp.dot(ctx_h.astype(jnp.bfloat16), wo[h * dh:(h + 1) * dh, :],
                          preferred_element_type=jnp.float32)
        out = contrib if out is None else out + contrib
    return out  # (B*Lq, D) f32


# ---------------------------------------------------------------------------
# Kernels
# ---------------------------------------------------------------------------

def _encoder_stack_kernel(x_in_ref, pad_bias_ref,
                          w_qkv_ref, b_qkv_ref, wo_ref, bo_ref,
                          ln1_g_ref, ln1_b_ref,
                          w1_ref, b1_ref, w2_ref, b2_ref,
                          ln2_g_ref, ln2_b_ref,
                          enc_out_ref, x_scr, *, B, Ls, H):
    layer = pl.program_id(0)

    @pl.when(layer == 0)
    def _():
        x_scr[...] = x_in_ref[...]

    x = x_scr[...]                                   # (B*Ls, D) f32, VMEM-resident
    D = x.shape[-1]
    dh = D // H

    # --- self-attention: fused QKV proj -> per-head SDPA -> fused out-proj ---
    qkv = jnp.dot(x.astype(jnp.bfloat16), w_qkv_ref[0],
                  preferred_element_type=jnp.float32) + b_qkv_ref[0]
    bias = pad_bias_ref[...][:, None, :]             # (B, 1, Ls) key-padding mask
    attn = _mha_proj(qkv[:, :D], qkv[:, D:2 * D], qkv[:, 2 * D:],
                     wo_ref[0], bias, B, Ls, Ls, H, dh)
    y = _layernorm(attn + bo_ref[0] + x, ln1_g_ref[0], ln1_b_ref[0])

    # --- FFN (hidden stays in VMEM/vregs) + residual + LN ---
    hdn = jnp.maximum(jnp.dot(y.astype(jnp.bfloat16), w1_ref[0],
                              preferred_element_type=jnp.float32) + b1_ref[0], 0.0)
    z = y + jnp.dot(hdn.astype(jnp.bfloat16), w2_ref[0],
                    preferred_element_type=jnp.float32) + b2_ref[0]
    z = _layernorm(z, ln2_g_ref[0], ln2_b_ref[0])
    x_scr[...] = z

    @pl.when(layer == pl.num_programs(0) - 1)
    def _():
        enc_out_ref[...] = z


def _decoder_stack_kernel(tgt_in_ref, enc_ref, pad_bias_ref,
                          sa_wqkv_ref, sa_bqkv_ref, sa_wo_ref, sa_bo_ref,
                          ln1_g_ref, ln1_b_ref,
                          ca_wq_ref, ca_bq_ref, ca_wkv_ref, ca_bkv_ref,
                          ca_wo_ref, ca_bo_ref, ln2_g_ref, ln2_b_ref,
                          w1_ref, b1_ref, w2_ref, b2_ref, ln3_g_ref, ln3_b_ref,
                          fc_w_ref, fc_b_ref,
                          logits_ref, x_scr, *, B, Lt, Ls, H):
    layer = pl.program_id(0)

    @pl.when(layer == 0)
    def _():
        x_scr[...] = tgt_in_ref[...]

    x = x_scr[...]                                   # (B*Lt, D) f32, VMEM-resident
    D = x.shape[-1]
    dh = D // H

    # causal mask built in-kernel (no HBM bias array)
    row = jax.lax.broadcasted_iota(jnp.int32, (Lt, Lt), 0)
    col = jax.lax.broadcasted_iota(jnp.int32, (Lt, Lt), 1)
    causal = jnp.where(col <= row, 0.0, NEG_INF).astype(jnp.float32)[None, :, :]

    # --- masked self-attention ---
    qkv = jnp.dot(x.astype(jnp.bfloat16), sa_wqkv_ref[0],
                  preferred_element_type=jnp.float32) + sa_bqkv_ref[0]
    attn = _mha_proj(qkv[:, :D], qkv[:, D:2 * D], qkv[:, 2 * D:],
                     sa_wo_ref[0], causal, B, Lt, Lt, H, dh)
    y = _layernorm(attn + sa_bo_ref[0] + x, ln1_g_ref[0], ln1_b_ref[0])

    # --- cross-attention: Q from decoder, fused KV proj of encoder output ---
    enc = enc_ref[...]                               # (B*Ls, D) f32
    q = jnp.dot(y.astype(jnp.bfloat16), ca_wq_ref[0],
                preferred_element_type=jnp.float32) + ca_bq_ref[0]
    kv = jnp.dot(enc.astype(jnp.bfloat16), ca_wkv_ref[0],
                 preferred_element_type=jnp.float32) + ca_bkv_ref[0]
    bias = pad_bias_ref[...][:, None, :]             # (B, 1, Ls) key-padding mask
    attn = _mha_proj(q, kv[:, :D], kv[:, D:], ca_wo_ref[0], bias,
                     B, Lt, Ls, H, dh)
    z = _layernorm(attn + ca_bo_ref[0] + y, ln2_g_ref[0], ln2_b_ref[0])

    # --- FFN + residual + LN ---
    hdn = jnp.maximum(jnp.dot(z.astype(jnp.bfloat16), w1_ref[0],
                              preferred_element_type=jnp.float32) + b1_ref[0], 0.0)
    o = z + jnp.dot(hdn.astype(jnp.bfloat16), w2_ref[0],
                    preferred_element_type=jnp.float32) + b2_ref[0]
    o = _layernorm(o, ln3_g_ref[0], ln3_b_ref[0])
    x_scr[...] = o

    # --- fused final classifier at the last layer (lane-dense padded vocab) ---
    @pl.when(layer == pl.num_programs(0) - 1)
    def _():
        logits_ref[...] = jnp.dot(o.astype(jnp.bfloat16), fc_w_ref[...],
                                  preferred_element_type=jnp.float32) + fc_b_ref[...]


# ---------------------------------------------------------------------------
# BlockSpec helpers and kernel wrappers
# ---------------------------------------------------------------------------

_ENC_KEYS = ("w_qkv", "b_qkv", "wo", "bo", "ln1_g", "ln1_b",
             "w1", "b1", "w2", "b2", "ln2_g", "ln2_b")

_DEC_KEYS = ("sa_wqkv", "sa_bqkv", "sa_wo", "sa_bo", "ln1_g", "ln1_b",
             "ca_wq", "ca_bq", "ca_wkv", "ca_bkv", "ca_wo", "ca_bo",
             "ln2_g", "ln2_b",
             "w1", "b1", "w2", "b2", "ln3_g", "ln3_b")


def _full_spec(a):
    n = a.ndim
    return pl.BlockSpec(tuple(a.shape), lambda l: (0,) * n)


def _per_layer_spec(a):
    # stacked (n_layers, ..., ...) -> one layer's slice per grid step
    return pl.BlockSpec((1,) + tuple(a.shape[1:]), lambda l: (l, 0, 0))


def encoder_stack(src_x, pad_bias, ep, *, batch, src_len, num_heads):
    Ms, D = src_x.shape
    n_layers = ep["w_qkv"].shape[0]
    kern = functools.partial(_encoder_stack_kernel, B=batch, Ls=src_len, H=num_heads)
    return pl.pallas_call(
        kern,
        grid=(n_layers,),
        out_shape=jax.ShapeDtypeStruct((Ms, D), jnp.float32),
        in_specs=[_full_spec(src_x), _full_spec(pad_bias)]
                 + [_per_layer_spec(ep[k]) for k in _ENC_KEYS],
        out_specs=pl.BlockSpec((Ms, D), lambda l: (0, 0)),
        scratch_shapes=[pltpu.VMEM((Ms, D), jnp.float32)],
        compiler_params=pltpu.CompilerParams(dimension_semantics=("arbitrary",)),
    )(src_x, pad_bias, *[ep[k] for k in _ENC_KEYS])


def decoder_stack(tgt_x, enc_out, pad_bias, dp, fc_w, fc_b,
                  *, batch, tgt_len, src_len, num_heads):
    Mt, D = tgt_x.shape
    n_layers = dp["sa_wqkv"].shape[0]
    V_pad = fc_w.shape[1]
    kern = functools.partial(_decoder_stack_kernel, B=batch, Lt=tgt_len,
                             Ls=src_len, H=num_heads)
    return pl.pallas_call(
        kern,
        grid=(n_layers,),
        out_shape=jax.ShapeDtypeStruct((Mt, V_pad), jnp.float32),
        in_specs=[_full_spec(tgt_x), _full_spec(enc_out), _full_spec(pad_bias)]
                 + [_per_layer_spec(dp[k]) for k in _DEC_KEYS]
                 + [_full_spec(fc_w), _full_spec(fc_b)],
        out_specs=pl.BlockSpec((Mt, V_pad), lambda l: (0, 0)),
        scratch_shapes=[pltpu.VMEM((Mt, D), jnp.float32)],
        compiler_params=pltpu.CompilerParams(dimension_semantics=("arbitrary",)),
    )(tgt_x, enc_out, pad_bias, *[dp[k] for k in _DEC_KEYS], fc_w, fc_b)


# ---------------------------------------------------------------------------
# Transformer forward
# ---------------------------------------------------------------------------

def positional_encoding(max_len, d_model):
    pos = jnp.arange(max_len, dtype=jnp.float32)[:, None]
    div = jnp.exp(jnp.arange(0, d_model, 2, dtype=jnp.float32)
                  * (-math.log(10000.0) / d_model))
    pe = jnp.zeros((max_len, d_model), dtype=jnp.float32)
    pe = pe.at[:, 0::2].set(jnp.sin(pos * div))
    pe = pe.at[:, 1::2].set(jnp.cos(pos * div))
    return pe


def transformer_forward(src, tgt, params, *, d_model, num_heads, tgt_vocab):
    B, Ls = src.shape
    Lt = tgt.shape[1]
    D = d_model

    # Tiny per-batch key-padding additive bias (B, Ls); the (B, Lq, Lk) masks are
    # never materialized in HBM (broadcast / causal built inside the kernels).
    pad_bias = jnp.where(src != 0, 0.0, NEG_INF).astype(jnp.float32)

    pe = params["pe"]
    scale = math.sqrt(d_model)
    # TODO(synk): embedding gather (dynamic) stays in XLA glue.
    src_x = (jnp.take(params["src_emb"], src, axis=0) * scale
             + pe[None, :Ls, :]).reshape(B * Ls, D)
    tgt_x = (jnp.take(params["tgt_emb"], tgt, axis=0) * scale
             + pe[None, :Lt, :]).reshape(B * Lt, D)

    enc_out = encoder_stack(src_x, pad_bias, params["enc"],
                            batch=B, src_len=Ls, num_heads=num_heads)
    logits = decoder_stack(tgt_x, enc_out, pad_bias, params["dec"],
                           params["fc_w"], params["fc_b"],
                           batch=B, tgt_len=Lt, src_len=Ls, num_heads=num_heads)
    return logits[:, :tgt_vocab].reshape(B, Lt, tgt_vocab)


# ---------------------------------------------------------------------------
# Deterministic parameter init (weights stored pre-fused, stacked per layer,
# bf16 MXU operands; biases/LN params f32 pre-reshaped to (1, N)).
# ---------------------------------------------------------------------------

def init_params(key, src_vocab, tgt_vocab, d_model, d_ff, n_enc, n_dec, max_len):
    D, F = d_model, d_ff
    ks = jax.random.split(key, 16)

    def w(k, shape):
        return (jax.random.normal(k, shape, jnp.float32) * 0.02).astype(jnp.bfloat16)

    # classifier padded once to a lane-dense multiple of 128 (sliced after the kernel)
    V_pad = ((tgt_vocab + 127) // 128) * 128
    fc_w = jnp.zeros((D, V_pad), jnp.float32)
    fc_w = fc_w.at[:, :tgt_vocab].set(
        jax.random.normal(ks[2], (D, tgt_vocab), jnp.float32) * 0.02)
    fc_w = fc_w.astype(jnp.bfloat16)

    enc = {
        "w_qkv": w(ks[3], (n_enc, D, 3 * D)),
        "b_qkv": jnp.zeros((n_enc, 1, 3 * D), jnp.float32),
        "wo": w(ks[4], (n_enc, D, D)),
        "bo": jnp.zeros((n_enc, 1, D), jnp.float32),
        "ln1_g": jnp.ones((n_enc, 1, D), jnp.float32),
        "ln1_b": jnp.zeros((n_enc, 1, D), jnp.float32),
        "w1": w(ks[5], (n_enc, D, F)),
        "b1": jnp.zeros((n_enc, 1, F), jnp.float32),
        "w2": w(ks[6], (n_enc, F, D)),
        "b2": jnp.zeros((n_enc, 1, D), jnp.float32),
        "ln2_g": jnp.ones((n_enc, 1, D), jnp.float32),
        "ln2_b": jnp.zeros((n_enc, 1, D), jnp.float32),
    }
    dec = {
        "sa_wqkv": w(ks[7], (n_dec, D, 3 * D)),
        "sa_bqkv": jnp.zeros((n_dec, 1, 3 * D), jnp.float32),
        "sa_wo": w(ks[8], (n_dec, D, D)),
        "sa_bo": jnp.zeros((n_dec, 1, D), jnp.float32),
        "ln1_g": jnp.ones((n_dec, 1, D), jnp.float32),
        "ln1_b": jnp.zeros((n_dec, 1, D), jnp.float32),
        "ca_wq": w(ks[9], (n_dec, D, D)),
        "ca_bq": jnp.zeros((n_dec, 1, D), jnp.float32),
        "ca_wkv": w(ks[10], (n_dec, D, 2 * D)),
        "ca_bkv": jnp.zeros((n_dec, 1, 2 * D), jnp.float32),
        "ca_wo": w(ks[11], (n_dec, D, D)),
        "ca_bo": jnp.zeros((n_dec, 1, D), jnp.float32),
        "ln2_g": jnp.ones((n_dec, 1, D), jnp.float32),
        "ln2_b": jnp.zeros((n_dec, 1, D), jnp.float32),
        "w1": w(ks[12], (n_dec, D, F)),
        "b1": jnp.zeros((n_dec, 1, F), jnp.float32),
        "w2": w(ks[13], (n_dec, F, D)),
        "b2": jnp.zeros((n_dec, 1, D), jnp.float32),
        "ln3_g": jnp.ones((n_dec, 1, D), jnp.float32),
        "ln3_b": jnp.zeros((n_dec, 1, D), jnp.float32),
    }
    return {
        "src_emb": jax.random.normal(ks[0], (src_vocab, D), jnp.float32) * 0.02,
        "tgt_emb": jax.random.normal(ks[1], (tgt_vocab, D), jnp.float32) * 0.02,
        "fc_w": fc_w,
        "fc_b": jnp.zeros((1, V_pad), jnp.float32),
        "pe": positional_encoding(max_len, D),
        "enc": enc,
        "dec": dec,
    }


# ---------------------------------------------------------------------------
# Main
# ---------------------------------------------------------------------------

if __name__ == "__main__":
    SRC_VOCAB = 32
    TGT_VOCAB = 32
    D_MODEL = 64
    NUM_HEADS = 4
    D_FF = 4 * D_MODEL
    N_ENC = 2
    N_DEC = 2
    MAX_LEN = 64
    B = 2
    SRC_LEN = 8
    TGT_LEN = 8

    root = jax.random.PRNGKey(0)
    k_param, k_src, k_tgt = jax.random.split(root, 3)

    params = init_params(k_param, SRC_VOCAB, TGT_VOCAB, D_MODEL, D_FF,
                         N_ENC, N_DEC, MAX_LEN)

    src = jax.random.randint(k_src, (B, SRC_LEN), 0, SRC_VOCAB, dtype=jnp.int32)
    tgt = jax.random.randint(k_tgt, (B, TGT_LEN), 0, TGT_VOCAB, dtype=jnp.int32)

    fwd = jax.jit(functools.partial(transformer_forward, d_model=D_MODEL,
                                    num_heads=NUM_HEADS, tgt_vocab=TGT_VOCAB))
    out = fwd(src, tgt, params)
    out = jax.block_until_ready(out)

    assert out.shape == (B, TGT_LEN, TGT_VOCAB), out.shape
    assert jnp.all(jnp.isfinite(out)), "non-finite output"
    print("KERNEL_OK")
</pallas_src>

<mosaic_0001>
module attributes {stable_mosaic.version = 11 : i64} {
  func.func @_decoder_stack_kernel(%arg0: i32, %arg1: memref<16x64xf32, #tpu.memory_space<vmem>>, %arg2: memref<16x64xf32, #tpu.memory_space<vmem>>, %arg3: memref<2x8xf32, #tpu.memory_space<vmem>>, %arg4: memref<1x64x192xbf16, #tpu.memory_space<vmem>>, %arg5: memref<1x1x192xf32, #tpu.memory_space<vmem>>, %arg6: memref<1x64x64xbf16, #tpu.memory_space<vmem>>, %arg7: memref<1x1x64xf32, #tpu.memory_space<vmem>>, %arg8: memref<1x1x64xf32, #tpu.memory_space<vmem>>, %arg9: memref<1x1x64xf32, #tpu.memory_space<vmem>>, %arg10: memref<1x64x64xbf16, #tpu.memory_space<vmem>>, %arg11: memref<1x1x64xf32, #tpu.memory_space<vmem>>, %arg12: memref<1x64x128xbf16, #tpu.memory_space<vmem>>, %arg13: memref<1x1x128xf32, #tpu.memory_space<vmem>>, %arg14: memref<1x64x64xbf16, #tpu.memory_space<vmem>>, %arg15: memref<1x1x64xf32, #tpu.memory_space<vmem>>, %arg16: memref<1x1x64xf32, #tpu.memory_space<vmem>>, %arg17: memref<1x1x64xf32, #tpu.memory_space<vmem>>, %arg18: memref<1x64x256xbf16, #tpu.memory_space<vmem>>, %arg19: memref<1x1x256xf32, #tpu.memory_space<vmem>>, %arg20: memref<1x256x64xbf16, #tpu.memory_space<vmem>>, %arg21: memref<1x1x64xf32, #tpu.memory_space<vmem>>, %arg22: memref<1x1x64xf32, #tpu.memory_space<vmem>>, %arg23: memref<1x1x64xf32, #tpu.memory_space<vmem>>, %arg24: memref<64x128xbf16, #tpu.memory_space<vmem>>, %arg25: memref<1x128xf32, #tpu.memory_space<vmem>>, %arg26: memref<16x128xf32, #tpu.memory_space<vmem>>, %arg27: memref<16x64xf32, #tpu.memory_space<vmem>>) attributes {dimension_semantics = [#tpu.dimension_semantics<arbitrary>], iteration_bounds = array<i64: 2>, scalar_prefetch = 0 : i64, scratch_operands = 1 : i64, tpu.core_type = #tpu.core_type<tc>, window_params = [{pipeline_mode = #tpu.pipeline_mode<synchronous>, transform_indices = @transform_0, window_bounds = array<i64: 16, 64>}, {pipeline_mode = #tpu.pipeline_mode<synchronous>, transform_indices = @transform_1, window_bounds = array<i64: 16, 64>}, {pipeline_mode = #tpu.pipeline_mode<synchronous>, transform_indices = @transform_2, window_bounds = array<i64: 2, 8>}, {transform_indices = @transform_3, window_bounds = array<i64: 1, 64, 192>}, {transform_indices = @transform_4, window_bounds = array<i64: 1, 1, 192>}, {transform_indices = @transform_5, window_bounds = array<i64: 1, 64, 64>}, {transform_indices = @transform_6, window_bounds = array<i64: 1, 1, 64>}, {transform_indices = @transform_7, window_bounds = array<i64: 1, 1, 64>}, {transform_indices = @transform_8, window_bounds = array<i64: 1, 1, 64>}, {transform_indices = @transform_9, window_bounds = array<i64: 1, 64, 64>}, {transform_indices = @transform_10, window_bounds = array<i64: 1, 1, 64>}, {transform_indices = @transform_11, window_bounds = array<i64: 1, 64, 128>}, {transform_indices = @transform_12, window_bounds = array<i64: 1, 1, 128>}, {transform_indices = @transform_13, window_bounds = array<i64: 1, 64, 64>}, {transform_indices = @transform_14, window_bounds = array<i64: 1, 1, 64>}, {transform_indices = @transform_15, window_bounds = array<i64: 1, 1, 64>}, {transform_indices = @transform_16, window_bounds = array<i64: 1, 1, 64>}, {transform_indices = @transform_17, window_bounds = array<i64: 1, 64, 256>}, {transform_indices = @transform_18, window_bounds = array<i64: 1, 1, 256>}, {transform_indices = @transform_19, window_bounds = array<i64: 1, 256, 64>}, {transform_indices = @transform_20, window_bounds = array<i64: 1, 1, 64>}, {transform_indices = @transform_21, window_bounds = array<i64: 1, 1, 64>}, {transform_indices = @transform_22, window_bounds = array<i64: 1, 1, 64>}, {pipeline_mode = #tpu.pipeline_mode<synchronous>, transform_indices = @transform_23, window_bounds = array<i64: 64, 128>}, {pipeline_mode = #tpu.pipeline_mode<synchronous>, transform_indices = @transform_24, window_bounds = array<i64: 1, 128>}, {pipeline_mode = #tpu.pipeline_mode<synchronous>, transform_indices = @transform_25, window_bounds = array<i64: 16, 128>}]} {
    %c0_i32 = arith.constant 0 : i32
    %0 = arith.cmpi eq, %arg0, %c0_i32 : i32
    %1 = arith.extui %0 : i1 to i32
    %c0_i32_0 = arith.constant 0 : i32
    %2 = arith.cmpi ne, %1, %c0_i32_0 : i32
    scf.if %2 {
      %c0_139 = arith.constant 0 : index
      %c0_140 = arith.constant 0 : index
      %372 = vector.load %arg1[%c0_139, %c0_140] : memref<16x64xf32, #tpu.memory_space<vmem>>, vector<16x64xf32>
      %c0_141 = arith.constant 0 : index
      %c0_142 = arith.constant 0 : index
      %373 = vector.load %arg27[%c0_141, %c0_142] : memref<16x64xf32, #tpu.memory_space<vmem>>, vector<16x64xf32>
      tpu.vector_store %arg27[%c0_141, %c0_142], %372 {strides = array<i32>} : memref<16x64xf32, #tpu.memory_space<vmem>>, vector<16x64xf32>,
    } else {
    }
    %c0 = arith.constant 0 : index
    %c0_1 = arith.constant 0 : index
    %3 = vector.load %arg27[%c0, %c0_1] : memref<16x64xf32, #tpu.memory_space<vmem>>, vector<16x64xf32>
    %4 = tpu.iota {dimensions = array<i32: 0>} : vector<8x8xi32>
    %5 = tpu.iota {dimensions = array<i32: 1>} : vector<8x8xi32>
    %6 = arith.cmpi sle, %5, %4 : vector<8x8xi32>
    %cst = arith.constant 0.000000e+00 : f32
    %cst_2 = arith.constant -1.000000e+09 : f32
    %7 = vector.broadcast %cst : f32 to vector<8x8xf32>
    %8 = vector.broadcast %cst_2 : f32 to vector<8x8xf32>
    %9 = arith.select %6, %7, %8 : vector<8x8xi1>, vector<8x8xf32>
    %10 = vector.shape_cast %9 : vector<8x8xf32> to vector<1x8x8xf32>
    %11 = arith.truncf %3 : vector<16x64xf32> to vector<16x64xbf16>
    %c0_3 = arith.constant 0 : index
    %c0_4 = arith.constant 0 : index
    %c0_5 = arith.constant 0 : index
    %12 = vector.load %arg4[%c0_3, %c0_4, %c0_5] : memref<1x64x192xbf16, #tpu.memory_space<vmem>>, vector<1x64x192xbf16>
    %13 = vector.shape_cast %12 : vector<1x64x192xbf16> to vector<64x192xbf16>
    %cst_6 = arith.constant dense<0.000000e+00> : vector<16x192xf32>
    %14 = tpu.matmul %11, %13, %cst_6 {dimension_numbers = #tpu.dot_dimension_numbers<[1], [0], [0], [1], [0, 0, 1, 1], [], []>} : vector<16x64xbf16>, vector<64x192xbf16>, vector<16x192xf32> -> vector<16x192xf32>
    %c0_7 = arith.constant 0 : index
    %c0_8 = arith.constant 0 : index
    %c0_9 = arith.constant 0 : index
    %15 = vector.load %arg5[%c0_7, %c0_8, %c0_9] : memref<1x1x192xf32, #tpu.memory_space<vmem>>, vector<1x1x192xf32>
    %16 = vector.shape_cast %15 : vector<1x1x192xf32> to vector<1x192xf32>
    %17 = vector.broadcast %16 : vector<1x192xf32> to vector<16x192xf32>
    %18 = arith.addf %14, %17 : vector<16x192xf32>
    %19 = vector.extract_strided_slice %18 {offsets = [0, 0], sizes = [16, 64], strides = [1, 1]} : vector<16x192xf32> to vector<16x64xf32>
    %20 = vector.extract_strided_slice %18 {offsets = [0, 64], sizes = [16, 64], strides = [1, 1]} : vector<16x192xf32> to vector<16x64xf32>
    %21 = vector.extract_strided_slice %18 {offsets = [0, 128], sizes = [16, 64], strides = [1, 1]} : vector<16x192xf32> to vector<16x64xf32>
    %c0_10 = arith.constant 0 : index
    %c0_11 = arith.constant 0 : index
    %c0_12 = arith.constant 0 : index
    %22 = vector.load %arg6[%c0_10, %c0_11, %c0_12] : memref<1x64x64xbf16, #tpu.memory_space<vmem>>, vector<1x64x64xbf16>
    %23 = vector.shape_cast %22 : vector<1x64x64xbf16> to vector<64x64xbf16>
    %24 = vector.extract_strided_slice %19 {offsets = [0, 0], sizes = [16, 16], strides = [1, 1]} : vector<16x64xf32> to vector<16x16xf32>
    %25 = vector.shape_cast %24 : vector<16x16xf32> to vector<2x8x16xf32>
    %26 = vector.extract_strided_slice %20 {offsets = [0, 0], sizes = [16, 16], strides = [1, 1]} : vector<16x64xf32> to vector<16x16xf32>
    %27 = vector.shape_cast %26 : vector<16x16xf32> to vector<2x8x16xf32>
    %28 = vector.extract_strided_slice %21 {offsets = [0, 0], sizes = [16, 16], strides = [1, 1]} : vector<16x64xf32> to vector<16x16xf32>
    %29 = vector.shape_cast %28 : vector<16x16xf32> to vector<2x8x16xf32>
    "tpu.trace_start"() <{level = 10 : i32, message = "bqd,bkd->bqk"}> : () -> ()
    %cst_13 = arith.constant dense<0.000000e+00> : vector<2x8x8xf32>
    %30 = tpu.matmul %25, %27, %cst_13 {dimension_numbers = #tpu.dot_dimension_numbers<[2], [2], [1], [1], [0, 0, 0, 1, 1, 1], [0], [0]>} : vector<2x8x16xf32>, vector<2x8x16xf32>, vector<2x8x8xf32> -> vector<2x8x8xf32>
    "tpu.trace_stop"() : () -> ()
    %cst_14 = arith.constant 2.500000e-01 : f32
    %31 = vector.broadcast %cst_14 : f32 to vector<2x8x8xf32>
    %32 = arith.mulf %30, %31 : vector<2x8x8xf32>
    %33 = vector.broadcast %10 : vector<1x8x8xf32> to vector<2x8x8xf32>
    %34 = arith.addf %32, %33 : vector<2x8x8xf32>
    %cst_15 = arith.constant dense<0xFF800000> : vector<2x8xf32>
    %35 = vector.multi_reduction <maximumf>, %34, %cst_15 [2] : vector<2x8x8xf32> to vector<2x8xf32>
    %36 = vector.shape_cast %35 : vector<2x8xf32> to vector<2x8x1xf32>
    %37 = vector.broadcast %36 : vector<2x8x1xf32> to vector<2x8x8xf32>
    %38 = arith.subf %34, %37 : vector<2x8x8xf32>
    %39 = math.exp %38 : vector<2x8x8xf32>
    %cst_16 = arith.constant dense<0.000000e+00> : vector<2x8xf32>
    %40 = vector.multi_reduction <add>, %39, %cst_16 [2] : vector<2x8x8xf32> to vector<2x8xf32>
    %41 = vector.shape_cast %40 : vector<2x8xf32> to vector<2x8x1xf32>
    %42 = tpu.reciprocal %41 {approx = true} : vector<2x8x1xf32> -> vector<2x8x1xf32>
    %43 = vector.broadcast %42 : vector<2x8x1xf32> to vector<2x8x8xf32>
    %44 = arith.mulf %39, %43 : vector<2x8x8xf32>
    "tpu.trace_start"() <{level = 10 : i32, message = "bqk,bkd->bqd"}> : () -> ()
    %cst_17 = arith.constant dense<0.000000e+00> : vector<2x8x16xf32>
    %45 = tpu.matmul %44, %29, %cst_17 {dimension_numbers = #tpu.dot_dimension_numbers<[2], [1], [1], [2], [0, 0, 0, 1, 1, 2], [0], [0]>} : vector<2x8x8xf32>, vector<2x8x16xf32>, vector<2x8x16xf32> -> vector<2x8x16xf32>
    "tpu.trace_stop"() : () -> ()
    %46 = vector.shape_cast %45 : vector<2x8x16xf32> to vector<16x16xf32>
    %47 = arith.truncf %46 : vector<16x16xf32> to vector<16x16xbf16>
    %48 = vector.extract_strided_slice %23 {offsets = [0, 0], sizes = [16, 64], strides = [1, 1]} : vector<64x64xbf16> to vector<16x64xbf16>
    %cst_18 = arith.constant dense<0.000000e+00> : vector<16x64xf32>
    %49 = tpu.matmul %47, %48, %cst_18 {dimension_numbers = #tpu.dot_dimension_numbers<[1], [0], [0], [1], [0, 0, 1, 1], [], []>} : vector<16x16xbf16>, vector<16x64xbf16>, vector<16x64xf32> -> vector<16x64xf32>
    %50 = vector.extract_strided_slice %19 {offsets = [0, 16], sizes = [16, 16], strides = [1, 1]} : vector<16x64xf32> to vector<16x16xf32>
    %51 = vector.shape_cast %50 : vector<16x16xf32> to vector<2x8x16xf32>
    %52 = vector.extract_strided_slice %20 {offsets = [0, 16], sizes = [16, 16], strides = [1, 1]} : vector<16x64xf32> to vector<16x16xf32>
    %53 = vector.shape_cast %52 : vector<16x16xf32> to vector<2x8x16xf32>
    %54 = vector.extract_strided_slice %21 {offsets = [0, 16], sizes = [16, 16], strides = [1, 1]} : vector<16x64xf32> to vector<16x16xf32>
    %55 = vector.shape_cast %54 : vector<16x16xf32> to vector<2x8x16xf32>
    "tpu.trace_start"() <{level = 10 : i32, message = "bqd,bkd->bqk"}> : () -> ()
    %cst_19 = arith.constant dense<0.000000e+00> : vector<2x8x8xf32>
    %56 = tpu.matmul %51, %53, %cst_19 {dimension_numbers = #tpu.dot_dimension_numbers<[2], [2], [1], [1], [0, 0, 0, 1, 1, 1], [0], [0]>} : vector<2x8x16xf32>, vector<2x8x16xf32>, vector<2x8x8xf32> -> vector<2x8x8xf32>
    "tpu.trace_stop"() : () -> ()
    %cst_20 = arith.constant 2.500000e-01 : f32
    %57 = vector.broadcast %cst_20 : f32 to vector<2x8x8xf32>
    %58 = arith.mulf %56, %57 : vector<2x8x8xf32>
    %59 = vector.broadcast %10 : vector<1x8x8xf32> to vector<2x8x8xf32>
    %60 = arith.addf %58, %59 : vector<2x8x8xf32>
    %cst_21 = arith.constant dense<0xFF800000> : vector<2x8xf32>
    %61 = vector.multi_reduction <maximumf>, %60, %cst_21 [2] : vector<2x8x8xf32> to vector<2x8xf32>
    %62 = vector.shape_cast %61 : vector<2x8xf32> to vector<2x8x1xf32>
    %63 = vector.broadcast %62 : vector<2x8x1xf32> to vector<2x8x8xf32>
    %64 = arith.subf %60, %63 : vector<2x8x8xf32>
    %65 = math.exp %64 : vector<2x8x8xf32>
    %cst_22 = arith.constant dense<0.000000e+00> : vector<2x8xf32>
    %66 = vector.multi_reduction <add>, %65, %cst_22 [2] : vector<2x8x8xf32> to vector<2x8xf32>
    %67 = vector.shape_cast %66 : vector<2x8xf32> to vector<2x8x1xf32>
    %68 = tpu.reciprocal %67 {approx = true} : vector<2x8x1xf32> -> vector<2x8x1xf32>
    %69 = vector.broadcast %68 : vector<2x8x1xf32> to vector<2x8x8xf32>
    %70 = arith.mulf %65, %69 : vector<2x8x8xf32>
    "tpu.trace_start"() <{level = 10 : i32, message = "bqk,bkd->bqd"}> : () -> ()
    %cst_23 = arith.constant dense<0.000000e+00> : vector<2x8x16xf32>
    %71 = tpu.matmul %70, %55, %cst_23 {dimension_numbers = #tpu.dot_dimension_numbers<[2], [1], [1], [2], [0, 0, 0, 1, 1, 2], [0], [0]>} : vector<2x8x8xf32>, vector<2x8x16xf32>, vector<2x8x16xf32> -> vector<2x8x16xf32>
    "tpu.trace_stop"() : () -> ()
    %72 = vector.shape_cast %71 : vector<2x8x16xf32> to vector<16x16xf32>
    %73 = arith.truncf %72 : vector<16x16xf32> to vector<16x16xbf16>
    %74 = vector.extract_strided_slice %23 {offsets = [16, 0], sizes = [16, 64], strides = [1, 1]} : vector<64x64xbf16> to vector<16x64xbf16>
    %cst_24 = arith.constant dense<0.000000e+00> : vector<16x64xf32>
    %75 = tpu.matmul %73, %74, %cst_24 {dimension_numbers = #tpu.dot_dimension_numbers<[1], [0], [0], [1], [0, 0, 1, 1], [], []>} : vector<16x16xbf16>, vector<16x64xbf16>, vector<16x64xf32> -> vector<16x64xf32>
    %76 = arith.addf %49, %75 : vector<16x64xf32>
    %77 = vector.extract_strided_slice %19 {offsets = [0, 32], sizes = [16, 16], strides = [1, 1]} : vector<16x64xf32> to vector<16x16xf32>
    %78 = vector.shape_cast %77 : vector<16x16xf32> to vector<2x8x16xf32>
    %79 = vector.extract_strided_slice %20 {offsets = [0, 32], sizes = [16, 16], strides = [1, 1]} : vector<16x64xf32> to vector<16x16xf32>
    %80 = vector.shape_cast %79 : vector<16x16xf32> to vector<2x8x16xf32>
    %81 = vector.extract_strided_slice %21 {offsets = [0, 32], sizes = [16, 16], strides = [1, 1]} : vector<16x64xf32> to vector<16x16xf32>
    %82 = vector.shape_cast %81 : vector<16x16xf32> to vector<2x8x16xf32>
    "tpu.trace_start"() <{level = 10 : i32, message = "bqd,bkd->bqk"}> : () -> ()
    %cst_25 = arith.constant dense<0.000000e+00> : vector<2x8x8xf32>
    %83 = tpu.matmul %78, %80, %cst_25 {dimension_numbers = #tpu.dot_dimension_numbers<[2], [2], [1], [1], [0, 0, 0, 1, 1, 1], [0], [0]>} : vector<2x8x16xf32>, vector<2x8x16xf32>, vector<2x8x8xf32> -> vector<2x8x8xf32>
    "tpu.trace_stop"() : () -> ()
    %cst_26 = arith.constant 2.500000e-01 : f32
    %84 = vector.broadcast %cst_26 : f32 to vector<2x8x8xf32>
    %85 = arith.mulf %83, %84 : vector<2x8x8xf32>
    %86 = vector.broadcast %10 : vector<1x8x8xf32> to vector<2x8x8xf32>
    %87 = arith.addf %85, %86 : vector<2x8x8xf32>
    %cst_27 = arith.constant dense<0xFF800000> : vector<2x8xf32>
    %88 = vector.multi_reduction <maximumf>, %87, %cst_27 [2] : vector<2x8x8xf32> to vector<2x8xf32>
    %89 = vector.shape_cast %88 : vector<2x8xf32> to vector<2x8x1xf32>
    %90 = vector.broadcast %89 : vector<2x8x1xf32> to vector<2x8x8xf32>
    %91 = arith.subf %87, %90 : vector<2x8x8xf32>
    %92 = math.exp %91 : vector<2x8x8xf32>
    %cst_28 = arith.constant dense<0.000000e+00> : vector<2x8xf32>
    %93 = vector.multi_reduction <add>, %92, %cst_28 [2] : vector<2x8x8xf32> to vector<2x8xf32>
    %94 = vector.shape_cast %93 : vector<2x8xf32> to vector<2x8x1xf32>
    %95 = tpu.reciprocal %94 {approx = true} : vector<2x8x1xf32> -> vector<2x8x1xf32>
    %96 = vector.broadcast %95 : vector<2x8x1xf32> to vector<2x8x8xf32>
    %97 = arith.mulf %92, %96 : vector<2x8x8xf32>
    "tpu.trace_start"() <{level = 10 : i32, message = "bqk,bkd->bqd"}> : () -> ()
    %cst_29 = arith.constant dense<0.000000e+00> : vector<2x8x16xf32>
    %98 = tpu.matmul %97, %82, %cst_29 {dimension_numbers = #tpu.dot_dimension_numbers<[2], [1], [1], [2], [0, 0, 0, 1, 1, 2], [0], [0]>} : vector<2x8x8xf32>, vector<2x8x16xf32>, vector<2x8x16xf32> -> vector<2x8x16xf32>
    "tpu.trace_stop"() : () -> ()
    %99 = vector.shape_cast %98 : vector<2x8x16xf32> to vector<16x16xf32>
    %100 = arith.truncf %99 : vector<16x16xf32> to vector<16x16xbf16>
    %101 = vector.extract_strided_slice %23 {offsets = [32, 0], sizes = [16, 64], strides = [1, 1]} : vector<64x64xbf16> to vector<16x64xbf16>
    %cst_30 = arith.constant dense<0.000000e+00> : vector<16x64xf32>
    %102 = tpu.matmul %100, %101, %cst_30 {dimension_numbers = #tpu.dot_dimension_numbers<[1], [0], [0], [1], [0, 0, 1, 1], [], []>} : vector<16x16xbf16>, vector<16x64xbf16>, vector<16x64xf32> -> vector<16x64xf32>
    %103 = arith.addf %76, %102 : vector<16x64xf32>
    %104 = vector.extract_strided_slice %19 {offsets = [0, 48], sizes = [16, 16], strides = [1, 1]} : vector<16x64xf32> to vector<16x16xf32>
    %105 = vector.shape_cast %104 : vector<16x16xf32> to vector<2x8x16xf32>
    %106 = vector.extract_strided_slice %20 {offsets = [0, 48], sizes = [16, 16], strides = [1, 1]} : vector<16x64xf32> to vector<16x16xf32>
    %107 = vector.shape_cast %106 : vector<16x16xf32> to vector<2x8x16xf32>
    %108 = vector.extract_strided_slice %21 {offsets = [0, 48], sizes = [16, 16], strides = [1, 1]} : vector<16x64xf32> to vector<16x16xf32>
    %109 = vector.shape_cast %108 : vector<16x16xf32> to vector<2x8x16xf32>
    "tpu.trace_start"() <{level = 10 : i32, message = "bqd,bkd->bqk"}> : () -> ()
    %cst_31 = arith.constant dense<0.000000e+00> : vector<2x8x8xf32>
    %110 = tpu.matmul %105, %107, %cst_31 {dimension_numbers = #tpu.dot_dimension_numbers<[2], [2], [1], [1], [0, 0, 0, 1, 1, 1], [0], [0]>} : vector<2x8x16xf32>, vector<2x8x16xf32>, vector<2x8x8xf32> -> vector<2x8x8xf32>
    "tpu.trace_stop"() : () -> ()
    %cst_32 = arith.constant 2.500000e-01 : f32
    %111 = vector.broadcast %cst_32 : f32 to vector<2x8x8xf32>
    %112 = arith.mulf %110, %111 : vector<2x8x8xf32>
    %113 = vector.broadcast %10 : vector<1x8x8xf32> to vector<2x8x8xf32>
    %114 = arith.addf %112, %113 : vector<2x8x8xf32>
    %cst_33 = arith.constant dense<0xFF800000> : vector<2x8xf32>
    %115 = vector.multi_reduction <maximumf>, %114, %cst_33 [2] : vector<2x8x8xf32> to vector<2x8xf32>
    %116 = vector.shape_cast %115 : vector<2x8xf32> to vector<2x8x1xf32>
    %117 = vector.broadcast %116 : vector<2x8x1xf32> to vector<2x8x8xf32>
    %118 = arith.subf %114, %117 : vector<2x8x8xf32>
    %119 = math.exp %118 : vector<2x8x8xf32>
    %cst_34 = arith.constant dense<0.000000e+00> : vector<2x8xf32>
    %120 = vector.multi_reduction <add>, %119, %cst_34 [2] : vector<2x8x8xf32> to vector<2x8xf32>
    %121 = vector.shape_cast %120 : vector<2x8xf32> to vector<2x8x1xf32>
    %122 = tpu.reciprocal %121 {approx = true} : vector<2x8x1xf32> -> vector<2x8x1xf32>
    %123 = vector.broadcast %122 : vector<2x8x1xf32> to vector<2x8x8xf32>
    %124 = arith.mulf %119, %123 : vector<2x8x8xf32>
    "tpu.trace_start"() <{level = 10 : i32, message = "bqk,bkd->bqd"}> : () -> ()
    %cst_35 = arith.constant dense<0.000000e+00> : vector<2x8x16xf32>
    %125 = tpu.matmul %124, %109, %cst_35 {dimension_numbers = #tpu.dot_dimension_numbers<[2], [1], [1], [2], [0, 0, 0, 1, 1, 2], [0], [0]>} : vector<2x8x8xf32>, vector<2x8x16xf32>, vector<2x8x16xf32> -> vector<2x8x16xf32>
    "tpu.trace_stop"() : () -> ()
    %126 = vector.shape_cast %125 : vector<2x8x16xf32> to vector<16x16xf32>
    %127 = arith.truncf %126 : vector<16x16xf32> to vector<16x16xbf16>
    %128 = vector.extract_strided_slice %23 {offsets = [48, 0], sizes = [16, 64], strides = [1, 1]} : vector<64x64xbf16> to vector<16x64xbf16>
    %cst_36 = arith.constant dense<0.000000e+00> : vector<16x64xf32>
    %129 = tpu.matmul %127, %128, %cst_36 {dimension_numbers = #tpu.dot_dimension_numbers<[1], [0], [0], [1], [0, 0, 1, 1], [], []>} : vector<16x16xbf16>, vector<16x64xbf16>, vector<16x64xf32> -> vector<16x64xf32>
    %130 = arith.addf %103, %129 : vector<16x64xf32>
    %c0_37 = arith.constant 0 : index
    %c0_38 = arith.constant 0 : index
    %c0_39 = arith.constant 0 : index
    %131 = vector.load %arg7[%c0_37, %c0_38, %c0_39] : memref<1x1x64xf32, #tpu.memory_space<vmem>>, vector<1x1x64xf32>
    %132 = vector.shape_cast %131 : vector<1x1x64xf32> to vector<1x64xf32>
    %133 = vector.broadcast %132 : vector<1x64xf32> to vector<16x64xf32>
    %134 = arith.addf %130, %133 : vector<16x64xf32>
    %135 = arith.addf %134, %3 : vector<16x64xf32>
    %c0_40 = arith.constant 0 : index
    %c0_41 = arith.constant 0 : index
    %c0_42 = arith.constant 0 : index
    %136 = vector.load %arg8[%c0_40, %c0_41, %c0_42] : memref<1x1x64xf32, #tpu.memory_space<vmem>>, vector<1x1x64xf32>
    %137 = vector.shape_cast %136 : vector<1x1x64xf32> to vector<1x64xf32>
    %c0_43 = arith.constant 0 : index
    %c0_44 = arith.constant 0 : index
    %c0_45 = arith.constant 0 : index
    %138 = vector.load %arg9[%c0_43, %c0_44, %c0_45] : memref<1x1x64xf32, #tpu.memory_space<vmem>>, vector<1x1x64xf32>
    %139 = vector.shape_cast %138 : vector<1x1x64xf32> to vector<1x64xf32>
    %cst_46 = arith.constant dense<0.000000e+00> : vector<16xf32>
    %140 = vector.multi_reduction <add>, %135, %cst_46 [1] : vector<16x64xf32> to vector<16xf32>
    %141 = vector.shape_cast %140 : vector<16xf32> to vector<16x1xf32>
    %cst_47 = arith.constant 6.400000e+01 : f32
    %142 = vector.broadcast %cst_47 : f32 to vector<16x1xf32>
    %143 = arith.divf %141, %142 : vector<16x1xf32>
    %144 = vector.broadcast %143 : vector<16x1xf32> to vector<16x64xf32>
    %145 = arith.subf %135, %144 : vector<16x64xf32>
    %146 = arith.mulf %145, %145 : vector<16x64xf32>
    %cst_48 = arith.constant dense<0.000000e+00> : vector<16xf32>
    %147 = vector.multi_reduction <add>, %146, %cst_48 [1] : vector<16x64xf32> to vector<16xf32>
    %148 = vector.shape_cast %147 : vector<16xf32> to vector<16x1xf32>
    %cst_49 = arith.constant 6.400000e+01 : f32
    %149 = vector.broadcast %cst_49 : f32 to vector<16x1xf32>
    %150 = arith.divf %148, %149 : vector<16x1xf32>
    %151 = vector.broadcast %143 : vector<16x1xf32> to vector<16x64xf32>
    %152 = arith.subf %135, %151 : vector<16x64xf32>
    %cst_50 = arith.constant 9.99999974E-6 : f32
    %153 = vector.broadcast %cst_50 : f32 to vector<16x1xf32>
    %154 = arith.addf %150, %153 : vector<16x1xf32>
    %155 = math.rsqrt %154 : vector<16x1xf32>
    %156 = vector.broadcast %155 : vector<16x1xf32> to vector<16x64xf32>
    %157 = arith.mulf %152, %156 : vector<16x64xf32>
    %158 = vector.broadcast %137 : vector<1x64xf32> to vector<16x64xf32>
    %159 = arith.mulf %157, %158 : vector<16x64xf32>
    %160 = vector.broadcast %139 : vector<1x64xf32> to vector<16x64xf32>
    %161 = arith.addf %159, %160 : vector<16x64xf32>
    %c0_51 = arith.constant 0 : index
    %c0_52 = arith.constant 0 : index
    %162 = vector.load %arg2[%c0_51, %c0_52] : memref<16x64xf32, #tpu.memory_space<vmem>>, vector<16x64xf32>
    %163 = arith.truncf %161 : vector<16x64xf32> to vector<16x64xbf16>
    %c0_53 = arith.constant 0 : index
    %c0_54 = arith.constant 0 : index
    %c0_55 = arith.constant 0 : index
    %164 = vector.load %arg10[%c0_53, %c0_54, %c0_55] : memref<1x64x64xbf16, #tpu.memory_space<vmem>>, vector<1x64x64xbf16>
    %165 = vector.shape_cast %164 : vector<1x64x64xbf16> to vector<64x64xbf16>
    %cst_56 = arith.constant dense<0.000000e+00> : vector<16x64xf32>
    %166 = tpu.matmul %163, %165, %cst_56 {dimension_numbers = #tpu.dot_dimension_numbers<[1], [0], [0], [1], [0, 0, 1, 1], [], []>} : vector<16x64xbf16>, vector<64x64xbf16>, vector<16x64xf32> -> vector<16x64xf32>
    %c0_57 = arith.constant 0 : index
    %c0_58 = arith.constant 0 : index
    %c0_59 = arith.constant 0 : index
    %167 = vector.load %arg11[%c0_57, %c0_58, %c0_59] : memref<1x1x64xf32, #tpu.memory_space<vmem>>, vector<1x1x64xf32>
    %168 = vector.shape_cast %167 : vector<1x1x64xf32> to vector<1x64xf32>
    %169 = vector.broadcast %168 : vector<1x64xf32> to vector<16x64xf32>
    %170 = arith.addf %166, %169 : vector<16x64xf32>
    %171 = arith.truncf %162 : vector<16x64xf32> to vector<16x64xbf16>
    %c0_60 = arith.constant 0 : index
    %c0_61 = arith.constant 0 : index
    %c0_62 = arith.constant 0 : index
    %172 = vector.load %arg12[%c0_60, %c0_61, %c0_62] : memref<1x64x128xbf16, #tpu.memory_space<vmem>>, vector<1x64x128xbf16>
    %173 = vector.shape_cast %172 : vector<1x64x128xbf16> to vector<64x128xbf16>
    %cst_63 = arith.constant dense<0.000000e+00> : vector<16x128xf32>
    %174 = tpu.matmul %171, %173, %cst_63 {dimension_numbers = #tpu.dot_dimension_numbers<[1], [0], [0], [1], [0, 0, 1, 1], [], []>} : vector<16x64xbf16>, vector<64x128xbf16>, vector<16x128xf32> -> vector<16x128xf32>
    %c0_64 = arith.constant 0 : index
    %c0_65 = arith.constant 0 : index
    %c0_66 = arith.constant 0 : index
    %175 = vector.load %arg13[%c0_64, %c0_65, %c0_66] : memref<1x1x128xf32, #tpu.memory_space<vmem>>, vector<1x1x128xf32>
    %176 = vector.shape_cast %175 : vector<1x1x128xf32> to vector<1x128xf32>
    %177 = vector.broadcast %176 : vector<1x128xf32> to vector<16x128xf32>
    %178 = arith.addf %174, %177 : vector<16x128xf32>
    %c0_67 = arith.constant 0 : index
    %c0_68 = arith.constant 0 : index
    %179 = vector.load %arg3[%c0_67, %c0_68] : memref<2x8xf32, #tpu.memory_space<vmem>>, vector<2x8xf32>
    %180 = vector.shape_cast %179 : vector<2x8xf32> to vector<2x1x8xf32>
    %181 = vector.extract_strided_slice %178 {offsets = [0, 0], sizes = [16, 64], strides = [1, 1]} : vector<16x128xf32> to vector<16x64xf32>
    %182 = vector.extract_strided_slice %178 {offsets = [0, 64], sizes = [16, 64], strides = [1, 1]} : vector<16x128xf32> to vector<16x64xf32>
    %c0_69 = arith.constant 0 : index
    %c0_70 = arith.constant 0 : index
    %c0_71 = arith.constant 0 : index
    %183 = vector.load %arg14[%c0_69, %c0_70, %c0_71] : memref<1x64x64xbf16, #tpu.memory_space<vmem>>, vector<1x64x64xbf16>
    %184 = vector.shape_cast %183 : vector<1x64x64xbf16> to vector<64x64xbf16>
    %185 = vector.extract_strided_slice %170 {offsets = [0, 0], sizes = [16, 16], strides = [1, 1]} : vector<16x64xf32> to vector<16x16xf32>
    %186 = vector.shape_cast %185 : vector<16x16xf32> to vector<2x8x16xf32>
    %187 = vector.extract_strided_slice %181 {offsets = [0, 0], sizes = [16, 16], strides = [1, 1]} : vector<16x64xf32> to vector<16x16xf32>
    %188 = vector.shape_cast %187 : vector<16x16xf32> to vector<2x8x16xf32>
    %189 = vector.extract_strided_slice %182 {offsets = [0, 0], sizes = [16, 16], strides = [1, 1]} : vector<16x64xf32> to vector<16x16xf32>
    %190 = vector.shape_cast %189 : vector<16x16xf32> to vector<2x8x16xf32>
    "tpu.trace_start"() <{level = 10 : i32, message = "bqd,bkd->bqk"}> : () -> ()
    %cst_72 = arith.constant dense<0.000000e+00> : vector<2x8x8xf32>
    %191 = tpu.matmul %186, %188, %cst_72 {dimension_numbers = #tpu.dot_dimension_numbers<[2], [2], [1], [1], [0, 0, 0, 1, 1, 1], [0], [0]>} : vector<2x8x16xf32>, vector<2x8x16xf32>, vector<2x8x8xf32> -> vector<2x8x8xf32>
    "tpu.trace_stop"() : () -> ()
    %cst_73 = arith.constant 2.500000e-01 : f32
    %192 = vector.broadcast %cst_73 : f32 to vector<2x8x8xf32>
    %193 = arith.mulf %191, %192 : vector<2x8x8xf32>
    %194 = vector.broadcast %180 : vector<2x1x8xf32> to vector<2x8x8xf32>
    %195 = arith.addf %193, %194 : vector<2x8x8xf32>
    %cst_74 = arith.constant dense<0xFF800000> : vector<2x8xf32>
    %196 = vector.multi_reduction <maximumf>, %195, %cst_74 [2] : vector<2x8x8xf32> to vector<2x8xf32>
    %197 = vector.shape_cast %196 : vector<2x8xf32> to vector<2x8x1xf32>
    %198 = vector.broadcast %197 : vector<2x8x1xf32> to vector<2x8x8xf32>
    %199 = arith.subf %195, %198 : vector<2x8x8xf32>
    %200 = math.exp %199 : vector<2x8x8xf32>
    %cst_75 = arith.constant dense<0.000000e+00> : vector<2x8xf32>
    %201 = vector.multi_reduction <add>, %200, %cst_75 [2] : vector<2x8x8xf32> to vector<2x8xf32>
    %202 = vector.shape_cast %201 : vector<2x8xf32> to vector<2x8x1xf32>
    %203 = tpu.reciprocal %202 {approx = true} : vector<2x8x1xf32> -> vector<2x8x1xf32>
    %204 = vector.broadcast %203 : vector<2x8x1xf32> to vector<2x8x8xf32>
    %205 = arith.mulf %200, %204 : vector<2x8x8xf32>
    "tpu.trace_start"() <{level = 10 : i32, message = "bqk,bkd->bqd"}> : () -> ()
    %cst_76 = arith.constant dense<0.000000e+00> : vector<2x8x16xf32>
    %206 = tpu.matmul %205, %190, %cst_76 {dimension_numbers = #tpu.dot_dimension_numbers<[2], [1], [1], [2], [0, 0, 0, 1, 1, 2], [0], [0]>} : vector<2x8x8xf32>, vector<2x8x16xf32>, vector<2x8x16xf32> -> vector<2x8x16xf32>
    "tpu.trace_stop"() : () -> ()
    %207 = vector.shape_cast %206 : vector<2x8x16xf32> to vector<16x16xf32>
    %208 = arith.truncf %207 : vector<16x16xf32> to vector<16x16xbf16>
    %209 = vector.extract_strided_slice %184 {offsets = [0, 0], sizes = [16, 64], strides = [1, 1]} : vector<64x64xbf16> to vector<16x64xbf16>
    %cst_77 = arith.constant dense<0.000000e+00> : vector<16x64xf32>
    %210 = tpu.matmul %208, %209, %cst_77 {dimension_numbers = #tpu.dot_dimension_numbers<[1], [0], [0], [1], [0, 0, 1, 1], [], []>} : vector<16x16xbf16>, vector<16x64xbf16>, vector<16x64xf32> -> vector<16x64xf32>
    %211 = vector.extract_strided_slice %170 {offsets = [0, 16], sizes = [16, 16], strides = [1, 1]} : vector<16x64xf32> to vector<16x16xf32>
    %212 = vector.shape_cast %211 : vector<16x16xf32> to vector<2x8x16xf32>
    %213 = vector.extract_strided_slice %181 {offsets = [0, 16], sizes = [16, 16], strides = [1, 1]} : vector<16x64xf32> to vector<16x16xf32>
    %214 = vector.shape_cast %213 : vector<16x16xf32> to vector<2x8x16xf32>
    %215 = vector.extract_strided_slice %182 {offsets = [0, 16], sizes = [16, 16], strides = [1, 1]} : vector<16x64xf32> to vector<16x16xf32>
    %216 = vector.shape_cast %215 : vector<16x16xf32> to vector<2x8x16xf32>
    "tpu.trace_start"() <{level = 10 : i32, message = "bqd,bkd->bqk"}> : () -> ()
    %cst_78 = arith.constant dense<0.000000e+00> : vector<2x8x8xf32>
    %217 = tpu.matmul %212, %214, %cst_78 {dimension_numbers = #tpu.dot_dimension_numbers<[2], [2], [1], [1], [0, 0, 0, 1, 1, 1], [0], [0]>} : vector<2x8x16xf32>, vector<2x8x16xf32>, vector<2x8x8xf32> -> vector<2x8x8xf32>
    "tpu.trace_stop"() : () -> ()
    %cst_79 = arith.constant 2.500000e-01 : f32
    %218 = vector.broadcast %cst_79 : f32 to vector<2x8x8xf32>
    %219 = arith.mulf %217, %218 : vector<2x8x8xf32>
    %220 = vector.broadcast %180 : vector<2x1x8xf32> to vector<2x8x8xf32>
    %221 = arith.addf %219, %220 : vector<2x8x8xf32>
    %cst_80 = arith.constant dense<0xFF800000> : vector<2x8xf32>
    %222 = vector.multi_reduction <maximumf>, %221, %cst_80 [2] : vector<2x8x8xf32> to vector<2x8xf32>
    %223 = vector.shape_cast %222 : vector<2x8xf32> to vector<2x8x1xf32>
    %224 = vector.broadcast %223 : vector<2x8x1xf32> to vector<2x8x8xf32>
    %225 = arith.subf %221, %224 : vector<2x8x8xf32>
    %226 = math.exp %225 : vector<2x8x8xf32>
    %cst_81 = arith.constant dense<0.000000e+00> : vector<2x8xf32>
    %227 = vector.multi_reduction <add>, %226, %cst_81 [2] : vector<2x8x8xf32> to vector<2x8xf32>
    %228 = vector.shape_cast %227 : vector<2x8xf32> to vector<2x8x1xf32>
    %229 = tpu.reciprocal %228 {approx = true} : vector<2x8x1xf32> -> vector<2x8x1xf32>
    %230 = vector.broadcast %229 : vector<2x8x1xf32> to vector<2x8x8xf32>
    %231 = arith.mulf %226, %230 : vector<2x8x8xf32>
    "tpu.trace_start"() <{level = 10 : i32, message = "bqk,bkd->bqd"}> : () -> ()
    %cst_82 = arith.constant dense<0.000000e+00> : vector<2x8x16xf32>
    %232 = tpu.matmul %231, %216, %cst_82 {dimension_numbers = #tpu.dot_dimension_numbers<[2], [1], [1], [2], [0, 0, 0, 1, 1, 2], [0], [0]>} : vector<2x8x8xf32>, vector<2x8x16xf32>, vector<2x8x16xf32> -> vector<2x8x16xf32>
    "tpu.trace_stop"() : () -> ()
    %233 = vector.shape_cast %232 : vector<2x8x16xf32> to vector<16x16xf32>
    %234 = arith.truncf %233 : vector<16x16xf32> to vector<16x16xbf16>
    %235 = vector.extract_strided_slice %184 {offsets = [16, 0], sizes = [16, 64], strides = [1, 1]} : vector<64x64xbf16> to vector<16x64xbf16>
    %cst_83 = arith.constant dense<0.000000e+00> : vector<16x64xf32>
    %236 = tpu.matmul %234, %235, %cst_83 {dimension_numbers = #tpu.dot_dimension_numbers<[1], [0], [0], [1], [0, 0, 1, 1], [], []>} : vector<16x16xbf16>, vector<16x64xbf16>, vector<16x64xf32> -> vector<16x64xf32>
    %237 = arith.addf %210, %236 : vector<16x64xf32>
    %238 = vector.extract_strided_slice %170 {offsets = [0, 32], sizes = [16, 16], strides = [1, 1]} : vector<16x64xf32> to vector<16x16xf32>
    %239 = vector.shape_cast %238 : vector<16x16xf32> to vector<2x8x16xf32>
    %240 = vector.extract_strided_slice %181 {offsets = [0, 32], sizes = [16, 16], strides = [1, 1]} : vector<16x64xf32> to vector<16x16xf32>
    %241 = vector.shape_cast %240 : vector<16x16xf32> to vector<2x8x16xf32>
    %242 = vector.extract_strided_slice %182 {offsets = [0, 32], sizes = [16, 16], strides = [1, 1]} : vector<16x64xf32> to vector<16x16xf32>
    %243 = vector.shape_cast %242 : vector<16x16xf32> to vector<2x8x16xf32>
    "tpu.trace_start"() <{level = 10 : i32, message = "bqd,bkd->bqk"}> : () -> ()
    %cst_84 = arith.constant dense<0.000000e+00> : vector<2x8x8xf32>
    %244 = tpu.matmul %239, %241, %cst_84 {dimension_numbers = #tpu.dot_dimension_numbers<[2], [2], [1], [1], [0, 0, 0, 1, 1, 1], [0], [0]>} : vector<2x8x16xf32>, vector<2x8x16xf32>, vector<2x8x8xf32> -> vector<2x8x8xf32>
    "tpu.trace_stop"() : () -> ()
    %cst_85 = arith.constant 2.500000e-01 : f32
    %245 = vector.broadcast %cst_85 : f32 to vector<2x8x8xf32>
    %246 = arith.mulf %244, %245 : vector<2x8x8xf32>
    %247 = vector.broadcast %180 : vector<2x1x8xf32> to vector<2x8x8xf32>
    %248 = arith.addf %246, %247 : vector<2x8x8xf32>
    %cst_86 = arith.constant dense<0xFF800000> : vector<2x8xf32>
    %249 = vector.multi_reduction <maximumf>, %248, %cst_86 [2] : vector<2x8x8xf32> to vector<2x8xf32>
    %250 = vector.shape_cast %249 : vector<2x8xf32> to vector<2x8x1xf32>
    %251 = vector.broadcast %250 : vector<2x8x1xf32> to vector<2x8x8xf32>
    %252 = arith.subf %248, %251 : vector<2x8x8xf32>
    %253 = math.exp %252 : vector<2x8x8xf32>
    %cst_87 = arith.constant dense<0.000000e+00> : vector<2x8xf32>
    %254 = vector.multi_reduction <add>, %253, %cst_87 [2] : vector<2x8x8xf32> to vector<2x8xf32>
    %255 = vector.shape_cast %254 : vector<2x8xf32> to vector<2x8x1xf32>
    %256 = tpu.reciprocal %255 {approx = true} : vector<2x8x1xf32> -> vector<2x8x1xf32>
    %257 = vector.broadcast %256 : vector<2x8x1xf32> to vector<2x8x8xf32>
    %258 = arith.mulf %253, %257 : vector<2x8x8xf32>
    "tpu.trace_start"() <{level = 10 : i32, message = "bqk,bkd->bqd"}> : () -> ()
    %cst_88 = arith.constant dense<0.000000e+00> : vector<2x8x16xf32>
    %259 = tpu.matmul %258, %243, %cst_88 {dimension_numbers = #tpu.dot_dimension_numbers<[2], [1], [1], [2], [0, 0, 0, 1, 1, 2], [0], [0]>} : vector<2x8x8xf32>, vector<2x8x16xf32>, vector<2x8x16xf32> -> vector<2x8x16xf32>
    "tpu.trace_stop"() : () -> ()
    %260 = vector.shape_cast %259 : vector<2x8x16xf32> to vector<16x16xf32>
    %261 = arith.truncf %260 : vector<16x16xf32> to vector<16x16xbf16>
    %262 = vector.extract_strided_slice %184 {offsets = [32, 0], sizes = [16, 64], strides = [1, 1]} : vector<64x64xbf16> to vector<16x64xbf16>
    %cst_89 = arith.constant dense<0.000000e+00> : vector<16x64xf32>
    %263 = tpu.matmul %261, %262, %cst_89 {dimension_numbers = #tpu.dot_dimension_numbers<[1], [0], [0], [1], [0, 0, 1, 1], [], []>} : vector<16x16xbf16>, vector<16x64xbf16>, vector<16x64xf32> -> vector<16x64xf32>
    %264 = arith.addf %237, %263 : vector<16x64xf32>
    %265 = vector.extract_strided_slice %170 {offsets = [0, 48], sizes = [16, 16], strides = [1, 1]} : vector<16x64xf32> to vector<16x16xf32>
    %266 = vector.shape_cast %265 : vector<16x16xf32> to vector<2x8x16xf32>
    %267 = vector.extract_strided_slice %181 {offsets = [0, 48], sizes = [16, 16], strides = [1, 1]} : vector<16x64xf32> to vector<16x16xf32>
    %268 = vector.shape_cast %267 : vector<16x16xf32> to vector<2x8x16xf32>
    %269 = vector.extract_strided_slice %182 {offsets = [0, 48], sizes = [16, 16], strides = [1, 1]} : vector<16x64xf32> to vector<16x16xf32>
    %270 = vector.shape_cast %269 : vector<16x16xf32> to vector<2x8x16xf32>
    "tpu.trace_start"() <{level = 10 : i32, message = "bqd,bkd->bqk"}> : () -> ()
    %cst_90 = arith.constant dense<0.000000e+00> : vector<2x8x8xf32>
    %271 = tpu.matmul %266, %268, %cst_90 {dimension_numbers = #tpu.dot_dimension_numbers<[2], [2], [1], [1], [0, 0, 0, 1, 1, 1], [0], [0]>} : vector<2x8x16xf32>, vector<2x8x16xf32>, vector<2x8x8xf32> -> vector<2x8x8xf32>
    "tpu.trace_stop"() : () -> ()
    %cst_91 = arith.constant 2.500000e-01 : f32
    %272 = vector.broadcast %cst_91 : f32 to vector<2x8x8xf32>
    %273 = arith.mulf %271, %272 : vector<2x8x8xf32>
    %274 = vector.broadcast %180 : vector<2x1x8xf32> to vector<2x8x8xf32>
    %275 = arith.addf %273, %274 : vector<2x8x8xf32>
    %cst_92 = arith.constant dense<0xFF800000> : vector<2x8xf32>
    %276 = vector.multi_reduction <maximumf>, %275, %cst_92 [2] : vector<2x8x8xf32> to vector<2x8xf32>
    %277 = vector.shape_cast %276 : vector<2x8xf32> to vector<2x8x1xf32>
    %278 = vector.broadcast %277 : vector<2x8x1xf32> to vector<2x8x8xf32>
    %279 = arith.subf %275, %278 : vector<2x8x8xf32>
    %280 = math.exp %279 : vector<2x8x8xf32>
    %cst_93 = arith.constant dense<0.000000e+00> : vector<2x8xf32>
    %281 = vector.multi_reduction <add>, %280, %cst_93 [2] : vector<2x8x8xf32> to vector<2x8xf32>
    %282 = vector.shape_cast %281 : vector<2x8xf32> to vector<2x8x1xf32>
    %283 = tpu.reciprocal %282 {approx = true} : vector<2x8x1xf32> -> vector<2x8x1xf32>
    %284 = vector.broadcast %283 : vector<2x8x1xf32> to vector<2x8x8xf32>
    %285 = arith.mulf %280, %284 : vector<2x8x8xf32>
    "tpu.trace_start"() <{level = 10 : i32, message = "bqk,bkd->bqd"}> : () -> ()
    %cst_94 = arith.constant dense<0.000000e+00> : vector<2x8x16xf32>
    %286 = tpu.matmul %285, %270, %cst_94 {dimension_numbers = #tpu.dot_dimension_numbers<[2], [1], [1], [2], [0, 0, 0, 1, 1, 2], [0], [0]>} : vector<2x8x8xf32>, vector<2x8x16xf32>, vector<2x8x16xf32> -> vector<2x8x16xf32>
    "tpu.trace_stop"() : () -> ()
    %287 = vector.shape_cast %286 : vector<2x8x16xf32> to vector<16x16xf32>
    %288 = arith.truncf %287 : vector<16x16xf32> to vector<16x16xbf16>
    %289 = vector.extract_strided_slice %184 {offsets = [48, 0], sizes = [16, 64], strides = [1, 1]} : vector<64x64xbf16> to vector<16x64xbf16>
    %cst_95 = arith.constant dense<0.000000e+00> : vector<16x64xf32>
    %290 = tpu.matmul %288, %289, %cst_95 {dimension_numbers = #tpu.dot_dimension_numbers<[1], [0], [0], [1], [0, 0, 1, 1], [], []>} : vector<16x16xbf16>, vector<16x64xbf16>, vector<16x64xf32> -> vector<16x64xf32>
    %291 = arith.addf %264, %290 : vector<16x64xf32>
    %c0_96 = arith.constant 0 : index
    %c0_97 = arith.constant 0 : index
    %c0_98 = arith.constant 0 : index
    %292 = vector.load %arg15[%c0_96, %c0_97, %c0_98] : memref<1x1x64xf32, #tpu.memory_space<vmem>>, vector<1x1x64xf32>
    %293 = vector.shape_cast %292 : vector<1x1x64xf32> to vector<1x64xf32>
    %294 = vector.broadcast %293 : vector<1x64xf32> to vector<16x64xf32>
    %295 = arith.addf %291, %294 : vector<16x64xf32>
    %296 = arith.addf %295, %161 : vector<16x64xf32>
    %c0_99 = arith.constant 0 : index
    %c0_100 = arith.constant 0 : index
    %c0_101 = arith.constant 0 : index
    %297 = vector.load %arg16[%c0_99, %c0_100, %c0_101] : memref<1x1x64xf32, #tpu.memory_space<vmem>>, vector<1x1x64xf32>
    %298 = vector.shape_cast %297 : vector<1x1x64xf32> to vector<1x64xf32>
    %c0_102 = arith.constant 0 : index
    %c0_103 = arith.constant 0 : index
    %c0_104 = arith.constant 0 : index
    %299 = vector.load %arg17[%c0_102, %c0_103, %c0_104] : memref<1x1x64xf32, #tpu.memory_space<vmem>>, vector<1x1x64xf32>
    %300 = vector.shape_cast %299 : vector<1x1x64xf32> to vector<1x64xf32>
    %cst_105 = arith.constant dense<0.000000e+00> : vector<16xf32>
    %301 = vector.multi_reduction <add>, %296, %cst_105 [1] : vector<16x64xf32> to vector<16xf32>
    %302 = vector.shape_cast %301 : vector<16xf32> to vector<16x1xf32>
    %cst_106 = arith.constant 6.400000e+01 : f32
    %303 = vector.broadcast %cst_106 : f32 to vector<16x1xf32>
    %304 = arith.divf %302, %303 : vector<16x1xf32>
    %305 = vector.broadcast %304 : vector<16x1xf32> to vector<16x64xf32>
    %306 = arith.subf %296, %305 : vector<16x64xf32>
    %307 = arith.mulf %306, %306 : vector<16x64xf32>
    %cst_107 = arith.constant dense<0.000000e+00> : vector<16xf32>
    %308 = vector.multi_reduction <add>, %307, %cst_107 [1] : vector<16x64xf32> to vector<16xf32>
    %309 = vector.shape_cast %308 : vector<16xf32> to vector<16x1xf32>
    %cst_108 = arith.constant 6.400000e+01 : f32
    %310 = vector.broadcast %cst_108 : f32 to vector<16x1xf32>
    %311 = arith.divf %309, %310 : vector<16x1xf32>
    %312 = vector.broadcast %304 : vector<16x1xf32> to vector<16x64xf32>
    %313 = arith.subf %296, %312 : vector<16x64xf32>
    %cst_109 = arith.constant 9.99999974E-6 : f32
    %314 = vector.broadcast %cst_109 : f32 to vector<16x1xf32>
    %315 = arith.addf %311, %314 : vector<16x1xf32>
    %316 = math.rsqrt %315 : vector<16x1xf32>
    %317 = vector.broadcast %316 : vector<16x1xf32> to vector<16x64xf32>
    %318 = arith.mulf %313, %317 : vector<16x64xf32>
    %319 = vector.broadcast %298 : vector<1x64xf32> to vector<16x64xf32>
    %320 = arith.mulf %318, %319 : vector<16x64xf32>
    %321 = vector.broadcast %300 : vector<1x64xf32> to vector<16x64xf32>
    %322 = arith.addf %320, %321 : vector<16x64xf32>
    %323 = arith.truncf %322 : vector<16x64xf32> to vector<16x64xbf16>
    %c0_110 = arith.constant 0 : index
    %c0_111 = arith.constant 0 : index
    %c0_112 = arith.constant 0 : index
    %324 = vector.load %arg18[%c0_110, %c0_111, %c0_112] : memref<1x64x256xbf16, #tpu.memory_space<vmem>>, vector<1x64x256xbf16>
    %325 = vector.shape_cast %324 : vector<1x64x256xbf16> to vector<64x256xbf16>
    %cst_113 = arith.constant dense<0.000000e+00> : vector<16x256xf32>
    %326 = tpu.matmul %323, %325, %cst_113 {dimension_numbers = #tpu.dot_dimension_numbers<[1], [0], [0], [1], [0, 0, 1, 1], [], []>} : vector<16x64xbf16>, vector<64x256xbf16>, vector<16x256xf32> -> vector<16x256xf32>
    %c0_114 = arith.constant 0 : index
    %c0_115 = arith.constant 0 : index
    %c0_116 = arith.constant 0 : index
    %327 = vector.load %arg19[%c0_114, %c0_115, %c0_116] : memref<1x1x256xf32, #tpu.memory_space<vmem>>, vector<1x1x256xf32>
    %328 = vector.shape_cast %327 : vector<1x1x256xf32> to vector<1x256xf32>
    %329 = vector.broadcast %328 : vector<1x256xf32> to vector<16x256xf32>
    %330 = arith.addf %326, %329 : vector<16x256xf32>
    %cst_117 = arith.constant 0.000000e+00 : f32
    %331 = vector.broadcast %cst_117 : f32 to vector<16x256xf32>
    %332 = arith.maximumf %330, %331 : vector<16x256xf32>
    %333 = arith.truncf %332 : vector<16x256xf32> to vector<16x256xbf16>
    %c0_118 = arith.constant 0 : index
    %c0_119 = arith.constant 0 : index
    %c0_120 = arith.constant 0 : index
    %334 = vector.load %arg20[%c0_118, %c0_119, %c0_120] : memref<1x256x64xbf16, #tpu.memory_space<vmem>>, vector<1x256x64xbf16>
    %335 = vector.shape_cast %334 : vector<1x256x64xbf16> to vector<256x64xbf16>
    %cst_121 = arith.constant dense<0.000000e+00> : vector<16x64xf32>
    %336 = tpu.matmul %333, %335, %cst_121 {dimension_numbers = #tpu.dot_dimension_numbers<[1], [0], [0], [1], [0, 0, 1, 1], [], []>} : vector<16x256xbf16>, vector<256x64xbf16>, vector<16x64xf32> -> vector<16x64xf32>
    %337 = arith.addf %322, %336 : vector<16x64xf32>
    %c0_122 = arith.constant 0 : index
    %c0_123 = arith.constant 0 : index
    %c0_124 = arith.constant 0 : index
    %338 = vector.load %arg21[%c0_122, %c0_123, %c0_124] : memref<1x1x64xf32, #tpu.memory_space<vmem>>, vector<1x1x64xf32>
    %339 = vector.shape_cast %338 : vector<1x1x64xf32> to vector<1x64xf32>
    %340 = vector.broadcast %339 : vector<1x64xf32> to vector<16x64xf32>
    %341 = arith.addf %337, %340 : vector<16x64xf32>
    %c0_125 = arith.constant 0 : index
    %c0_126 = arith.constant 0 : index
    %c0_127 = arith.constant 0 : index
    %342 = vector.load %arg22[%c0_125, %c0_126, %c0_127] : memref<1x1x64xf32, #tpu.memory_space<vmem>>, vector<1x1x64xf32>
    %343 = vector.shape_cast %342 : vector<1x1x64xf32> to vector<1x64xf32>
    %c0_128 = arith.constant 0 : index
    %c0_129 = arith.constant 0 : index
    %c0_130 = arith.constant 0 : index
    %344 = vector.load %arg23[%c0_128, %c0_129, %c0_130] : memref<1x1x64xf32, #tpu.memory_space<vmem>>, vector<1x1x64xf32>
    %345 = vector.shape_cast %344 : vector<1x1x64xf32> to vector<1x64xf32>
    %cst_131 = arith.constant dense<0.000000e+00> : vector<16xf32>
    %346 = vector.multi_reduction <add>, %341, %cst_131 [1] : vector<16x64xf32> to vector<16xf32>
    %347 = vector.shape_cast %346 : vector<16xf32> to vector<16x1xf32>
    %cst_132 = arith.constant 6.400000e+01 : f32
    %348 = vector.broadcast %cst_132 : f32 to vector<16x1xf32>
    %349 = arith.divf %347, %348 : vector<16x1xf32>
    %350 = vector.broadcast %349 : vector<16x1xf32> to vector<16x64xf32>
    %351 = arith.subf %341, %350 : vector<16x64xf32>
    %352 = arith.mulf %351, %351 : vector<16x64xf32>
    %cst_133 = arith.constant dense<0.000000e+00> : vector<16xf32>
    %353 = vector.multi_reduction <add>, %352, %cst_133 [1] : vector<16x64xf32> to vector<16xf32>
    %354 = vector.shape_cast %353 : vector<16xf32> to vector<16x1xf32>
    %cst_134 = arith.constant 6.400000e+01 : f32
    %355 = vector.broadcast %cst_134 : f32 to vector<16x1xf32>
    %356 = arith.divf %354, %355 : vector<16x1xf32>
    %357 = vector.broadcast %349 : vector<16x1xf32> to vector<16x64xf32>
    %358 = arith.subf %341, %357 : vector<16x64xf32>
    %cst_135 = arith.constant 9.99999974E-6 : f32
    %359 = vector.broadcast %cst_135 : f32 to vector<16x1xf32>
    %360 = arith.addf %356, %359 : vector<16x1xf32>
    %361 = math.rsqrt %360 : vector<16x1xf32>
    %362 = vector.broadcast %361 : vector<16x1xf32> to vector<16x64xf32>
    %363 = arith.mulf %358, %362 : vector<16x64xf32>
    %364 = vector.broadcast %343 : vector<1x64xf32> to vector<16x64xf32>
    %365 = arith.mulf %363, %364 : vector<16x64xf32>
    %366 = vector.broadcast %345 : vector<1x64xf32> to vector<16x64xf32>
    %367 = arith.addf %365, %366 : vector<16x64xf32>
    %c0_136 = arith.constant 0 : index
    %c0_137 = arith.constant 0 : index
    %368 = vector.load %arg27[%c0_136, %c0_137] : memref<16x64xf32, #tpu.memory_space<vmem>>, vector<16x64xf32>
    tpu.vector_store %arg27[%c0_136, %c0_137], %367 {strides = array<i32>} : memref<16x64xf32, #tpu.memory_space<vmem>>, vector<16x64xf32>,
    %c1_i32 = arith.constant 1 : i32
    %369 = arith.cmpi eq, %arg0, %c1_i32 : i32
    %370 = arith.extui %369 : i1 to i32
    %c0_i32_138 = arith.constant 0 : i32
    %371 = arith.cmpi ne, %370, %c0_i32_138 : i32
    scf.if %371 {
      %372 = arith.truncf %367 : vector<16x64xf32> to vector<16x64xbf16>
      %c0_139 = arith.constant 0 : index
      %c0_140 = arith.constant 0 : index
      %373 = vector.load %arg24[%c0_139, %c0_140] : memref<64x128xbf16, #tpu.memory_space<vmem>>, vector<64x128xbf16>
      %cst_141 = arith.constant dense<0.000000e+00> : vector<16x128xf32>
      %374 = tpu.matmul %372, %373, %cst_141 {dimension_numbers = #tpu.dot_dimension_numbers<[1], [0], [0], [1], [0, 0, 1, 1], [], []>} : vector<16x64xbf16>, vector<64x128xbf16>, vector<16x128xf32> -> vector<16x128xf32>
      %c0_142 = arith.constant 0 : index
      %c0_143 = arith.constant 0 : index
      %375 = vector.load %arg25[%c0_142, %c0_143] : memref<1x128xf32, #tpu.memory_space<vmem>>, vector<1x128xf32>
      %376 = vector.broadcast %375 : vector<1x128xf32> to vector<16x128xf32>
      %377 = arith.addf %374, %376 : vector<16x128xf32>
      %c0_144 = arith.constant 0 : index
      %c0_145 = arith.constant 0 : index
      %378 = vector.load %arg26[%c0_144, %c0_145] : memref<16x128xf32, #tpu.memory_space<vmem>>, vector<16x128xf32>
      tpu.vector_store %arg26[%c0_144, %c0_145], %377 {strides = array<i32>} : memref<16x128xf32, #tpu.memory_space<vmem>>, vector<16x128xf32>,
    } else {
    }
    return
  }
  func.func @transform_0(%arg0: i32) -> (i32, i32) {
    %c0_i32 = arith.constant 0 : i32
    %c0_i32_0 = arith.constant 0 : i32
    %c0_i32_1 = arith.constant 0 : i32
    return %c0_i32, %c0_i32_0 : i32, i32
  }
  func.func @transform_1(%arg0: i32) -> (i32, i32) {
    %c0_i32 = arith.constant 0 : i32
    %c0_i32_0 = arith.constant 0 : i32
    %c0_i32_1 = arith.constant 0 : i32
    return %c0_i32, %c0_i32_0 : i32, i32
  }
  func.func @transform_2(%arg0: i32) -> (i32, i32) {
    %c0_i32 = arith.constant 0 : i32
    %c0_i32_0 = arith.constant 0 : i32
    %c0_i32_1 = arith.constant 0 : i32
    return %c0_i32, %c0_i32_0 : i32, i32
  }
  func.func @transform_3(%arg0: i32) -> (i32, i32, i32) {
    %c0_i32 = arith.constant 0 : i32
    %c0_i32_0 = arith.constant 0 : i32
    %c0_i32_1 = arith.constant 0 : i32
    return %arg0, %c0_i32, %c0_i32_0 : i32, i32, i32
  }
  func.func @transform_4(%arg0: i32) -> (i32, i32, i32) {
    %c0_i32 = arith.constant 0 : i32
    %c0_i32_0 = arith.constant 0 : i32
    %c0_i32_1 = arith.constant 0 : i32
    return %arg0, %c0_i32, %c0_i32_0 : i32, i32, i32
  }
  func.func @transform_5(%arg0: i32) -> (i32, i32, i32) {
    %c0_i32 = arith.constant 0 : i32
    %c0_i32_0 = arith.constant 0 : i32
    %c0_i32_1 = arith.constant 0 : i32
    return %arg0, %c0_i32, %c0_i32_0 : i32, i32, i32
  }
  func.func @transform_6(%arg0: i32) -> (i32, i32, i32) {
    %c0_i32 = arith.constant 0 : i32
    %c0_i32_0 = arith.constant 0 : i32
    %c0_i32_1 = arith.constant 0 : i32
    return %arg0, %c0_i32, %c0_i32_0 : i32, i32, i32
  }
  func.func @transform_7(%arg0: i32) -> (i32, i32, i32) {
    %c0_i32 = arith.constant 0 : i32
    %c0_i32_0 = arith.constant 0 : i32
    %c0_i32_1 = arith.constant 0 : i32
    return %arg0, %c0_i32, %c0_i32_0 : i32, i32, i32
  }
  func.func @transform_8(%arg0: i32) -> (i32, i32, i32) {
    %c0_i32 = arith.constant 0 : i32
    %c0_i32_0 = arith.constant 0 : i32
    %c0_i32_1 = arith.constant 0 : i32
    return %arg0, %c0_i32, %c0_i32_0 : i32, i32, i32
  }
  func.func @transform_9(%arg0: i32) -> (i32, i32, i32) {
    %c0_i32 = arith.constant 0 : i32
    %c0_i32_0 = arith.constant 0 : i32
    %c0_i32_1 = arith.constant 0 : i32
    return %arg0, %c0_i32, %c0_i32_0 : i32, i32, i32
  }
  func.func @transform_10(%arg0: i32) -> (i32, i32, i32) {
    %c0_i32 = arith.constant 0 : i32
    %c0_i32_0 = arith.constant 0 : i32
    %c0_i32_1 = arith.constant 0 : i32
    return %arg0, %c0_i32, %c0_i32_0 : i32, i32, i32
  }
  func.func @transform_11(%arg0: i32) -> (i32, i32, i32) {
    %c0_i32 = arith.constant 0 : i32
    %c0_i32_0 = arith.constant 0 : i32
    %c0_i32_1 = arith.constant 0 : i32
    return %arg0, %c0_i32, %c0_i32_0 : i32, i32, i32
  }
  func.func @transform_12(%arg0: i32) -> (i32, i32, i32) {
    %c0_i32 = arith.constant 0 : i32
    %c0_i32_0 = arith.constant 0 : i32
    %c0_i32_1 = arith.constant 0 : i32
    return %arg0, %c0_i32, %c0_i32_0 : i32, i32, i32
  }
  func.func @transform_13(%arg0: i32) -> (i32, i32, i32) {
    %c0_i32 = arith.constant 0 : i32
    %c0_i32_0 = arith.constant 0 : i32
    %c0_i32_1 = arith.constant 0 : i32
    return %arg0, %c0_i32, %c0_i32_0 : i32, i32, i32
  }
  func.func @transform_14(%arg0: i32) -> (i32, i32, i32) {
    %c0_i32 = arith.constant 0 : i32
    %c0_i32_0 = arith.constant 0 : i32
    %c0_i32_1 = arith.constant 0 : i32
    return %arg0, %c0_i32, %c0_i32_0 : i32, i32, i32
  }
  func.func @transform_15(%arg0: i32) -> (i32, i32, i32) {
    %c0_i32 = arith.constant 0 : i32
    %c0_i32_0 = arith.constant 0 : i32
    %c0_i32_1 = arith.constant 0 : i32
    return %arg0, %c0_i32, %c0_i32_0 : i32, i32, i32
  }
  func.func @transform_16(%arg0: i32) -> (i32, i32, i32) {
    %c0_i32 = arith.constant 0 : i32
    %c0_i32_0 = arith.constant 0 : i32
    %c0_i32_1 = arith.constant 0 : i32
    return %arg0, %c0_i32, %c0_i32_0 : i32, i32, i32
  }
  func.func @transform_17(%arg0: i32) -> (i32, i32, i32) {
    %c0_i32 = arith.constant 0 : i32
    %c0_i32_0 = arith.constant 0 : i32
    %c0_i32_1 = arith.constant 0 : i32
    return %arg0, %c0_i32, %c0_i32_0 : i32, i32, i32
  }
  func.func @transform_18(%arg0: i32) -> (i32, i32, i32) {
    %c0_i32 = arith.constant 0 : i32
    %c0_i32_0 = arith.constant 0 : i32
    %c0_i32_1 = arith.constant 0 : i32
    return %arg0, %c0_i32, %c0_i32_0 : i32, i32, i32
  }
  func.func @transform_19(%arg0: i32) -> (i32, i32, i32) {
    %c0_i32 = arith.constant 0 : i32
    %c0_i32_0 = arith.constant 0 : i32
    %c0_i32_1 = arith.constant 0 : i32
    return %arg0, %c0_i32, %c0_i32_0 : i32, i32, i32
  }
  func.func @transform_20(%arg0: i32) -> (i32, i32, i32) {
    %c0_i32 = arith.constant 0 : i32
    %c0_i32_0 = arith.constant 0 : i32
    %c0_i32_1 = arith.constant 0 : i32
    return %arg0, %c0_i32, %c0_i32_0 : i32, i32, i32
  }
  func.func @transform_21(%arg0: i32) -> (i32, i32, i32) {
    %c0_i32 = arith.constant 0 : i32
    %c0_i32_0 = arith.constant 0 : i32
    %c0_i32_1 = arith.constant 0 : i32
    return %arg0, %c0_i32, %c0_i32_0 : i32, i32, i32
  }
  func.func @transform_22(%arg0: i32) -> (i32, i32, i32) {
    %c0_i32 = arith.constant 0 : i32
    %c0_i32_0 = arith.constant 0 : i32
    %c0_i32_1 = arith.constant 0 : i32
    return %arg0, %c0_i32, %c0_i32_0 : i32, i32, i32
  }
  func.func @transform_23(%arg0: i32) -> (i32, i32) {
    %c0_i32 = arith.constant 0 : i32
    %c0_i32_0 = arith.constant 0 : i32
    %c0_i32_1 = arith.constant 0 : i32
    return %c0_i32, %c0_i32_0 : i32, i32
  }
  func.func @transform_24(%arg0: i32) -> (i32, i32) {
    %c0_i32 = arith.constant 0 : i32
    %c0_i32_0 = arith.constant 0 : i32
    %c0_i32_1 = arith.constant 0 : i32
    return %c0_i32, %c0_i32_0 : i32, i32
  }
  func.func @transform_25(%arg0: i32) -> (i32, i32) {
    %c0_i32 = arith.constant 0 : i32
    %c0_i32_0 = arith.constant 0 : i32
    %c0_i32_1 = arith.constant 0 : i32
    return %c0_i32, %c0_i32_0 : i32, i32
  }
}

module attributes {stable_mosaic.version = 11 : i64} {
  func.func @_encoder_stack_kernel(%arg0: i32, %arg1: memref<16x64xf32, #tpu.memory_space<vmem>>, %arg2: memref<2x8xf32, #tpu.memory_space<vmem>>, %arg3: memref<1x64x192xbf16, #tpu.memory_space<vmem>>, %arg4: memref<1x1x192xf32, #tpu.memory_space<vmem>>, %arg5: memref<1x64x64xbf16, #tpu.memory_space<vmem>>, %arg6: memref<1x1x64xf32, #tpu.memory_space<vmem>>, %arg7: memref<1x1x64xf32, #tpu.memory_space<vmem>>, %arg8: memref<1x1x64xf32, #tpu.memory_space<vmem>>, %arg9: memref<1x64x256xbf16, #tpu.memory_space<vmem>>, %arg10: memref<1x1x256xf32, #tpu.memory_space<vmem>>, %arg11: memref<1x256x64xbf16, #tpu.memory_space<vmem>>, %arg12: memref<1x1x64xf32, #tpu.memory_space<vmem>>, %arg13: memref<1x1x64xf32, #tpu.memory_space<vmem>>, %arg14: memref<1x1x64xf32, #tpu.memory_space<vmem>>, %arg15: memref<16x64xf32, #tpu.memory_space<vmem>>, %arg16: memref<16x64xf32, #tpu.memory_space<vmem>>) attributes {dimension_semantics = [#tpu.dimension_semantics<arbitrary>], iteration_bounds = array<i64: 2>, scalar_prefetch = 0 : i64, scratch_operands = 1 : i64, tpu.core_type = #tpu.core_type<tc>, window_params = [{pipeline_mode = #tpu.pipeline_mode<synchronous>, transform_indices = @transform_0, window_bounds = array<i64: 16, 64>}, {pipeline_mode = #tpu.pipeline_mode<synchronous>, transform_indices = @transform_1, window_bounds = array<i64: 2, 8>}, {transform_indices = @transform_2, window_bounds = array<i64: 1, 64, 192>}, {transform_indices = @transform_3, window_bounds = array<i64: 1, 1, 192>}, {transform_indices = @transform_4, window_bounds = array<i64: 1, 64, 64>}, {transform_indices = @transform_5, window_bounds = array<i64: 1, 1, 64>}, {transform_indices = @transform_6, window_bounds = array<i64: 1, 1, 64>}, {transform_indices = @transform_7, window_bounds = array<i64: 1, 1, 64>}, {transform_indices = @transform_8, window_bounds = array<i64: 1, 64, 256>}, {transform_indices = @transform_9, window_bounds = array<i64: 1, 1, 256>}, {transform_indices = @transform_10, window_bounds = array<i64: 1, 256, 64>}, {transform_indices = @transform_11, window_bounds = array<i64: 1, 1, 64>}, {transform_indices = @transform_12, window_bounds = array<i64: 1, 1, 64>}, {transform_indices = @transform_13, window_bounds = array<i64: 1, 1, 64>}, {pipeline_mode = #tpu.pipeline_mode<synchronous>, transform_indices = @transform_14, window_bounds = array<i64: 16, 64>}]} {
    %c0_i32 = arith.constant 0 : i32
    %0 = arith.cmpi eq, %arg0, %c0_i32 : i32
    %1 = arith.extui %0 : i1 to i32
    %c0_i32_0 = arith.constant 0 : i32
    %2 = arith.cmpi ne, %1, %c0_i32_0 : i32
    scf.if %2 {
      %c0_80 = arith.constant 0 : index
      %c0_81 = arith.constant 0 : index
      %206 = vector.load %arg1[%c0_80, %c0_81] : memref<16x64xf32, #tpu.memory_space<vmem>>, vector<16x64xf32>
      %c0_82 = arith.constant 0 : index
      %c0_83 = arith.constant 0 : index
      %207 = vector.load %arg16[%c0_82, %c0_83] : memref<16x64xf32, #tpu.memory_space<vmem>>, vector<16x64xf32>
      tpu.vector_store %arg16[%c0_82, %c0_83], %206 {strides = array<i32>} : memref<16x64xf32, #tpu.memory_space<vmem>>, vector<16x64xf32>,
    } else {
    }
    %c0 = arith.constant 0 : index
    %c0_1 = arith.constant 0 : index
    %3 = vector.load %arg16[%c0, %c0_1] : memref<16x64xf32, #tpu.memory_space<vmem>>, vector<16x64xf32>
    %4 = arith.truncf %3 : vector<16x64xf32> to vector<16x64xbf16>
    %c0_2 = arith.constant 0 : index
    %c0_3 = arith.constant 0 : index
    %c0_4 = arith.constant 0 : index
    %5 = vector.load %arg3[%c0_2, %c0_3, %c0_4] : memref<1x64x192xbf16, #tpu.memory_space<vmem>>, vector<1x64x192xbf16>
    %6 = vector.shape_cast %5 : vector<1x64x192xbf16> to vector<64x192xbf16>
    %cst = arith.constant dense<0.000000e+00> : vector<16x192xf32>
    %7 = tpu.matmul %4, %6, %cst {dimension_numbers = #tpu.dot_dimension_numbers<[1], [0], [0], [1], [0, 0, 1, 1], [], []>} : vector<16x64xbf16>, vector<64x192xbf16>, vector<16x192xf32> -> vector<16x192xf32>
    %c0_5 = arith.constant 0 : index
    %c0_6 = arith.constant 0 : index
    %c0_7 = arith.constant 0 : index
    %8 = vector.load %arg4[%c0_5, %c0_6, %c0_7] : memref<1x1x192xf32, #tpu.memory_space<vmem>>, vector<1x1x192xf32>
    %9 = vector.shape_cast %8 : vector<1x1x192xf32> to vector<1x192xf32>
    %10 = vector.broadcast %9 : vector<1x192xf32> to vector<16x192xf32>
    %11 = arith.addf %7, %10 : vector<16x192xf32>
    %c0_8 = arith.constant 0 : index
    %c0_9 = arith.constant 0 : index
    %12 = vector.load %arg2[%c0_8, %c0_9] : memref<2x8xf32, #tpu.memory_space<vmem>>, vector<2x8xf32>
    %13 = vector.shape_cast %12 : vector<2x8xf32> to vector<2x1x8xf32>
    %14 = vector.extract_strided_slice %11 {offsets = [0, 0], sizes = [16, 64], strides = [1, 1]} : vector<16x192xf32> to vector<16x64xf32>
    %15 = vector.extract_strided_slice %11 {offsets = [0, 64], sizes = [16, 64], strides = [1, 1]} : vector<16x192xf32> to vector<16x64xf32>
    %16 = vector.extract_strided_slice %11 {offsets = [0, 128], sizes = [16, 64], strides = [1, 1]} : vector<16x192xf32> to vector<16x64xf32>
    %c0_10 = arith.constant 0 : index
    %c0_11 = arith.constant 0 : index
    %c0_12 = arith.constant 0 : index
    %17 = vector.load %arg5[%c0_10, %c0_11, %c0_12] : memref<1x64x64xbf16, #tpu.memory_space<vmem>>, vector<1x64x64xbf16>
    %18 = vector.shape_cast %17 : vector<1x64x64xbf16> to vector<64x64xbf16>
    %19 = vector.extract_strided_slice %14 {offsets = [0, 0], sizes = [16, 16], strides = [1, 1]} : vector<16x64xf32> to vector<16x16xf32>
    %20 = vector.shape_cast %19 : vector<16x16xf32> to vector<2x8x16xf32>
    %21 = vector.extract_strided_slice %15 {offsets = [0, 0], sizes = [16, 16], strides = [1, 1]} : vector<16x64xf32> to vector<16x16xf32>
    %22 = vector.shape_cast %21 : vector<16x16xf32> to vector<2x8x16xf32>
    %23 = vector.extract_strided_slice %16 {offsets = [0, 0], sizes = [16, 16], strides = [1, 1]} : vector<16x64xf32> to vector<16x16xf32>
    %24 = vector.shape_cast %23 : vector<16x16xf32> to vector<2x8x16xf32>
    "tpu.trace_start"() <{level = 10 : i32, message = "bqd,bkd->bqk"}> : () -> ()
    %cst_13 = arith.constant dense<0.000000e+00> : vector<2x8x8xf32>
    %25 = tpu.matmul %20, %22, %cst_13 {dimension_numbers = #tpu.dot_dimension_numbers<[2], [2], [1], [1], [0, 0, 0, 1, 1, 1], [0], [0]>} : vector<2x8x16xf32>, vector<2x8x16xf32>, vector<2x8x8xf32> -> vector<2x8x8xf32>
    "tpu.trace_stop"() : () -> ()
    %cst_14 = arith.constant 2.500000e-01 : f32
    %26 = vector.broadcast %cst_14 : f32 to vector<2x8x8xf32>
    %27 = arith.mulf %25, %26 : vector<2x8x8xf32>
    %28 = vector.broadcast %13 : vector<2x1x8xf32> to vector<2x8x8xf32>
    %29 = arith.addf %27, %28 : vector<2x8x8xf32>
    %cst_15 = arith.constant dense<0xFF800000> : vector<2x8xf32>
    %30 = vector.multi_reduction <maximumf>, %29, %cst_15 [2] : vector<2x8x8xf32> to vector<2x8xf32>
    %31 = vector.shape_cast %30 : vector<2x8xf32> to vector<2x8x1xf32>
    %32 = vector.broadcast %31 : vector<2x8x1xf32> to vector<2x8x8xf32>
    %33 = arith.subf %29, %32 : vector<2x8x8xf32>
    %34 = math.exp %33 : vector<2x8x8xf32>
    %cst_16 = arith.constant dense<0.000000e+00> : vector<2x8xf32>
    %35 = vector.multi_reduction <add>, %34, %cst_16 [2] : vector<2x8x8xf32> to vector<2x8xf32>
    %36 = vector.shape_cast %35 : vector<2x8xf32> to vector<2x8x1xf32>
    %37 = tpu.reciprocal %36 {approx = true} : vector<2x8x1xf32> -> vector<2x8x1xf32>
    %38 = vector.broadcast %37 : vector<2x8x1xf32> to vector<2x8x8xf32>
    %39 = arith.mulf %34, %38 : vector<2x8x8xf32>
    "tpu.trace_start"() <{level = 10 : i32, message = "bqk,bkd->bqd"}> : () -> ()
    %cst_17 = arith.constant dense<0.000000e+00> : vector<2x8x16xf32>
    %40 = tpu.matmul %39, %24, %cst_17 {dimension_numbers = #tpu.dot_dimension_numbers<[2], [1], [1], [2], [0, 0, 0, 1, 1, 2], [0], [0]>} : vector<2x8x8xf32>, vector<2x8x16xf32>, vector<2x8x16xf32> -> vector<2x8x16xf32>
    "tpu.trace_stop"() : () -> ()
    %41 = vector.shape_cast %40 : vector<2x8x16xf32> to vector<16x16xf32>
    %42 = arith.truncf %41 : vector<16x16xf32> to vector<16x16xbf16>
    %43 = vector.extract_strided_slice %18 {offsets = [0, 0], sizes = [16, 64], strides = [1, 1]} : vector<64x64xbf16> to vector<16x64xbf16>
    %cst_18 = arith.constant dense<0.000000e+00> : vector<16x64xf32>
    %44 = tpu.matmul %42, %43, %cst_18 {dimension_numbers = #tpu.dot_dimension_numbers<[1], [0], [0], [1], [0, 0, 1, 1], [], []>} : vector<16x16xbf16>, vector<16x64xbf16>, vector<16x64xf32> -> vector<16x64xf32>
    %45 = vector.extract_strided_slice %14 {offsets = [0, 16], sizes = [16, 16], strides = [1, 1]} : vector<16x64xf32> to vector<16x16xf32>
    %46 = vector.shape_cast %45 : vector<16x16xf32> to vector<2x8x16xf32>
    %47 = vector.extract_strided_slice %15 {offsets = [0, 16], sizes = [16, 16], strides = [1, 1]} : vector<16x64xf32> to vector<16x16xf32>
    %48 = vector.shape_cast %47 : vector<16x16xf32> to vector<2x8x16xf32>
    %49 = vector.extract_strided_slice %16 {offsets = [0, 16], sizes = [16, 16], strides = [1, 1]} : vector<16x64xf32> to vector<16x16xf32>
    %50 = vector.shape_cast %49 : vector<16x16xf32> to vector<2x8x16xf32>
    "tpu.trace_start"() <{level = 10 : i32, message = "bqd,bkd->bqk"}> : () -> ()
    %cst_19 = arith.constant dense<0.000000e+00> : vector<2x8x8xf32>
    %51 = tpu.matmul %46, %48, %cst_19 {dimension_numbers = #tpu.dot_dimension_numbers<[2], [2], [1], [1], [0, 0, 0, 1, 1, 1], [0], [0]>} : vector<2x8x16xf32>, vector<2x8x16xf32>, vector<2x8x8xf32> -> vector<2x8x8xf32>
    "tpu.trace_stop"() : () -> ()
    %cst_20 = arith.constant 2.500000e-01 : f32
    %52 = vector.broadcast %cst_20 : f32 to vector<2x8x8xf32>
    %53 = arith.mulf %51, %52 : vector<2x8x8xf32>
    %54 = vector.broadcast %13 : vector<2x1x8xf32> to vector<2x8x8xf32>
    %55 = arith.addf %53, %54 : vector<2x8x8xf32>
    %cst_21 = arith.constant dense<0xFF800000> : vector<2x8xf32>
    %56 = vector.multi_reduction <maximumf>, %55, %cst_21 [2] : vector<2x8x8xf32> to vector<2x8xf32>
    %57 = vector.shape_cast %56 : vector<2x8xf32> to vector<2x8x1xf32>
    %58 = vector.broadcast %57 : vector<2x8x1xf32> to vector<2x8x8xf32>
    %59 = arith.subf %55, %58 : vector<2x8x8xf32>
    %60 = math.exp %59 : vector<2x8x8xf32>
    %cst_22 = arith.constant dense<0.000000e+00> : vector<2x8xf32>
    %61 = vector.multi_reduction <add>, %60, %cst_22 [2] : vector<2x8x8xf32> to vector<2x8xf32>
    %62 = vector.shape_cast %61 : vector<2x8xf32> to vector<2x8x1xf32>
    %63 = tpu.reciprocal %62 {approx = true} : vector<2x8x1xf32> -> vector<2x8x1xf32>
    %64 = vector.broadcast %63 : vector<2x8x1xf32> to vector<2x8x8xf32>
    %65 = arith.mulf %60, %64 : vector<2x8x8xf32>
    "tpu.trace_start"() <{level = 10 : i32, message = "bqk,bkd->bqd"}> : () -> ()
    %cst_23 = arith.constant dense<0.000000e+00> : vector<2x8x16xf32>
    %66 = tpu.matmul %65, %50, %cst_23 {dimension_numbers = #tpu.dot_dimension_numbers<[2], [1], [1], [2], [0, 0, 0, 1, 1, 2], [0], [0]>} : vector<2x8x8xf32>, vector<2x8x16xf32>, vector<2x8x16xf32> -> vector<2x8x16xf32>
    "tpu.trace_stop"() : () -> ()
    %67 = vector.shape_cast %66 : vector<2x8x16xf32> to vector<16x16xf32>
    %68 = arith.truncf %67 : vector<16x16xf32> to vector<16x16xbf16>
    %69 = vector.extract_strided_slice %18 {offsets = [16, 0], sizes = [16, 64], strides = [1, 1]} : vector<64x64xbf16> to vector<16x64xbf16>
    %cst_24 = arith.constant dense<0.000000e+00> : vector<16x64xf32>
    %70 = tpu.matmul %68, %69, %cst_24 {dimension_numbers = #tpu.dot_dimension_numbers<[1], [0], [0], [1], [0, 0, 1, 1], [], []>} : vector<16x16xbf16>, vector<16x64xbf16>, vector<16x64xf32> -> vector<16x64xf32>
    %71 = arith.addf %44, %70 : vector<16x64xf32>
    %72 = vector.extract_strided_slice %14 {offsets = [0, 32], sizes = [16, 16], strides = [1, 1]} : vector<16x64xf32> to vector<16x16xf32>
    %73 = vector.shape_cast %72 : vector<16x16xf32> to vector<2x8x16xf32>
    %74 = vector.extract_strided_slice %15 {offsets = [0, 32], sizes = [16, 16], strides = [1, 1]} : vector<16x64xf32> to vector<16x16xf32>
    %75 = vector.shape_cast %74 : vector<16x16xf32> to vector<2x8x16xf32>
    %76 = vector.extract_strided_slice %16 {offsets = [0, 32], sizes = [16, 16], strides = [1, 1]} : vector<16x64xf32> to vector<16x16xf32>
    %77 = vector.shape_cast %76 : vector<16x16xf32> to vector<2x8x16xf32>
    "tpu.trace_start"() <{level = 10 : i32, message = "bqd,bkd->bqk"}> : () -> ()
    %cst_25 = arith.constant dense<0.000000e+00> : vector<2x8x8xf32>
    %78 = tpu.matmul %73, %75, %cst_25 {dimension_numbers = #tpu.dot_dimension_numbers<[2], [2], [1], [1], [0, 0, 0, 1, 1, 1], [0], [0]>} : vector<2x8x16xf32>, vector<2x8x16xf32>, vector<2x8x8xf32> -> vector<2x8x8xf32>
    "tpu.trace_stop"() : () -> ()
    %cst_26 = arith.constant 2.500000e-01 : f32
    %79 = vector.broadcast %cst_26 : f32 to vector<2x8x8xf32>
    %80 = arith.mulf %78, %79 : vector<2x8x8xf32>
    %81 = vector.broadcast %13 : vector<2x1x8xf32> to vector<2x8x8xf32>
    %82 = arith.addf %80, %81 : vector<2x8x8xf32>
    %cst_27 = arith.constant dense<0xFF800000> : vector<2x8xf32>
    %83 = vector.multi_reduction <maximumf>, %82, %cst_27 [2] : vector<2x8x8xf32> to vector<2x8xf32>
    %84 = vector.shape_cast %83 : vector<2x8xf32> to vector<2x8x1xf32>
    %85 = vector.broadcast %84 : vector<2x8x1xf32> to vector<2x8x8xf32>
    %86 = arith.subf %82, %85 : vector<2x8x8xf32>
    %87 = math.exp %86 : vector<2x8x8xf32>
    %cst_28 = arith.constant dense<0.000000e+00> : vector<2x8xf32>
    %88 = vector.multi_reduction <add>, %87, %cst_28 [2] : vector<2x8x8xf32> to vector<2x8xf32>
    %89 = vector.shape_cast %88 : vector<2x8xf32> to vector<2x8x1xf32>
    %90 = tpu.reciprocal %89 {approx = true} : vector<2x8x1xf32> -> vector<2x8x1xf32>
    %91 = vector.broadcast %90 : vector<2x8x1xf32> to vector<2x8x8xf32>
    %92 = arith.mulf %87, %91 : vector<2x8x8xf32>
    "tpu.trace_start"() <{level = 10 : i32, message = "bqk,bkd->bqd"}> : () -> ()
    %cst_29 = arith.constant dense<0.000000e+00> : vector<2x8x16xf32>
    %93 = tpu.matmul %92, %77, %cst_29 {dimension_numbers = #tpu.dot_dimension_numbers<[2], [1], [1], [2], [0, 0, 0, 1, 1, 2], [0], [0]>} : vector<2x8x8xf32>, vector<2x8x16xf32>, vector<2x8x16xf32> -> vector<2x8x16xf32>
    "tpu.trace_stop"() : () -> ()
    %94 = vector.shape_cast %93 : vector<2x8x16xf32> to vector<16x16xf32>
    %95 = arith.truncf %94 : vector<16x16xf32> to vector<16x16xbf16>
    %96 = vector.extract_strided_slice %18 {offsets = [32, 0], sizes = [16, 64], strides = [1, 1]} : vector<64x64xbf16> to vector<16x64xbf16>
    %cst_30 = arith.constant dense<0.000000e+00> : vector<16x64xf32>
    %97 = tpu.matmul %95, %96, %cst_30 {dimension_numbers = #tpu.dot_dimension_numbers<[1], [0], [0], [1], [0, 0, 1, 1], [], []>} : vector<16x16xbf16>, vector<16x64xbf16>, vector<16x64xf32> -> vector<16x64xf32>
    %98 = arith.addf %71, %97 : vector<16x64xf32>
    %99 = vector.extract_strided_slice %14 {offsets = [0, 48], sizes = [16, 16], strides = [1, 1]} : vector<16x64xf32> to vector<16x16xf32>
    %100 = vector.shape_cast %99 : vector<16x16xf32> to vector<2x8x16xf32>
    %101 = vector.extract_strided_slice %15 {offsets = [0, 48], sizes = [16, 16], strides = [1, 1]} : vector<16x64xf32> to vector<16x16xf32>
    %102 = vector.shape_cast %101 : vector<16x16xf32> to vector<2x8x16xf32>
    %103 = vector.extract_strided_slice %16 {offsets = [0, 48], sizes = [16, 16], strides = [1, 1]} : vector<16x64xf32> to vector<16x16xf32>
    %104 = vector.shape_cast %103 : vector<16x16xf32> to vector<2x8x16xf32>
    "tpu.trace_start"() <{level = 10 : i32, message = "bqd,bkd->bqk"}> : () -> ()
    %cst_31 = arith.constant dense<0.000000e+00> : vector<2x8x8xf32>
    %105 = tpu.matmul %100, %102, %cst_31 {dimension_numbers = #tpu.dot_dimension_numbers<[2], [2], [1], [1], [0, 0, 0, 1, 1, 1], [0], [0]>} : vector<2x8x16xf32>, vector<2x8x16xf32>, vector<2x8x8xf32> -> vector<2x8x8xf32>
    "tpu.trace_stop"() : () -> ()
    %cst_32 = arith.constant 2.500000e-01 : f32
    %106 = vector.broadcast %cst_32 : f32 to vector<2x8x8xf32>
    %107 = arith.mulf %105, %106 : vector<2x8x8xf32>
    %108 = vector.broadcast %13 : vector<2x1x8xf32> to vector<2x8x8xf32>
    %109 = arith.addf %107, %108 : vector<2x8x8xf32>
    %cst_33 = arith.constant dense<0xFF800000> : vector<2x8xf32>
    %110 = vector.multi_reduction <maximumf>, %109, %cst_33 [2] : vector<2x8x8xf32> to vector<2x8xf32>
    %111 = vector.shape_cast %110 : vector<2x8xf32> to vector<2x8x1xf32>
    %112 = vector.broadcast %111 : vector<2x8x1xf32> to vector<2x8x8xf32>
    %113 = arith.subf %109, %112 : vector<2x8x8xf32>
    %114 = math.exp %113 : vector<2x8x8xf32>
    %cst_34 = arith.constant dense<0.000000e+00> : vector<2x8xf32>
    %115 = vector.multi_reduction <add>, %114, %cst_34 [2] : vector<2x8x8xf32> to vector<2x8xf32>
    %116 = vector.shape_cast %115 : vector<2x8xf32> to vector<2x8x1xf32>
    %117 = tpu.reciprocal %116 {approx = true} : vector<2x8x1xf32> -> vector<2x8x1xf32>
    %118 = vector.broadcast %117 : vector<2x8x1xf32> to vector<2x8x8xf32>
    %119 = arith.mulf %114, %118 : vector<2x8x8xf32>
    "tpu.trace_start"() <{level = 10 : i32, message = "bqk,bkd->bqd"}> : () -> ()
    %cst_35 = arith.constant dense<0.000000e+00> : vector<2x8x16xf32>
    %120 = tpu.matmul %119, %104, %cst_35 {dimension_numbers = #tpu.dot_dimension_numbers<[2], [1], [1], [2], [0, 0, 0, 1, 1, 2], [0], [0]>} : vector<2x8x8xf32>, vector<2x8x16xf32>, vector<2x8x16xf32> -> vector<2x8x16xf32>
    "tpu.trace_stop"() : () -> ()
    %121 = vector.shape_cast %120 : vector<2x8x16xf32> to vector<16x16xf32>
    %122 = arith.truncf %121 : vector<16x16xf32> to vector<16x16xbf16>
    %123 = vector.extract_strided_slice %18 {offsets = [48, 0], sizes = [16, 64], strides = [1, 1]} : vector<64x64xbf16> to vector<16x64xbf16>
    %cst_36 = arith.constant dense<0.000000e+00> : vector<16x64xf32>
    %124 = tpu.matmul %122, %123, %cst_36 {dimension_numbers = #tpu.dot_dimension_numbers<[1], [0], [0], [1], [0, 0, 1, 1], [], []>} : vector<16x16xbf16>, vector<16x64xbf16>, vector<16x64xf32> -> vector<16x64xf32>
    %125 = arith.addf %98, %124 : vector<16x64xf32>
    %c0_37 = arith.constant 0 : index
    %c0_38 = arith.constant 0 : index
    %c0_39 = arith.constant 0 : index
    %126 = vector.load %arg6[%c0_37, %c0_38, %c0_39] : memref<1x1x64xf32, #tpu.memory_space<vmem>>, vector<1x1x64xf32>
    %127 = vector.shape_cast %126 : vector<1x1x64xf32> to vector<1x64xf32>
    %128 = vector.broadcast %127 : vector<1x64xf32> to vector<16x64xf32>
    %129 = arith.addf %125, %128 : vector<16x64xf32>
    %130 = arith.addf %129, %3 : vector<16x64xf32>
    %c0_40 = arith.constant 0 : index
    %c0_41 = arith.constant 0 : index
    %c0_42 = arith.constant 0 : index
    %131 = vector.load %arg7[%c0_40, %c0_41, %c0_42] : memref<1x1x64xf32, #tpu.memory_space<vmem>>, vector<1x1x64xf32>
    %132 = vector.shape_cast %131 : vector<1x1x64xf32> to vector<1x64xf32>
    %c0_43 = arith.constant 0 : index
    %c0_44 = arith.constant 0 : index
    %c0_45 = arith.constant 0 : index
    %133 = vector.load %arg8[%c0_43, %c0_44, %c0_45] : memref<1x1x64xf32, #tpu.memory_space<vmem>>, vector<1x1x64xf32>
    %134 = vector.shape_cast %133 : vector<1x1x64xf32> to vector<1x64xf32>
    %cst_46 = arith.constant dense<0.000000e+00> : vector<16xf32>
    %135 = vector.multi_reduction <add>, %130, %cst_46 [1] : vector<16x64xf32> to vector<16xf32>
    %136 = vector.shape_cast %135 : vector<16xf32> to vector<16x1xf32>
    %cst_47 = arith.constant 6.400000e+01 : f32
    %137 = vector.broadcast %cst_47 : f32 to vector<16x1xf32>
    %138 = arith.divf %136, %137 : vector<16x1xf32>
    %139 = vector.broadcast %138 : vector<16x1xf32> to vector<16x64xf32>
    %140 = arith.subf %130, %139 : vector<16x64xf32>
    %141 = arith.mulf %140, %140 : vector<16x64xf32>
    %cst_48 = arith.constant dense<0.000000e+00> : vector<16xf32>
    %142 = vector.multi_reduction <add>, %141, %cst_48 [1] : vector<16x64xf32> to vector<16xf32>
    %143 = vector.shape_cast %142 : vector<16xf32> to vector<16x1xf32>
    %cst_49 = arith.constant 6.400000e+01 : f32
    %144 = vector.broadcast %cst_49 : f32 to vector<16x1xf32>
    %145 = arith.divf %143, %144 : vector<16x1xf32>
    %146 = vector.broadcast %138 : vector<16x1xf32> to vector<16x64xf32>
    %147 = arith.subf %130, %146 : vector<16x64xf32>
    %cst_50 = arith.constant 9.99999974E-6 : f32
    %148 = vector.broadcast %cst_50 : f32 to vector<16x1xf32>
    %149 = arith.addf %145, %148 : vector<16x1xf32>
    %150 = math.rsqrt %149 : vector<16x1xf32>
    %151 = vector.broadcast %150 : vector<16x1xf32> to vector<16x64xf32>
    %152 = arith.mulf %147, %151 : vector<16x64xf32>
    %153 = vector.broadcast %132 : vector<1x64xf32> to vector<16x64xf32>
    %154 = arith.mulf %152, %153 : vector<16x64xf32>
    %155 = vector.broadcast %134 : vector<1x64xf32> to vector<16x64xf32>
    %156 = arith.addf %154, %155 : vector<16x64xf32>
    %157 = arith.truncf %156 : vector<16x64xf32> to vector<16x64xbf16>
    %c0_51 = arith.constant 0 : index
    %c0_52 = arith.constant 0 : index
    %c0_53 = arith.constant 0 : index
    %158 = vector.load %arg9[%c0_51, %c0_52, %c0_53] : memref<1x64x256xbf16, #tpu.memory_space<vmem>>, vector<1x64x256xbf16>
    %159 = vector.shape_cast %158 : vector<1x64x256xbf16> to vector<64x256xbf16>
    %cst_54 = arith.constant dense<0.000000e+00> : vector<16x256xf32>
    %160 = tpu.matmul %157, %159, %cst_54 {dimension_numbers = #tpu.dot_dimension_numbers<[1], [0], [0], [1], [0, 0, 1, 1], [], []>} : vector<16x64xbf16>, vector<64x256xbf16>, vector<16x256xf32> -> vector<16x256xf32>
    %c0_55 = arith.constant 0 : index
    %c0_56 = arith.constant 0 : index
    %c0_57 = arith.constant 0 : index
    %161 = vector.load %arg10[%c0_55, %c0_56, %c0_57] : memref<1x1x256xf32, #tpu.memory_space<vmem>>, vector<1x1x256xf32>
    %162 = vector.shape_cast %161 : vector<1x1x256xf32> to vector<1x256xf32>
    %163 = vector.broadcast %162 : vector<1x256xf32> to vector<16x256xf32>
    %164 = arith.addf %160, %163 : vector<16x256xf32>
    %cst_58 = arith.constant 0.000000e+00 : f32
    %165 = vector.broadcast %cst_58 : f32 to vector<16x256xf32>
    %166 = arith.maximumf %164, %165 : vector<16x256xf32>
    %167 = arith.truncf %166 : vector<16x256xf32> to vector<16x256xbf16>
    %c0_59 = arith.constant 0 : index
    %c0_60 = arith.constant 0 : index
    %c0_61 = arith.constant 0 : index
    %168 = vector.load %arg11[%c0_59, %c0_60, %c0_61] : memref<1x256x64xbf16, #tpu.memory_space<vmem>>, vector<1x256x64xbf16>
    %169 = vector.shape_cast %168 : vector<1x256x64xbf16> to vector<256x64xbf16>
    %cst_62 = arith.constant dense<0.000000e+00> : vector<16x64xf32>
    %170 = tpu.matmul %167, %169, %cst_62 {dimension_numbers = #tpu.dot_dimension_numbers<[1], [0], [0], [1], [0, 0, 1, 1], [], []>} : vector<16x256xbf16>, vector<256x64xbf16>, vector<16x64xf32> -> vector<16x64xf32>
    %171 = arith.addf %156, %170 : vector<16x64xf32>
    %c0_63 = arith.constant 0 : index
    %c0_64 = arith.constant 0 : index
    %c0_65 = arith.constant 0 : index
    %172 = vector.load %arg12[%c0_63, %c0_64, %c0_65] : memref<1x1x64xf32, #tpu.memory_space<vmem>>, vector<1x1x64xf32>
    %173 = vector.shape_cast %172 : vector<1x1x64xf32> to vector<1x64xf32>
    %174 = vector.broadcast %173 : vector<1x64xf32> to vector<16x64xf32>
    %175 = arith.addf %171, %174 : vector<16x64xf32>
    %c0_66 = arith.constant 0 : index
    %c0_67 = arith.constant 0 : index
    %c0_68 = arith.constant 0 : index
    %176 = vector.load %arg13[%c0_66, %c0_67, %c0_68] : memref<1x1x64xf32, #tpu.memory_space<vmem>>, vector<1x1x64xf32>
    %177 = vector.shape_cast %176 : vector<1x1x64xf32> to vector<1x64xf32>
    %c0_69 = arith.constant 0 : index
    %c0_70 = arith.constant 0 : index
    %c0_71 = arith.constant 0 : index
    %178 = vector.load %arg14[%c0_69, %c0_70, %c0_71] : memref<1x1x64xf32, #tpu.memory_space<vmem>>, vector<1x1x64xf32>
    %179 = vector.shape_cast %178 : vector<1x1x64xf32> to vector<1x64xf32>
    %cst_72 = arith.constant dense<0.000000e+00> : vector<16xf32>
    %180 = vector.multi_reduction <add>, %175, %cst_72 [1] : vector<16x64xf32> to vector<16xf32>
    %181 = vector.shape_cast %180 : vector<16xf32> to vector<16x1xf32>
    %cst_73 = arith.constant 6.400000e+01 : f32
    %182 = vector.broadcast %cst_73 : f32 to vector<16x1xf32>
    %183 = arith.divf %181, %182 : vector<16x1xf32>
    %184 = vector.broadcast %183 : vector<16x1xf32> to vector<16x64xf32>
    %185 = arith.subf %175, %184 : vector<16x64xf32>
    %186 = arith.mulf %185, %185 : vector<16x64xf32>
    %cst_74 = arith.constant dense<0.000000e+00> : vector<16xf32>
    %187 = vector.multi_reduction <add>, %186, %cst_74 [1] : vector<16x64xf32> to vector<16xf32>
    %188 = vector.shape_cast %187 : vector<16xf32> to vector<16x1xf32>
    %cst_75 = arith.constant 6.400000e+01 : f32
    %189 = vector.broadcast %cst_75 : f32 to vector<16x1xf32>
    %190 = arith.divf %188, %189 : vector<16x1xf32>
    %191 = vector.broadcast %183 : vector<16x1xf32> to vector<16x64xf32>
    %192 = arith.subf %175, %191 : vector<16x64xf32>
    %cst_76 = arith.constant 9.99999974E-6 : f32
    %193 = vector.broadcast %cst_76 : f32 to vector<16x1xf32>
    %194 = arith.addf %190, %193 : vector<16x1xf32>
    %195 = math.rsqrt %194 : vector<16x1xf32>
    %196 = vector.broadcast %195 : vector<16x1xf32> to vector<16x64xf32>
    %197 = arith.mulf %192, %196 : vector<16x64xf32>
    %198 = vector.broadcast %177 : vector<1x64xf32> to vector<16x64xf32>
    %199 = arith.mulf %197, %198 : vector<16x64xf32>
    %200 = vector.broadcast %179 : vector<1x64xf32> to vector<16x64xf32>
    %201 = arith.addf %199, %200 : vector<16x64xf32>
    %c0_77 = arith.constant 0 : index
    %c0_78 = arith.constant 0 : index
    %202 = vector.load %arg16[%c0_77, %c0_78] : memref<16x64xf32, #tpu.memory_space<vmem>>, vector<16x64xf32>
    tpu.vector_store %arg16[%c0_77, %c0_78], %201 {strides = array<i32>} : memref<16x64xf32, #tpu.memory_space<vmem>>, vector<16x64xf32>,
    %c1_i32 = arith.constant 1 : i32
    %203 = arith.cmpi eq, %arg0, %c1_i32 : i32
    %204 = arith.extui %203 : i1 to i32
    %c0_i32_79 = arith.constant 0 : i32
    %205 = arith.cmpi ne, %204, %c0_i32_79 : i32
    scf.if %205 {
      %c0_80 = arith.constant 0 : index
      %c0_81 = arith.constant 0 : index
      %206 = vector.load %arg15[%c0_80, %c0_81] : memref<16x64xf32, #tpu.memory_space<vmem>>, vector<16x64xf32>
      tpu.vector_store %arg15[%c0_80, %c0_81], %201 {strides = array<i32>} : memref<16x64xf32, #tpu.memory_space<vmem>>, vector<16x64xf32>,
    } else {
    }
    return
  }
  func.func @transform_0(%arg0: i32) -> (i32, i32) {
    %c0_i32 = arith.constant 0 : i32
    %c0_i32_0 = arith.constant 0 : i32
    %c0_i32_1 = arith.constant 0 : i32
    return %c0_i32, %c0_i32_0 : i32, i32
  }
  func.func @transform_1(%arg0: i32) -> (i32, i32) {
    %c0_i32 = arith.constant 0 : i32
    %c0_i32_0 = arith.constant 0 : i32
    %c0_i32_1 = arith.constant 0 : i32
    return %c0_i32, %c0_i32_0 : i32, i32
  }
  func.func @transform_2(%arg0: i32) -> (i32, i32, i32) {
    %c0_i32 = arith.constant 0 : i32
    %c0_i32_0 = arith.constant 0 : i32
    %c0_i32_1 = arith.constant 0 : i32
    return %arg0, %c0_i32, %c0_i32_0 : i32, i32, i32
  }
  func.func @transform_3(%arg0: i32) -> (i32, i32, i32) {
    %c0_i32 = arith.constant 0 : i32
    %c0_i32_0 = arith.constant 0 : i32
    %c0_i32_1 = arith.constant 0 : i32
    return %arg0, %c0_i32, %c0_i32_0 : i32, i32, i32
  }
  func.func @transform_4(%arg0: i32) -> (i32, i32, i32) {
    %c0_i32 = arith.constant 0 : i32
    %c0_i32_0 = arith.constant 0 : i32
    %c0_i32_1 = arith.constant 0 : i32
    return %arg0, %c0_i32, %c0_i32_0 : i32, i32, i32
  }
  func.func @transform_5(%arg0: i32) -> (i32, i32, i32) {
    %c0_i32 = arith.constant 0 : i32
    %c0_i32_0 = arith.constant 0 : i32
    %c0_i32_1 = arith.constant 0 : i32
    return %arg0, %c0_i32, %c0_i32_0 : i32, i32, i32
  }
  func.func @transform_6(%arg0: i32) -> (i32, i32, i32) {
    %c0_i32 = arith.constant 0 : i32
    %c0_i32_0 = arith.constant 0 : i32
    %c0_i32_1 = arith.constant 0 : i32
    return %arg0, %c0_i32, %c0_i32_0 : i32, i32, i32
  }
  func.func @transform_7(%arg0: i32) -> (i32, i32, i32) {
    %c0_i32 = arith.constant 0 : i32
    %c0_i32_0 = arith.constant 0 : i32
    %c0_i32_1 = arith.constant 0 : i32
    return %arg0, %c0_i32, %c0_i32_0 : i32, i32, i32
  }
  func.func @transform_8(%arg0: i32) -> (i32, i32, i32) {
    %c0_i32 = arith.constant 0 : i32
    %c0_i32_0 = arith.constant 0 : i32
    %c0_i32_1 = arith.constant 0 : i32
    return %arg0, %c0_i32, %c0_i32_0 : i32, i32, i32
  }
  func.func @transform_9(%arg0: i32) -> (i32, i32, i32) {
    %c0_i32 = arith.constant 0 : i32
    %c0_i32_0 = arith.constant 0 : i32
    %c0_i32_1 = arith.constant 0 : i32
    return %arg0, %c0_i32, %c0_i32_0 : i32, i32, i32
  }
  func.func @transform_10(%arg0: i32) -> (i32, i32, i32) {
    %c0_i32 = arith.constant 0 : i32
    %c0_i32_0 = arith.constant 0 : i32
    %c0_i32_1 = arith.constant 0 : i32
    return %arg0, %c0_i32, %c0_i32_0 : i32, i32, i32
  }
  func.func @transform_11(%arg0: i32) -> (i32, i32, i32) {
    %c0_i32 = arith.constant 0 : i32
    %c0_i32_0 = arith.constant 0 : i32
    %c0_i32_1 = arith.constant 0 : i32
    return %arg0, %c0_i32, %c0_i32_0 : i32, i32, i32
  }
  func.func @transform_12(%arg0: i32) -> (i32, i32, i32) {
    %c0_i32 = arith.constant 0 : i32
    %c0_i32_0 = arith.constant 0 : i32
    %c0_i32_1 = arith.constant 0 : i32
    return %arg0, %c0_i32, %c0_i32_0 : i32, i32, i32
  }
  func.func @transform_13(%arg0: i32) -> (i32, i32, i32) {
    %c0_i32 = arith.constant 0 : i32
    %c0_i32_0 = arith.constant 0 : i32
    %c0_i32_1 = arith.constant 0 : i32
    return %arg0, %c0_i32, %c0_i32_0 : i32, i32, i32
  }
  func.func @transform_14(%arg0: i32) -> (i32, i32) {
    %c0_i32 = arith.constant 0 : i32
    %c0_i32_0 = arith.constant 0 : i32
    %c0_i32_1 = arith.constant 0 : i32
    return %c0_i32, %c0_i32_0 : i32, i32
  }
}

</mosaic_0001>

<llo_original>
// kernel: transformer_forward.2
$region0: #{transformer_forward.2}
  #allocation0 [shape = 'u32[]', space=smem, size = 0x4, offset = 0x4, fixed_abs, tag = 'smem constant byte address 0x4 - core index']
  #allocation1 [shape = 'u32[72,128]{1,0:T(1,128)}', space=vmem, size = 0x9000, scoped, tag = 'internal scratch']
  #allocation2 [shape = 'f32[16,64]{1,0:T(8,128)}', space=vmem, size = 0x2000, scoped, tag = 'scratch operand']
  %s0 = inlined_call_operand.vmem [shape: f32[16,64], index: 0, kind: input, shape index: {}]
  %s1 = inlined_call_operand.vmem [shape: f32[2,8], index: 1, kind: input, shape index: {}]
  %s2 = inlined_call_operand.vmem [shape: bf16[2,64,192], index: 2, kind: input, shape index: {}]
  %s3 = inlined_call_operand.vmem [shape: f32[2,1,192], index: 3, kind: input, shape index: {}]
  %s4 = inlined_call_operand.vmem [shape: bf16[2,64,64], index: 4, kind: input, shape index: {}]
  %s5 = inlined_call_operand.vmem [shape: f32[2,1,64], index: 5, kind: input, shape index: {}]
  %s6 = inlined_call_operand.vmem [shape: f32[2,1,64], index: 6, kind: input, shape index: {}]
  %s7 = inlined_call_operand.vmem [shape: f32[2,1,64], index: 7, kind: input, shape index: {}]
  %s8 = inlined_call_operand.vmem [shape: bf16[2,64,256], index: 8, kind: input, shape index: {}]
  %s9 = inlined_call_operand.vmem [shape: f32[2,1,256], index: 9, kind: input, shape index: {}]
  %s10 = inlined_call_operand.vmem [shape: bf16[2,256,64], index: 10, kind: input, shape index: {}]
  %s11 = inlined_call_operand.vmem [shape: f32[2,1,64], index: 11, kind: input, shape index: {}]
  %s12 = inlined_call_operand.vmem [shape: f32[2,1,64], index: 12, kind: input, shape index: {}]
  %s13 = inlined_call_operand.vmem [shape: f32[2,1,64], index: 13, kind: input, shape index: {}]
  %s14 = inlined_call_operand.vmem [shape: f32[16,64], index: 14, kind: output, shape index: {}]
  %s15 = sld [smem:[#allocation0]]
  $region97: #{transformer_forward.2} parent=0
    _
  %s17 = ssub.s32 1, %s15
  %s18 = scalar_select 0, %s17, %s15
  loop: start=0, step=1, limit=4
  $region2: #{transformer_forward.2} parent=0 // loop_pre_header
    _
  $region3: #{transformer_forward.2} parent=0 // loop_header
    %s20 = sphi 0, %s24
    %p21 = scmp.ge.s32.totalorder %s20, 4
    %s28 = sphi 0, %s28
    %s30 = sphi 0, %s28
    %s31 = sphi 0, %s30
    %s45 = sphi 0, %s31
    %s49 = sphi 0, %s49
    %s51 = sphi 0, %s49
    %s52 = sphi 0, %s51
    %s66 = sphi 0, %s52
    %s72 = sphi 0, %s74
    %s75 = sphi 0, %s72
    %s76 = sphi 0, %s75
    %s92 = sphi 0, %s76
    %s98 = sphi 0, %s100
    %s101 = sphi 0, %s98
    %s102 = sphi 0, %s101
    %s118 = sphi 0, %s102
    %s124 = sphi 0, %s126
    %s127 = sphi 0, %s124
    %s128 = sphi 0, %s127
    %s144 = sphi 0, %s128
    %s150 = sphi 0, %s152
    %s153 = sphi 0, %s150
    %s154 = sphi 0, %s153
    %s170 = sphi 0, %s154
    %s176 = sphi 0, %s178
    %s179 = sphi 0, %s176
    %s180 = sphi 0, %s179
    %s196 = sphi 0, %s180
    %s202 = sphi 0, %s204
    %s205 = sphi 0, %s202
    %s206 = sphi 0, %s205
    %s222 = sphi 0, %s206
    %s228 = sphi 0, %s230
    %s231 = sphi 0, %s228
    %s232 = sphi 0, %s231
    %s248 = sphi 0, %s232
    %s254 = sphi 0, %s256
    %s257 = sphi 0, %s254
    %s258 = sphi 0, %s257
    %s274 = sphi 0, %s258
    %s280 = sphi 0, %s282
    %s283 = sphi 0, %s280
    %s284 = sphi 0, %s283
    %s300 = sphi 0, %s284
    %s306 = sphi 0, %s308
    %s309 = sphi 0, %s306
    %s310 = sphi 0, %s309
    %s326 = sphi 0, %s310
    %s332 = sphi 0, %s334
    %s335 = sphi 0, %s332
    %s336 = sphi 0, %s335
    %s352 = sphi 0, %s336
    %s358 = sphi 0, %s360
    %s361 = sphi 0, %s358
    %s362 = sphi 0, %s361
    %s378 = sphi 0, %s362
    %s382 = sphi 0, %s382
    %s384 = sphi 0, %s382
    %s385 = sphi 0, %s384
    %s399 = sphi 0, %s385
  $region4: #{transformer_forward.2} parent=0 // loop_header_branch
    %23 = sbr.rel (%p21) target = $region8
  $region5: #{transformer_forward.2} parent=0 // loop_body
    %s25 = ssub.s32 %s20, 1
    %s26 = ssub.s32 %s20, 2
    %s27 = sadd.s32 %s20, 1
    %s29 = sadd.s32 %s28, 1
    %p32 = scmp.eq.s32.totalorder %s20, 1
    %p33 = scmp.ne.s32.totalorder %s28, %s30
    %p34 = scmp.eq.s32.totalorder %s20, 0
    %p35 = por %p33, %p34
    %p36 = scmp.ne.s32.totalorder %s28, %s30
    %p37 = scmp.eq.s32.totalorder %s25, 1
    %p38 = por %p36, %p37
    %p39 = scmp.ne.s32.totalorder %s30, %s31
    %p40 = scmp.eq.s32.totalorder %s25, 0
    %p41 = por %p39, %p40
    %p42 = scmp.ne.s32.totalorder %s30, %s31
    %p43 = scmp.eq.s32.totalorder %s26, 1
    %p44 = por %p42, %p43
    %p46 = scmp.ne.s32.totalorder %s31, %s45
    %p47 = scmp.eq.s32.totalorder %s26, 0
    %p48 = por %p46, %p47
    %s50 = sadd.s32 %s49, 1
    %p53 = scmp.eq.s32.totalorder %s20, 1
    %p54 = scmp.ne.s32.totalorder %s49, %s51
    %p55 = scmp.eq.s32.totalorder %s20, 0
    %p56 = por %p54, %p55
    %p57 = scmp.ne.s32.totalorder %s49, %s51
    %p58 = scmp.eq.s32.totalorder %s25, 1
    %p59 = por %p57, %p58
    %p60 = scmp.ne.s32.totalorder %s51, %s52
    %p61 = scmp.eq.s32.totalorder %s25, 0
    %p62 = por %p60, %p61
    %p63 = scmp.ne.s32.totalorder %s51, %s52
    %p64 = scmp.eq.s32.totalorder %s26, 1
    %p65 = por %p63, %p64
    %p67 = scmp.ne.s32.totalorder %s52, %s66
    %p68 = scmp.eq.s32.totalorder %s26, 0
    %p69 = por %p67, %p68
    %s70 = ssub.s32 %s20, %s27
    %p71 = scmp.eq.s32.totalorder %s70, 0
    %s73 = sadd.s32 %s72, 1
    %s74 = scalar_select %p71, %s72, %s73
    %p77 = pneg %p71
    %p78 = scmp.eq.s32.totalorder %s20, 1
    %p79 = por %p77, %p78
    %p80 = scmp.ne.s32.totalorder %s72, %s75
    %p81 = scmp.eq.s32.totalorder %s20, 0
    %p82 = por %p80, %p81
    %p83 = scmp.ne.s32.totalorder %s72, %s75
    %p84 = scmp.eq.s32.totalorder %s25, 1
    %p85 = por %p83, %p84
    %p86 = scmp.ne.s32.totalorder %s75, %s76
    %p87 = scmp.eq.s32.totalorder %s25, 0
    %p88 = por %p86, %p87
    %p89 = scmp.ne.s32.totalorder %s75, %s76
    %p90 = scmp.eq.s32.totalorder %s26, 1
    %p91 = por %p89, %p90
    %p93 = scmp.ne.s32.totalorder %s76, %s92
    %p94 = scmp.eq.s32.totalorder %s26, 0
    %p95 = por %p93, %p94
    %s96 = ssub.s32 %s20, %s27
    %p97 = scmp.eq.s32.totalorder %s96, 0
    %s99 = sadd.s32 %s98, 1
    %s100 = scalar_select %p97, %s98, %s99
    %p103 = pneg %p97
    %p104 = scmp.eq.s32.totalorder %s20, 1
    %p105 = por %p103, %p104
    %p106 = scmp.ne.s32.totalorder %s98, %s101
    %p107 = scmp.eq.s32.totalorder %s20, 0
    %p108 = por %p106, %p107
    %p109 = scmp.ne.s32.totalorder %s98, %s101
    %p110 = scmp.eq.s32.totalorder %s25, 1
    %p111 = por %p109, %p110
    %p112 = scmp.ne.s32.totalorder %s101, %s102
    %p113 = scmp.eq.s32.totalorder %s25, 0
    %p114 = por %p112, %p113
    %p115 = scmp.ne.s32.totalorder %s101, %s102
    %p116 = scmp.eq.s32.totalorder %s26, 1
    %p117 = por %p115, %p116
    %p119 = scmp.ne.s32.totalorder %s102, %s118
    %p120 = scmp.eq.s32.totalorder %s26, 0
    %p121 = por %p119, %p120
    %s122 = ssub.s32 %s20, %s27
    %p123 = scmp.eq.s32.totalorder %s122, 0
    %s125 = sadd.s32 %s124, 1
    %s126 = scalar_select %p123, %s124, %s125
    %p129 = pneg %p123
    %p130 = scmp.eq.s32.totalorder %s20, 1
    %p131 = por %p129, %p130
    %p132 = scmp.ne.s32.totalorder %s124, %s127
    %p133 = scmp.eq.s32.totalorder %s20, 0
    %p134 = por %p132, %p133
    %p135 = scmp.ne.s32.totalorder %s124, %s127
    %p136 = scmp.eq.s32.totalorder %s25, 1
    %p137 = por %p135, %p136
    %p138 = scmp.ne.s32.totalorder %s127, %s128
    %p139 = scmp.eq.s32.totalorder %s25, 0
    %p140 = por %p138, %p139
    %p141 = scmp.ne.s32.totalorder %s127, %s128
    %p142 = scmp.eq.s32.totalorder %s26, 1
    %p143 = por %p141, %p142
    %p145 = scmp.ne.s32.totalorder %s128, %s144
    %p146 = scmp.eq.s32.totalorder %s26, 0
    %p147 = por %p145, %p146
    %s148 = ssub.s32 %s20, %s27
    %p149 = scmp.eq.s32.totalorder %s148, 0
    %s151 = sadd.s32 %s150, 1
    %s152 = scalar_select %p149, %s150, %s151
    %p155 = pneg %p149
    %p156 = scmp.eq.s32.totalorder %s20, 1
    %p157 = por %p155, %p156
    %p158 = scmp.ne.s32.totalorder %s150, %s153
    %p159 = scmp.eq.s32.totalorder %s20, 0
    %p160 = por %p158, %p159
    %p161 = scmp.ne.s32.totalorder %s150, %s153
    %p162 = scmp.eq.s32.totalorder %s25, 1
    %p163 = por %p161, %p162
    %p164 = scmp.ne.s32.totalorder %s153, %s154
    %p165 = scmp.eq.s32.totalorder %s25, 0
    %p166 = por %p164, %p165
    %p167 = scmp.ne.s32.totalorder %s153, %s154
    %p168 = scmp.eq.s32.totalorder %s26, 1
    %p169 = por %p167, %p168
    %p171 = scmp.ne.s32.totalorder %s154, %s170
    %p172 = scmp.eq.s32.totalorder %s26, 0
    %p173 = por %p171, %p172
    %s174 = ssub.s32 %s20, %s27
    %p175 = scmp.eq.s32.totalorder %s174, 0
    %s177 = sadd.s32 %s176, 1
    %s178 = scalar_select %p175, %s176, %s177
    %p181 = pneg %p175
    %p182 = scmp.eq.s32.totalorder %s20, 1
    %p183 = por %p181, %p182
    %p184 = scmp.ne.s32.totalorder %s176, %s179
    %p185 = scmp.eq.s32.totalorder %s20, 0
    %p186 = por %p184, %p185
    %p187 = scmp.ne.s32.totalorder %s176, %s179
    %p188 = scmp.eq.s32.totalorder %s25, 1
    %p189 = por %p187, %p188
    %p190 = scmp.ne.s32.totalorder %s179, %s180
    %p191 = scmp.eq.s32.totalorder %s25, 0
    %p192 = por %p190, %p191
    %p193 = scmp.ne.s32.totalorder %s179, %s180
    %p194 = scmp.eq.s32.totalorder %s26, 1
    %p195 = por %p193, %p194
    %p197 = scmp.ne.s32.totalorder %s180, %s196
    %p198 = scmp.eq.s32.totalorder %s26, 0
    %p199 = por %p197, %p198
    %s200 = ssub.s32 %s20, %s27
    %p201 = scmp.eq.s32.totalorder %s200, 0
    %s203 = sadd.s32 %s202, 1
    %s204 = scalar_select %p201, %s202, %s203
    %p207 = pneg %p201
    %p208 = scmp.eq.s32.totalorder %s20, 1
    %p209 = por %p207, %p208
    %p210 = scmp.ne.s32.totalorder %s202, %s205
    %p211 = scmp.eq.s32.totalorder %s20, 0
    %p212 = por %p210, %p211
    %p213 = scmp.ne.s32.totalorder %s202, %s205
    %p214 = scmp.eq.s32.totalorder %s25, 1
    %p215 = por %p213, %p214
    %p216 = scmp.ne.s32.totalorder %s205, %s206
    %p217 = scmp.eq.s32.totalorder %s25, 0
    %p218 = por %p216, %p217
    %p219 = scmp.ne.s32.totalorder %s205, %s206
    %p220 = scmp.eq.s32.totalorder %s26, 1
    %p221 = por %p219, %p220
    %p223 = scmp.ne.s32.totalorder %s206, %s222
    %p224 = scmp.eq.s32.totalorder %s26, 0
    %p225 = por %p223, %p224
    %s226 = ssub.s32 %s20, %s27
    %p227 = scmp.eq.s32.totalorder %s226, 0
    %s229 = sadd.s32 %s228, 1
    %s230 = scalar_select %p227, %s228, %s229
    %p233 = pneg %p227
    %p234 = scmp.eq.s32.totalorder %s20, 1
    %p235 = por %p233, %p234
    %p236 = scmp.ne.s32.totalorder %s228, %s231
    %p237 = scmp.eq.s32.totalorder %s20, 0
    %p238 = por %p236, %p237
    %p239 = scmp.ne.s32.totalorder %s228, %s231
    %p240 = scmp.eq.s32.totalorder %s25, 1
    %p241 = por %p239, %p240
    %p242 = scmp.ne.s32.totalorder %s231, %s232
    %p243 = scmp.eq.s32.totalorder %s25, 0
    %p244 = por %p242, %p243
    %p245 = scmp.ne.s32.totalorder %s231, %s232
    %p246 = scmp.eq.s32.totalorder %s26, 1
    %p247 = por %p245, %p246
    %p249 = scmp.ne.s32.totalorder %s232, %s248
    %p250 = scmp.eq.s32.totalorder %s26, 0
    %p251 = por %p249, %p250
    %s252 = ssub.s32 %s20, %s27
    %p253 = scmp.eq.s32.totalorder %s252, 0
    %s255 = sadd.s32 %s254, 1
    %s256 = scalar_select %p253, %s254, %s255
    %p259 = pneg %p253
    %p260 = scmp.eq.s32.totalorder %s20, 1
    %p261 = por %p259, %p260
    %p262 = scmp.ne.s32.totalorder %s254, %s257
    %p263 = scmp.eq.s32.totalorder %s20, 0
    %p264 = por %p262, %p263
    %p265 = scmp.ne.s32.totalorder %s254, %s257
    %p266 = scmp.eq.s32.totalorder %s25, 1
    %p267 = por %p265, %p266
    %p268 = scmp.ne.s32.totalorder %s257, %s258
    %p269 = scmp.eq.s32.totalorder %s25, 0
    %p270 = por %p268, %p269
    %p271 = scmp.ne.s32.totalorder %s257, %s258
    %p272 = scmp.eq.s32.totalorder %s26, 1
    %p273 = por %p271, %p272
    %p275 = scmp.ne.s32.totalorder %s258, %s274
    %p276 = scmp.eq.s32.totalorder %s26, 0
    %p277 = por %p275, %p276
    %s278 = ssub.s32 %s20, %s27
    %p279 = scmp.eq.s32.totalorder %s278, 0
    %s281 = sadd.s32 %s280, 1
    %s282 = scalar_select %p279, %s280, %s281
    %p285 = pneg %p279
    %p286 = scmp.eq.s32.totalorder %s20, 1
    %p287 = por %p285, %p286
    %p288 = scmp.ne.s32.totalorder %s280, %s283
    %p289 = scmp.eq.s32.totalorder %s20, 0
    %p290 = por %p288, %p289
    %p291 = scmp.ne.s32.totalorder %s280, %s283
    %p292 = scmp.eq.s32.totalorder %s25, 1
    %p293 = por %p291, %p292
    %p294 = scmp.ne.s32.totalorder %s283, %s284
    %p295 = scmp.eq.s32.totalorder %s25, 0
    %p296 = por %p294, %p295
    %p297 = scmp.ne.s32.totalorder %s283, %s284
    %p298 = scmp.eq.s32.totalorder %s26, 1
    %p299 = por %p297, %p298
    %p301 = scmp.ne.s32.totalorder %s284, %s300
    %p302 = scmp.eq.s32.totalorder %s26, 0
    %p303 = por %p301, %p302
    %s304 = ssub.s32 %s20, %s27
    %p305 = scmp.eq.s32.totalorder %s304, 0
    %s307 = sadd.s32 %s306, 1
    %s308 = scalar_select %p305, %s306, %s307
    %p311 = pneg %p305
    %p312 = scmp.eq.s32.totalorder %s20, 1
    %p313 = por %p311, %p312
    %p314 = scmp.ne.s32.totalorder %s306, %s309
    %p315 = scmp.eq.s32.totalorder %s20, 0
    %p316 = por %p314, %p315
    %p317 = scmp.ne.s32.totalorder %s306, %s309
    %p318 = scmp.eq.s32.totalorder %s25, 1
    %p319 = por %p317, %p318
    %p320 = scmp.ne.s32.totalorder %s309, %s310
    %p321 = scmp.eq.s32.totalorder %s25, 0
    %p322 = por %p320, %p321
    %p323 = scmp.ne.s32.totalorder %s309, %s310
    %p324 = scmp.eq.s32.totalorder %s26, 1
    %p325 = por %p323, %p324
    %p327 = scmp.ne.s32.totalorder %s310, %s326
    %p328 = scmp.eq.s32.totalorder %s26, 0
    %p329 = por %p327, %p328
    %s330 = ssub.s32 %s20, %s27
    %p331 = scmp.eq.s32.totalorder %s330, 0
    %s333 = sadd.s32 %s332, 1
    %s334 = scalar_select %p331, %s332, %s333
    %p337 = pneg %p331
    %p338 = scmp.eq.s32.totalorder %s20, 1
    %p339 = por %p337, %p338
    %p340 = scmp.ne.s32.totalorder %s332, %s335
    %p341 = scmp.eq.s32.totalorder %s20, 0
    %p342 = por %p340, %p341
    %p343 = scmp.ne.s32.totalorder %s332, %s335
    %p344 = scmp.eq.s32.totalorder %s25, 1
    %p345 = por %p343, %p344
    %p346 = scmp.ne.s32.totalorder %s335, %s336
    %p347 = scmp.eq.s32.totalorder %s25, 0
    %p348 = por %p346, %p347
    %p349 = scmp.ne.s32.totalorder %s335, %s336
    %p350 = scmp.eq.s32.totalorder %s26, 1
    %p351 = por %p349, %p350
    %p353 = scmp.ne.s32.totalorder %s336, %s352
    %p354 = scmp.eq.s32.totalorder %s26, 0
    %p355 = por %p353, %p354
    %s356 = ssub.s32 %s20, %s27
    %p357 = scmp.eq.s32.totalorder %s356, 0
    %s359 = sadd.s32 %s358, 1
    %s360 = scalar_select %p357, %s358, %s359
    %p363 = pneg %p357
    %p364 = scmp.eq.s32.totalorder %s20, 1
    %p365 = por %p363, %p364
    %p366 = scmp.ne.s32.totalorder %s358, %s361
    %p367 = scmp.eq.s32.totalorder %s20, 0
    %p368 = por %p366, %p367
    %p369 = scmp.ne.s32.totalorder %s358, %s361
    %p370 = scmp.eq.s32.totalorder %s25, 1
    %p371 = por %p369, %p370
    %p372 = scmp.ne.s32.totalorder %s361, %s362
    %p373 = scmp.eq.s32.totalorder %s25, 0
    %p374 = por %p372, %p373
    %p375 = scmp.ne.s32.totalorder %s361, %s362
    %p376 = scmp.eq.s32.totalorder %s26, 1
    %p377 = por %p375, %p376
    %p379 = scmp.ne.s32.totalorder %s362, %s378
    %p380 = scmp.eq.s32.totalorder %s26, 0
    %p381 = por %p379, %p380
    %s383 = sadd.s32 %s382, 1
    %p386 = scmp.eq.s32.totalorder %s20, 1
    %p387 = scmp.ne.s32.totalorder %s382, %s384
    %p388 = scmp.eq.s32.totalorder %s20, 0
    %p389 = por %p387, %p388
    %p390 = scmp.ne.s32.totalorder %s382, %s384
    %p391 = scmp.eq.s32.totalorder %s25, 1
    %p392 = por %p390, %p391
    %p393 = scmp.ne.s32.totalorder %s384, %s385
    %p394 = scmp.eq.s32.totalorder %s25, 0
    %p395 = por %p393, %p394
    %p396 = scmp.ne.s32.totalorder %s384, %s385
    %p397 = scmp.eq.s32.totalorder %s26, 1
    %p398 = por %p396, %p397
    %p400 = scmp.ne.s32.totalorder %s385, %s399
    %p401 = scmp.eq.s32.totalorder %s26, 0
    %p402 = por %p400, %p401
    %p403 = scmp.le.s32.totalorder 1, %s20
    %p404 = scmp.lt.s32.totalorder %s20, 3
    %p405 = pnand %p403, %p404
    %p406 = pneg %p405
    // Predicated region
    $region9: #{transformer_forward.2} parent=5 // pred_check
      _
    $region10: #{transformer_forward.2} parent=5 // pred_check_branch
      %408 = sbr.rel (%p405) target = $region12
    $region11: #{transformer_forward.2} parent=5 // pred_region
      %s409 = ssub.s32 %s20, 1
      // Predicated region
      $region13: #{transformer_forward.2} parent=11 // pred_check
        %p410 = pneg %p41
      $region14: #{transformer_forward.2} parent=11 // pred_check_branch
        %412 = sbr.rel (%p410) target = $region16
      $region15: #{transformer_forward.2} parent=11 // pred_region
        _
      $region16: #{transformer_forward.2} parent=11 // pred_fallthru
        _
      // Predicated region
      $region17: #{transformer_forward.2} parent=11 // pred_check
        %p413 = pneg %p62
      $region18: #{transformer_forward.2} parent=11 // pred_check_branch
        %415 = sbr.rel (%p413) target = $region20
      $region19: #{transformer_forward.2} parent=11 // pred_region
        _
      $region20: #{transformer_forward.2} parent=11 // pred_fallthru
        _
    $region12: #{transformer_forward.2} parent=5 // pred_fallthru
      _
    %p416 = scmp.lt.s32.totalorder %s20, 2
    // Predicated region
    $region21: #{transformer_forward.2} parent=5 // pred_check
      %p417 = pneg %p416
    $region22: #{transformer_forward.2} parent=5 // pred_check_branch
      %419 = sbr.rel (%p417) target = $region24
    $region23: #{transformer_forward.2} parent=5 // pred_region
      // Predicated region
      $region25: #{transformer_forward.2} parent=23 // pred_check
        %p420 = pneg %p82
      $region26: #{transformer_forward.2} parent=23 // pred_check_branch
        %422 = sbr.rel (%p420) target = $region28
      $region27: #{transformer_forward.2} parent=23 // pred_region
        %p423 = scmp.lt.s32.totalorder %s20, 1
        %s424 = scalar_select %p423, %s20, 1
        %s425 = smul.addr %s424, 16
        %s426 = smul.addr %s425, 4
        %s427 = scalar_lea.vmem %s2, %s426
      $region28: #{transformer_forward.2} parent=23 // pred_fallthru
        _
      // Predicated region
      $region29: #{transformer_forward.2} parent=23 // pred_check
        %p428 = pneg %p108
      $region30: #{transformer_forward.2} parent=23 // pred_check_branch
        %430 = sbr.rel (%p428) target = $region32
      $region31: #{transformer_forward.2} parent=23 // pred_region
        %p431 = scmp.lt.s32.totalorder %s20, 1
        %s432 = scalar_select %p431, %s20, 1
        %s433 = smul.addr %s432, 2
        %s434 = scalar_lea.vmem %s3, %s433
      $region32: #{transformer_forward.2} parent=23 // pred_fallthru
        _
      // Predicated region
      $region33: #{transformer_forward.2} parent=23 // pred_check
        %p435 = pneg %p134
      $region34: #{transformer_forward.2} parent=23 // pred_check_branch
        %437 = sbr.rel (%p435) target = $region36
      $region35: #{transformer_forward.2} parent=23 // pred_region
        %p438 = scmp.lt.s32.totalorder %s20, 1
        %s439 = scalar_select %p438, %s20, 1
        %s440 = smul.addr %s439, 8
        %s441 = smul.addr %s440, 4
        %s442 = scalar_lea.vmem %s4, %s441
      $region36: #{transformer_forward.2} parent=23 // pred_fallthru
        _
      // Predicated region
      $region37: #{transformer_forward.2} parent=23 // pred_check
        %p443 = pneg %p160
      $region38: #{transformer_forward.2} parent=23 // pred_check_branch
        %445 = sbr.rel (%p443) target = $region40
      $region39: #{transformer_forward.2} parent=23 // pred_region
        %p446 = scmp.lt.s32.totalorder %s20, 1
        %s447 = scalar_select %p446, %s20, 1
        %s448 = scalar_lea.vmem %s5, %s447
      $region40: #{transformer_forward.2} parent=23 // pred_fallthru
        _
      // Predicated region
      $region41: #{transformer_forward.2} parent=23 // pred_check
        %p449 = pneg %p186
      $region42: #{transformer_forward.2} parent=23 // pred_check_branch
        %451 = sbr.rel (%p449) target = $region44
      $region43: #{transformer_forward.2} parent=23 // pred_region
        %p452 = scmp.lt.s32.totalorder %s20, 1
        %s453 = scalar_select %p452, %s20, 1
        %s454 = scalar_lea.vmem %s6, %s453
      $region44: #{transformer_forward.2} parent=23 // pred_fallthru
        _
      // Predicated region
      $region45: #{transformer_forward.2} parent=23 // pred_check
        %p455 = pneg %p212
      $region46: #{transformer_forward.2} parent=23 // pred_check_branch
        %457 = sbr.rel (%p455) target = $region48
      $region47: #{transformer_forward.2} parent=23 // pred_region
        %p458 = scmp.lt.s32.totalorder %s20, 1
        %s459 = scalar_select %p458, %s20, 1
        %s460 = scalar_lea.vmem %s7, %s459
      $region48: #{transformer_forward.2} parent=23 // pred_fallthru
        _
      // Predicated region
      $region49: #{transformer_forward.2} parent=23 // pred_check
        %p461 = pneg %p238
      $region50: #{transformer_forward.2} parent=23 // pred_check_branch
        %463 = sbr.rel (%p461) target = $region52
      $region51: #{transformer_forward.2} parent=23 // pred_region
        %p464 = scmp.lt.s32.totalorder %s20, 1
        %s465 = scalar_select %p464, %s20, 1
        %s466 = smul.addr %s465, 16
        %s467 = smul.addr %s466, 4
        %s468 = scalar_lea.vmem %s8, %s467
      $region52: #{transformer_forward.2} parent=23 // pred_fallthru
        _
      // Predicated region
      $region53: #{transformer_forward.2} parent=23 // pred_check
        %p469 = pneg %p264
      $region54: #{transformer_forward.2} parent=23 // pred_check_branch
        %471 = sbr.rel (%p469) target = $region56
      $region55: #{transformer_forward.2} parent=23 // pred_region
        %p472 = scmp.lt.s32.totalorder %s20, 1
        %s473 = scalar_select %p472, %s20, 1
        %s474 = smul.addr %s473, 2
        %s475 = scalar_lea.vmem %s9, %s474
      $region56: #{transformer_forward.2} parent=23 // pred_fallthru
        _
      // Predicated region
      $region57: #{transformer_forward.2} parent=23 // pred_check
        %p476 = pneg %p290
      $region58: #{transformer_forward.2} parent=23 // pred_check_branch
        %478 = sbr.rel (%p476) target = $region60
      $region59: #{transformer_forward.2} parent=23 // pred_region
        %p479 = scmp.lt.s32.totalorder %s20, 1
        %s480 = scalar_select %p479, %s20, 1
        %s481 = smul.addr %s480, 32
        %s482 = smul.addr %s481, 4
        %s483 = scalar_lea.vmem %s10, %s482
      $region60: #{transformer_forward.2} parent=23 // pred_fallthru
        _
      // Predicated region
      $region61: #{transformer_forward.2} parent=23 // pred_check
        %p484 = pneg %p316
      $region62: #{transformer_forward.2} parent=23 // pred_check_branch
        %486 = sbr.rel (%p484) target = $region64
      $region63: #{transformer_forward.2} parent=23 // pred_region
        %p487 = scmp.lt.s32.totalorder %s20, 1
        %s488 = scalar_select %p487, %s20, 1
        %s489 = scalar_lea.vmem %s11, %s488
      $region64: #{transformer_forward.2} parent=23 // pred_fallthru
        _
      // Predicated region
      $region65: #{transformer_forward.2} parent=23 // pred_check
        %p490 = pneg %p342
      $region66: #{transformer_forward.2} parent=23 // pred_check_branch
        %492 = sbr.rel (%p490) target = $region68
      $region67: #{transformer_forward.2} parent=23 // pred_region
        %p493 = scmp.lt.s32.totalorder %s20, 1
        %s494 = scalar_select %p493, %s20, 1
        %s495 = scalar_lea.vmem %s12, %s494
      $region68: #{transformer_forward.2} parent=23 // pred_fallthru
        _
      // Predicated region
      $region69: #{transformer_forward.2} parent=23 // pred_check
        %p496 = pneg %p368
      $region70: #{transformer_forward.2} parent=23 // pred_check_branch
        %498 = sbr.rel (%p496) target = $region72
      $region71: #{transformer_forward.2} parent=23 // pred_region
        %p499 = scmp.lt.s32.totalorder %s20, 1
        %s500 = scalar_select %p499, %s20, 1
        %s501 = scalar_lea.vmem %s13, %s500
      $region72: #{transformer_forward.2} parent=23 // pred_fallthru
        _
    $region24: #{transformer_forward.2} parent=5 // pred_fallthru
      _
    %p502 = scmp.le.s32.totalorder 1, %s20
    %p503 = scmp.lt.s32.totalorder %s20, 3
    %p504 = pnand %p502, %p503
    %p505 = pneg %p504
    // Predicated region
    $region73: #{transformer_forward.2} parent=5 // pred_check
      _
    $region74: #{transformer_forward.2} parent=5 // pred_check_branch
      %507 = sbr.rel (%p504) target = $region76
    $region75: #{transformer_forward.2} parent=5 // pred_region
      %s508 = ssub.s32 %s20, 1
      %p509 = pneg %p41
      %p510 = pneg %p38
      %p511 = pneg %p62
      %p512 = pneg %p59
      %p513 = scmp.lt.s32.totalorder %s25, 1
      %s514 = scalar_select %p513, %s25, 1
      %s515 = smul.addr %s514, 16
      %s516 = smul.addr %s515, 4
      %s517 = scalar_lea.vmem %s2, %s516
      %p518 = pneg %p88
      %p519 = pneg %p85
      %p520 = scmp.lt.s32.totalorder %s25, 1
      %s521 = scalar_select %p520, %s25, 1
      %s522 = smul.addr %s521, 2
      %s523 = scalar_lea.vmem %s3, %s522
      %p524 = pneg %p114
      %p525 = pneg %p111
      %p526 = scmp.lt.s32.totalorder %s25, 1
      %s527 = scalar_select %p526, %s25, 1
      %s528 = smul.addr %s527, 8
      %s529 = smul.addr %s528, 4
      %s530 = scalar_lea.vmem %s4, %s529
      %p531 = pneg %p140
      %p532 = pneg %p137
      %p533 = scmp.lt.s32.totalorder %s25, 1
      %s534 = scalar_select %p533, %s25, 1
      %s535 = scalar_lea.vmem %s5, %s534
      %p536 = pneg %p166
      %p537 = pneg %p163
      %p538 = scmp.lt.s32.totalorder %s25, 1
      %s539 = scalar_select %p538, %s25, 1
      %s540 = scalar_lea.vmem %s6, %s539
      %p541 = pneg %p192
      %p542 = pneg %p189
      %p543 = scmp.lt.s32.totalorder %s25, 1
      %s544 = scalar_select %p543, %s25, 1
      %s545 = scalar_lea.vmem %s7, %s544
      %p546 = pneg %p218
      %p547 = pneg %p215
      %p548 = scmp.lt.s32.totalorder %s25, 1
      %s549 = scalar_select %p548, %s25, 1
      %s550 = smul.addr %s549, 16
      %s551 = smul.addr %s550, 4
      %s552 = scalar_lea.vmem %s8, %s551
      %p553 = pneg %p244
      %p554 = pneg %p241
      %p555 = scmp.lt.s32.totalorder %s25, 1
      %s556 = scalar_select %p555, %s25, 1
      %s557 = smul.addr %s556, 2
      %s558 = scalar_lea.vmem %s9, %s557
      %p559 = pneg %p270
      %p560 = pneg %p267
      %p561 = scmp.lt.s32.totalorder %s25, 1
      %s562 = scalar_select %p561, %s25, 1
      %s563 = smul.addr %s562, 32
      %s564 = smul.addr %s563, 4
      %s565 = scalar_lea.vmem %s10, %s564
      %p566 = pneg %p296
      %p567 = pneg %p293
      %p568 = scmp.lt.s32.totalorder %s25, 1
      %s569 = scalar_select %p568, %s25, 1
      %s570 = scalar_lea.vmem %s11, %s569
      %p571 = pneg %p322
      %p572 = pneg %p319
      %p573 = scmp.lt.s32.totalorder %s25, 1
      %s574 = scalar_select %p573, %s25, 1
      %s575 = scalar_lea.vmem %s12, %s574
      %p576 = pneg %p348
      %p577 = pneg %p345
      %p578 = scmp.lt.s32.totalorder %s25, 1
      %s579 = scalar_select %p578, %s25, 1
      %s580 = scalar_lea.vmem %s13, %s579
      %p581 = pneg %p374
      %p582 = pneg %p371
      %p583 = pneg %p395
      %p584 = pneg %p392
      %p585 = scmp.lt.s32.totalorder %s25, 1
      %s586 = scalar_select %p585, %s25, 1
      %s587 = smul.addr %s586, 16
      %s588 = smul.addr %s587, 4
      %s589 = scalar_lea.vmem %s2, %s588
      %p590 = scmp.lt.s32.totalorder %s25, 1
      %s591 = scalar_select %p590, %s25, 1
      %s592 = smul.addr %s591, 2
      %s593 = scalar_lea.vmem %s3, %s592
      %p594 = scmp.lt.s32.totalorder %s25, 1
      %s595 = scalar_select %p594, %s25, 1
      %s596 = smul.addr %s595, 8
      %s597 = smul.addr %s596, 4
      %s598 = scalar_lea.vmem %s4, %s597
      %p599 = scmp.lt.s32.totalorder %s25, 1
      %s600 = scalar_select %p599, %s25, 1
      %s601 = scalar_lea.vmem %s5, %s600
      %p602 = scmp.lt.s32.totalorder %s25, 1
      %s603 = scalar_select %p602, %s25, 1
      %s604 = scalar_lea.vmem %s6, %s603
      %p605 = scmp.lt.s32.totalorder %s25, 1
      %s606 = scalar_select %p605, %s25, 1
      %s607 = scalar_lea.vmem %s7, %s606
      %p608 = scmp.lt.s32.totalorder %s25, 1
      %s609 = scalar_select %p608, %s25, 1
      %s610 = smul.addr %s609, 16
      %s611 = smul.addr %s610, 4
      %s612 = scalar_lea.vmem %s8, %s611
      %p613 = scmp.lt.s32.totalorder %s25, 1
      %s614 = scalar_select %p613, %s25, 1
      %s615 = smul.addr %s614, 2
      %s616 = scalar_lea.vmem %s9, %s615
      %p617 = scmp.lt.s32.totalorder %s25, 1
      %s618 = scalar_select %p617, %s25, 1
      %s619 = smul.addr %s618, 32
      %s620 = smul.addr %s619, 4
      %s621 = scalar_lea.vmem %s10, %s620
      %p622 = scmp.lt.s32.totalorder %s25, 1
      %s623 = scalar_select %p622, %s25, 1
      %s624 = scalar_lea.vmem %s11, %s623
      %p625 = scmp.lt.s32.totalorder %s25, 1
      %s626 = scalar_select %p625, %s25, 1
      %s627 = scalar_lea.vmem %s12, %s626
      %p628 = scmp.lt.s32.totalorder %s25, 1
      %s629 = scalar_select %p628, %s25, 1
      %s630 = scalar_lea.vmem %s13, %s629
      %p632 = scmp.eq.s32.totalorder %s25, 0
      // Predicated region
      $region77: #{transformer_forward.2} parent=75 // pred_check
        %p633 = pneg %p632
      $region78: #{transformer_forward.2} parent=75 // pred_check_branch
        %635 = sbr.rel (%p633) target = $region80
      $region79: #{transformer_forward.2} parent=75 // pred_region
        %v636 = vld [vmem:[%s0] sm:$0xff]
        %v637 = vld [vmem:[%s0 + $0x8] sm:$0xff]
        %vm638 = vcmask 523264
        %639 = vst.msk [vmem:[#allocation2] sm:$0xff] %vm638, %v636
        %640 = vst.msk [vmem:[#allocation2 + $0x8] sm:$0xff] %vm638, %v637
      $region80: #{transformer_forward.2} parent=75 // pred_fallthru
        _
      %v641 = vld [vmem:[#allocation2] sm:$0xff]
      %v642 = vld [vmem:[#allocation2 + $0x8] sm:$0xff]
      %v643 = vpack.c.bf16 %v642, %v641
      %v644 = vld [vmem:[%s589] sm:$0xff]
      %v645 = vld [vmem:[%s589 + $0x8] sm:$0xff]
      %v646 = vld [vmem:[%s589 + $0x10] sm:$0xff]
      %v647 = vld [vmem:[%s589 + $0x18] sm:$0xff]
      %v648 = vld [vmem:[%s589 + $0x20] sm:$0xff]
      %v649 = vld [vmem:[%s589 + $0x28] sm:$0xff]
      %v650 = vld [vmem:[%s589 + $0x30] sm:$0xff]
      %v651 = vld [vmem:[%s589 + $0x38] sm:$0xff]
      %v652 = vld [vmem:[%s593] sm:$0x3]
      %v654 = vperm.slane %v652, 0
      %v655 = vperm.slane %v652, 1
      %v666 = vunpack.c.l.b16 %v644
      %v667 = vunpack.c.h.b16 %v644
      %v668 = vunpack.c.l.b16 %v645
      %v669 = vunpack.c.h.b16 %v645
      %v670 = vunpack.c.l.b16 %v646
      %v671 = vunpack.c.h.b16 %v646
      %v672 = vunpack.c.l.b16 %v647
      %v673 = vunpack.c.h.b16 %v647
      %v674 = vunpack.c.l.b16 %v648
      %v675 = vunpack.c.h.b16 %v648
      %v676 = vunpack.c.l.b16 %v649
      %v677 = vunpack.c.h.b16 %v649
      %v678 = vunpack.c.l.b16 %v650
      %v679 = vunpack.c.h.b16 %v650
      %v680 = vunpack.c.l.b16 %v651
      %v681 = vunpack.c.h.b16 %v651
      %v682 = vpack.c.b16 %v668, %v666
      %v683 = vpack.c.b16 %v669, %v667
      %v684 = vpack.c.b16 %v672, %v670
      %v685 = vpack.c.b16 %v673, %v671
      %v686 = vpack.c.b16 %v676, %v674
      %v687 = vpack.c.b16 %v677, %v675
      %v688 = vpack.c.b16 %v680, %v678
      %v689 = vpack.c.b16 %v681, %v679
      %vm698 = vcmask 523264
      %v700 = vsel %vm698, %v643, 0
      %702 = vmatpush.bf16.msra.mxu0 0
      %703 = vmatpush.bf16.msra.mxu0 0
      %704 = vmatpush.bf16.msra.mxu0 0
      %705 = vmatpush.bf16.msra.mxu0 0
      %706 = vmatpush.bf16.msra.mxu0 %v688
      %707 = vmatpush.bf16.msra.mxu0 %v686
      %708 = vmatpush.bf16.msra.mxu0 %v684
      %709 = vmatpush.bf16.msra.mxu0 %v682
      %710 = vmatmul.bf16.gmra.mxu0 %v700
      %v711 = vpop.f32.mrf.mxu0
      %v712 = vadd.f32 %v654, %v711
      %v713 = vpop.f32.mrf.mxu0
      %v714 = vadd.f32 %v654, %v713
      %715 = vdwg.mxu0
      %716 = vmatpush.bf16.msra.mxu0 0
      %717 = vmatpush.bf16.msra.mxu0 0
      %718 = vmatpush.bf16.msra.mxu0 0
      %719 = vmatpush.bf16.msra.mxu0 0
      %720 = vmatpush.bf16.msra.mxu0 %v689
      %721 = vmatpush.bf16.msra.mxu0 %v687
      %722 = vmatpush.bf16.msra.mxu0 %v685
      %723 = vmatpush.bf16.msra.mxu0 %v683
      %724 = vmatmul.bf16.gmra.mxu0 %v700
      %v725 = vpop.f32.mrf.mxu0
      %v726 = vadd.f32 %v655, %v725
      %v727 = vpop.f32.mrf.mxu0
      %v728 = vadd.f32 %v655, %v727
      %729 = vdwg.mxu0
      %v730 = vld [vmem:[%s1] sm:$0x3]
      %v732 = vrot.slane %v730, 1
      %v733 = vld [vmem:[%s598] sm:$0xf]
      %v734 = vld [vmem:[%s598 + $0x4] sm:$0xf]
      %v735 = vld [vmem:[%s598 + $0x8] sm:$0xf]
      %v736 = vld [vmem:[%s598 + $0xc] sm:$0xf]
      %v737 = vld [vmem:[%s598 + $0x10] sm:$0xf]
      %v738 = vld [vmem:[%s598 + $0x14] sm:$0xf]
      %v739 = vld [vmem:[%s598 + $0x18] sm:$0xf]
      %v740 = vld [vmem:[%s598 + $0x1c] sm:$0xf]
      %742 = vrot.lane.b32.xlu0 %v712, 64
      %v743 = vpop.permute.xlu0 %742
      %vm744 = vcmask 130048
      %v745 = vsel %vm744, %v712, 0
      %v747 = vsel %vm744, %v743, 0
      %749 = vmatpush.xpose.msra.mxu0 0.0
      %750 = vmatpush.xpose.msra.mxu0 0.0
      %751 = vmatpush.xpose.msra.mxu0 0.0
      %752 = vmatpush.xpose.msra.mxu0 0.0
      %753 = vmatpush.xpose.msra.mxu0 0.0
      %754 = vmatpush.xpose.msra.mxu0 0.0
      %755 = vmatpush.xpose.msra.mxu0 0.0
      %756 = vmatpush.xpose.msra.mxu0 0.0
      %757 = vmatpush.xpose.msra.mxu0 0.0
      %758 = vmatpush.xpose.msra.mxu0 0.0
      %759 = vmatpush.xpose.msra.mxu0 0.0
      %760 = vmatpush.xpose.msra.mxu0 0.0
      %761 = vmatpush.xpose.msra.mxu0 0.0
      %762 = vmatpush.xpose.msra.mxu0 0.0
      %763 = vmatpush.xpose.msra.mxu0 0.0
      %764 = vmatpush.xpose.msra.mxu0 %v747
      %765 = vmatmul.f32.gmra.mxu0 %v745
      %v766 = vpop.f32.mrf.mxu0
      %v767 = vadd.f32 0.0, %v766
      %768 = vdwg.mxu0
      %770 = vrot.lane.b32.xlu0 %v714, 64
      %v771 = vpop.permute.xlu0 %770
      %v772 = vsel %vm744, %v714, 0
      %v774 = vsel %vm744, %v771, 0
      %776 = vmatpush.xpose.msra.mxu0 0.0
      %777 = vmatpush.xpose.msra.mxu0 0.0
      %778 = vmatpush.xpose.msra.mxu0 0.0
      %779 = vmatpush.xpose.msra.mxu0 0.0
      %780 = vmatpush.xpose.msra.mxu0 0.0
      %781 = vmatpush.xpose.msra.mxu0 0.0
      %782 = vmatpush.xpose.msra.mxu0 0.0
      %783 = vmatpush.xpose.msra.mxu0 0.0
      %784 = vmatpush.xpose.msra.mxu0 0.0
      %785 = vmatpush.xpose.msra.mxu0 0.0
      %786 = vmatpush.xpose.msra.mxu0 0.0
      %787 = vmatpush.xpose.msra.mxu0 0.0
      %788 = vmatpush.xpose.msra.mxu0 0.0
      %789 = vmatpush.xpose.msra.mxu0 0.0
      %790 = vmatpush.xpose.msra.mxu0 0.0
      %791 = vmatpush.xpose.msra.mxu0 %v774
      %792 = vmatmul.f32.gmra.mxu0 %v772
      %v793 = vpop.f32.mrf.mxu0
      %v794 = vadd.f32 0.0, %v793
      %795 = vdwg.mxu0
      %v796 = vmul.f32 %v767, 0.25
      %v797 = vmul.f32 %v794, 0.25
      %v798 = vperm.slane %v730, 0
      %v799 = vperm.slane %v732, 0
      %v802 = vadd.f32 %v796, %v798
      %v803 = vadd.f32 %v797, %v799
      %vm804 = vcmask 64512
      %v805 = vsel %vm804, %v802, -inf
      %806 = vmax.xlane.f32.xlu0 %v805
      %v807 = vpop.xlane.xlu0 %806
      %v808 = vsel %vm804, %v803, -inf
      %809 = vmax.xlane.f32.xlu0 %v808
      %v810 = vpop.xlane.xlu0 %809
      %v811 = vsub.f32 %v802, %v807
      %v812 = vsub.f32 %v803, %v810
      %v813 = vmul.f32 %v811, 1.442695
      %v814 = vpow.pop %v813
      %v815 = vmul.f32 %v812, 1.442695
      %v816 = vpow.pop %v815
      %v817 = vsel %vm804, %v814, 0.0
      %818 = vadd.xlane.f32.xlu0 %v817
      %v819 = vpop.xlane.xlu0 %818
      %v820 = vsel %vm804, %v816, 0.0
      %821 = vadd.xlane.f32.xlu0 %v820
      %v822 = vpop.xlane.xlu0 %821
      %v823 = vrcp.pop %v819
      %v824 = vrcp.pop %v822
      %v825 = vmul.f32 %v814, %v823
      %v826 = vmul.f32 %v816, %v824
      %v828 = vsel %vm804, %v825, 0
      %830 = vmatpush.msra.mxu0 0.0
      %831 = vmatpush.msra.mxu0 0.0
      %832 = vmatpush.msra.mxu0 0.0
      %833 = vmatpush.msra.mxu0 0.0
      %834 = vmatpush.msra.mxu0 0.0
      %835 = vmatpush.msra.mxu0 0.0
      %836 = vmatpush.msra.mxu0 0.0
      %837 = vmatpush.msra.mxu0 0.0
      %838 = vmatpush.msra.mxu0 0.0
      %839 = vmatpush.msra.mxu0 0.0
      %840 = vmatpush.msra.mxu0 0.0
      %841 = vmatpush.msra.mxu0 0.0
      %842 = vmatpush.msra.mxu0 0.0
      %843 = vmatpush.msra.mxu0 0.0
      %844 = vmatpush.msra.mxu0 0.0
      %845 = vmatpush.msra.mxu0 %v726
      %846 = vmatmul.f32.gmra.mxu0 %v828
      %v847 = vpop.f32.mrf.mxu0
      %v848 = vadd.f32 0.0, %v847
      %849 = vdwg.mxu0
      %v851 = vsel %vm804, %v826, 0
      %853 = vmatpush.msra.mxu0 0.0
      %854 = vmatpush.msra.mxu0 0.0
      %855 = vmatpush.msra.mxu0 0.0
      %856 = vmatpush.msra.mxu0 0.0
      %857 = vmatpush.msra.mxu0 0.0
      %858 = vmatpush.msra.mxu0 0.0
      %859 = vmatpush.msra.mxu0 0.0
      %860 = vmatpush.msra.mxu0 0.0
      %861 = vmatpush.msra.mxu0 0.0
      %862 = vmatpush.msra.mxu0 0.0
      %863 = vmatpush.msra.mxu0 0.0
      %864 = vmatpush.msra.mxu0 0.0
      %865 = vmatpush.msra.mxu0 0.0
      %866 = vmatpush.msra.mxu0 0.0
      %867 = vmatpush.msra.mxu0 0.0
      %868 = vmatpush.msra.mxu0 %v728
      %869 = vmatmul.f32.gmra.mxu0 %v851
      %v870 = vpop.f32.mrf.mxu0
      %v871 = vadd.f32 0.0, %v870
      %872 = vdwg.mxu0
      %v873 = vpack.c.bf16 %v871, %v848
      %874 = vrot.lane.b32.xlu0 %v712, 112
      %v875 = vpop.permute.xlu0 %874
      %876 = vrot.lane.b32.xlu0 %v712, 48
      %v877 = vpop.permute.xlu0 %876
      %v878 = vsel %vm744, %v875, 0
      %v880 = vsel %vm744, %v877, 0
      %882 = vmatpush.xpose.msra.mxu0 0.0
      %883 = vmatpush.xpose.msra.mxu0 0.0
      %884 = vmatpush.xpose.msra.mxu0 0.0
      %885 = vmatpush.xpose.msra.mxu0 0.0
      %886 = vmatpush.xpose.msra.mxu0 0.0
      %887 = vmatpush.xpose.msra.mxu0 0.0
      %888 = vmatpush.xpose.msra.mxu0 0.0
      %889 = vmatpush.xpose.msra.mxu0 0.0
      %890 = vmatpush.xpose.msra.mxu0 0.0
      %891 = vmatpush.xpose.msra.mxu0 0.0
      %892 = vmatpush.xpose.msra.mxu0 0.0
      %893 = vmatpush.xpose.msra.mxu0 0.0
      %894 = vmatpush.xpose.msra.mxu0 0.0
      %895 = vmatpush.xpose.msra.mxu0 0.0
      %896 = vmatpush.xpose.msra.mxu0 0.0
      %897 = vmatpush.xpose.msra.mxu0 %v880
      %898 = vmatmul.f32.gmra.mxu0 %v878
      %v899 = vpop.f32.mrf.mxu0
      %v900 = vadd.f32 0.0, %v899
      %901 = vdwg.mxu0
      %902 = vrot.lane.b32.xlu0 %v714, 112
      %v903 = vpop.permute.xlu0 %902
      %904 = vrot.lane.b32.xlu0 %v714, 48
      %v905 = vpop.permute.xlu0 %904
      %v906 = vsel %vm744, %v903, 0
      %v908 = vsel %vm744, %v905, 0
      %910 = vmatpush.xpose.msra.mxu0 0.0
      %911 = vmatpush.xpose.msra.mxu0 0.0
      %912 = vmatpush.xpose.msra.mxu0 0.0
      %913 = vmatpush.xpose.msra.mxu0 0.0
      %914 = vmatpush.xpose.msra.mxu0 0.0
      %915 = vmatpush.xpose.msra.mxu0 0.0
      %916 = vmatpush.xpose.msra.mxu0 0.0
      %917 = vmatpush.xpose.msra.mxu0 0.0
      %918 = vmatpush.xpose.msra.mxu0 0.0
      %919 = vmatpush.xpose.msra.mxu0 0.0
      %920 = vmatpush.xpose.msra.mxu0 0.0
      %921 = vmatpush.xpose.msra.mxu0 0.0
      %922 = vmatpush.xpose.msra.mxu0 0.0
      %923 = vmatpush.xpose.msra.mxu0 0.0
      %924 = vmatpush.xpose.msra.mxu0 0.0
      %925 = vmatpush.xpose.msra.mxu0 %v908
      %926 = vmatmul.f32.gmra.mxu0 %v906
      %v927 = vpop.f32.mrf.mxu0
      %v928 = vadd.f32 0.0, %v927
      %929 = vdwg.mxu0
      %v930 = vmul.f32 %v900, 0.25
      %v931 = vmul.f32 %v928, 0.25
      %v932 = vadd.f32 %v930, %v798
      %v933 = vadd.f32 %v931, %v799
      %v934 = vsel %vm804, %v932, -inf
      %935 = vmax.xlane.f32.xlu0 %v934
      %v936 = vpop.xlane.xlu0 %935
      %v937 = vsel %vm804, %v933, -inf
      %938 = vmax.xlane.f32.xlu0 %v937
      %v939 = vpop.xlane.xlu0 %938
      %v940 = vsub.f32 %v932, %v936
      %v941 = vsub.f32 %v933, %v939
      %v942 = vmul.f32 %v940, 1.442695
      %v943 = vpow.pop %v942
      %v944 = vmul.f32 %v941, 1.442695
      %v945 = vpow.pop %v944
      %v946 = vsel %vm804, %v943, 0.0
      %947 = vadd.xlane.f32.xlu0 %v946
      %v948 = vpop.xlane.xlu0 %947
      %v949 = vsel %vm804, %v945, 0.0
      %950 = vadd.xlane.f32.xlu0 %v949
      %v951 = vpop.xlane.xlu0 %950
      %v952 = vrcp.pop %v948
      %v953 = vrcp.pop %v951
      %v954 = vmul.f32 %v943, %v952
      %v955 = vmul.f32 %v945, %v953
      %957 = vrot.lane.b32.xlu0 %v726, 112
      %v958 = vpop.permute.xlu0 %957
      %v961 = vsel %vm804, %v954, 0
      %963 = vmatpush.msra.mxu0 0.0
      %964 = vmatpush.msra.mxu0 0.0
      %965 = vmatpush.msra.mxu0 0.0
      %966 = vmatpush.msra.mxu0 0.0
      %967 = vmatpush.msra.mxu0 0.0
      %968 = vmatpush.msra.mxu0 0.0
      %969 = vmatpush.msra.mxu0 0.0
      %970 = vmatpush.msra.mxu0 0.0
      %971 = vmatpush.msra.mxu0 0.0
      %972 = vmatpush.msra.mxu0 0.0
      %973 = vmatpush.msra.mxu0 0.0
      %974 = vmatpush.msra.mxu0 0.0
      %975 = vmatpush.msra.mxu0 0.0
      %976 = vmatpush.msra.mxu0 0.0
      %977 = vmatpush.msra.mxu0 0.0
      %978 = vmatpush.msra.mxu0 %v958
      %979 = vmatmul.f32.gmra.mxu0 %v961
      %v980 = vpop.f32.mrf.mxu0
      %v981 = vadd.f32 0.0, %v980
      %982 = vdwg.mxu0
      %984 = vrot.lane.b32.xlu0 %v728, 112
      %v985 = vpop.permute.xlu0 %984
      %v988 = vsel %vm804, %v955, 0
      %990 = vmatpush.msra.mxu0 0.0
      %991 = vmatpush.msra.mxu0 0.0
      %992 = vmatpush.msra.mxu0 0.0
      %993 = vmatpush.msra.mxu0 0.0
      %994 = vmatpush.msra.mxu0 0.0
      %995 = vmatpush.msra.mxu0 0.0
      %996 = vmatpush.msra.mxu0 0.0
      %997 = vmatpush.msra.mxu0 0.0
      %998 = vmatpush.msra.mxu0 0.0
      %999 = vmatpush.msra.mxu0 0.0
      %1000 = vmatpush.msra.mxu0 0.0
      %1001 = vmatpush.msra.mxu0 0.0
      %1002 = vmatpush.msra.mxu0 0.0
      %1003 = vmatpush.msra.mxu0 0.0
      %1004 = vmatpush.msra.mxu0 0.0
      %1005 = vmatpush.msra.mxu0 %v985
      %1006 = vmatmul.f32.gmra.mxu0 %v988
      %v1007 = vpop.f32.mrf.mxu0
      %v1008 = vadd.f32 0.0, %v1007
      %1009 = vdwg.mxu0
      %v1010 = vpack.c.bf16 %v1008, %v981
      %v1013 = vunpack.c.l.b16 %v735
      %v1014 = vunpack.c.l.b16 %v736
      %v1015 = vpack.c.b16 %v1014, %v1013
      %v1018 = vsel %vm744, %v1010, 0
      %1020 = vmatpush.bf16.msra.mxu0 0
      %1021 = vmatpush.bf16.msra.mxu0 0
      %1022 = vmatpush.bf16.msra.mxu0 0
      %1023 = vmatpush.bf16.msra.mxu0 0
      %1024 = vmatpush.bf16.msra.mxu0 0
      %1025 = vmatpush.bf16.msra.mxu0 0
      %1026 = vmatpush.bf16.msra.mxu0 0
      %1027 = vmatpush.bf16.msra.mxu0 %v1015
      %1028 = vmatmul.bf16.gmra.mxu0 %v1018
      %v1029 = vpop.f32.mrf.mxu0
      %v1030 = vadd.f32 0.0, %v1029
      %v1031 = vpop.f32.mrf.mxu0
      %v1032 = vadd.f32 0.0, %v1031
      %1033 = vdwg.mxu0
      %v1036 = vunpack.c.l.b16 %v733
      %v1037 = vunpack.c.l.b16 %v734
      %v1038 = vpack.c.b16 %v1037, %v1036
      %v1041 = vsel %vm744, %v873, 0
      %1043 = vmatpush.bf16.msra.mxu0 0
      %1044 = vmatpush.bf16.msra.mxu0 0
      %1045 = vmatpush.bf16.msra.mxu0 0
      %1046 = vmatpush.bf16.msra.mxu0 0
      %1047 = vmatpush.bf16.msra.mxu0 0
      %1048 = vmatpush.bf16.msra.mxu0 0
      %1049 = vmatpush.bf16.msra.mxu0 0
      %1050 = vmatpush.bf16.msra.mxu0 %v1038
      %1051 = vmatmul.bf16.gmra.mxu0 %v1041
      %v1052 = vpop.f32.mrf.mxu0
      %v1053 = vadd.f32 %v1030, %v1052
      %v1054 = vpop.f32.mrf.mxu0
      %v1055 = vadd.f32 %v1032, %v1054
      %1056 = vdwg.mxu0
      %1057 = vrot.lane.b32.xlu0 %v712, 96
      %v1058 = vpop.permute.xlu0 %1057
      %1059 = vrot.lane.b32.xlu0 %v712, 32
      %v1060 = vpop.permute.xlu0 %1059
      %v1061 = vsel %vm744, %v1058, 0
      %v1063 = vsel %vm744, %v1060, 0
      %1065 = vmatpush.xpose.msra.mxu0 0.0
      %1066 = vmatpush.xpose.msra.mxu0 0.0
      %1067 = vmatpush.xpose.msra.mxu0 0.0
      %1068 = vmatpush.xpose.msra.mxu0 0.0
      %1069 = vmatpush.xpose.msra.mxu0 0.0
      %1070 = vmatpush.xpose.msra.mxu0 0.0
      %1071 = vmatpush.xpose.msra.mxu0 0.0
      %1072 = vmatpush.xpose.msra.mxu0 0.0
      %1073 = vmatpush.xpose.msra.mxu0 0.0
      %1074 = vmatpush.xpose.msra.mxu0 0.0
      %1075 = vmatpush.xpose.msra.mxu0 0.0
      %1076 = vmatpush.xpose.msra.mxu0 0.0
      %1077 = vmatpush.xpose.msra.mxu0 0.0
      %1078 = vmatpush.xpose.msra.mxu0 0.0
      %1079 = vmatpush.xpose.msra.mxu0 0.0
      %1080 = vmatpush.xpose.msra.mxu0 %v1063
      %1081 = vmatmul.f32.gmra.mxu0 %v1061
      %v1082 = vpop.f32.mrf.mxu0
      %v1083 = vadd.f32 0.0, %v1082
      %1084 = vdwg.mxu0
      %1085 = vrot.lane.b32.xlu0 %v714, 96
      %v1086 = vpop.permute.xlu0 %1085
      %1087 = vrot.lane.b32.xlu0 %v714, 32
      %v1088 = vpop.permute.xlu0 %1087
      %v1089 = vsel %vm744, %v1086, 0
      %v1091 = vsel %vm744, %v1088, 0
      %1093 = vmatpush.xpose.msra.mxu0 0.0
      %1094 = vmatpush.xpose.msra.mxu0 0.0
      %1095 = vmatpush.xpose.msra.mxu0 0.0
      %1096 = vmatpush.xpose.msra.mxu0 0.0
      %1097 = vmatpush.xpose.msra.mxu0 0.0
      %1098 = vmatpush.xpose.msra.mxu0 0.0
      %1099 = vmatpush.xpose.msra.mxu0 0.0
      %1100 = vmatpush.xpose.msra.mxu0 0.0
      %1101 = vmatpush.xpose.msra.mxu0 0.0
      %1102 = vmatpush.xpose.msra.mxu0 0.0
      %1103 = vmatpush.xpose.msra.mxu0 0.0
      %1104 = vmatpush.xpose.msra.mxu0 0.0
      %1105 = vmatpush.xpose.msra.mxu0 0.0
      %1106 = vmatpush.xpose.msra.mxu0 0.0
      %1107 = vmatpush.xpose.msra.mxu0 0.0
      %1108 = vmatpush.xpose.msra.mxu0 %v1091
      %1109 = vmatmul.f32.gmra.mxu0 %v1089
      %v1110 = vpop.f32.mrf.mxu0
      %v1111 = vadd.f32 0.0, %v1110
      %1112 = vdwg.mxu0
      %v1113 = vmul.f32 %v1083, 0.25
      %v1114 = vmul.f32 %v1111, 0.25
      %v1115 = vadd.f32 %v1113, %v798
      %v1116 = vadd.f32 %v1114, %v799
      %v1117 = vsel %vm804, %v1115, -inf
      %1118 = vmax.xlane.f32.xlu0 %v1117
      %v1119 = vpop.xlane.xlu0 %1118
      %v1120 = vsel %vm804, %v1116, -inf
      %1121 = vmax.xlane.f32.xlu0 %v1120
      %v1122 = vpop.xlane.xlu0 %1121
      %v1123 = vsub.f32 %v1115, %v1119
      %v1124 = vsub.f32 %v1116, %v1122
      %v1125 = vmul.f32 %v1123, 1.442695
      %v1126 = vpow.pop %v1125
      %v1127 = vmul.f32 %v1124, 1.442695
      %v1128 = vpow.pop %v1127
      %v1129 = vsel %vm804, %v1126, 0.0
      %1130 = vadd.xlane.f32.xlu0 %v1129
      %v1131 = vpop.xlane.xlu0 %1130
      %v1132 = vsel %vm804, %v1128, 0.0
      %1133 = vadd.xlane.f32.xlu0 %v1132
      %v1134 = vpop.xlane.xlu0 %1133
      %v1135 = vrcp.pop %v1131
      %v1136 = vrcp.pop %v1134
      %v1137 = vmul.f32 %v1126, %v1135
      %v1138 = vmul.f32 %v1128, %v1136
      %1139 = vrot.lane.b32.xlu0 %v726, 96
      %v1140 = vpop.permute.xlu0 %1139
      %v1143 = vsel %vm804, %v1137, 0
      %1145 = vmatpush.msra.mxu0 0.0
      %1146 = vmatpush.msra.mxu0 0.0
      %1147 = vmatpush.msra.mxu0 0.0
      %1148 = vmatpush.msra.mxu0 0.0
      %1149 = vmatpush.msra.mxu0 0.0
      %1150 = vmatpush.msra.mxu0 0.0
      %1151 = vmatpush.msra.mxu0 0.0
      %1152 = vmatpush.msra.mxu0 0.0
      %1153 = vmatpush.msra.mxu0 0.0
      %1154 = vmatpush.msra.mxu0 0.0
      %1155 = vmatpush.msra.mxu0 0.0
      %1156 = vmatpush.msra.mxu0 0.0
      %1157 = vmatpush.msra.mxu0 0.0
      %1158 = vmatpush.msra.mxu0 0.0
      %1159 = vmatpush.msra.mxu0 0.0
      %1160 = vmatpush.msra.mxu0 %v1140
      %1161 = vmatmul.f32.gmra.mxu0 %v1143
      %v1162 = vpop.f32.mrf.mxu0
      %v1163 = vadd.f32 0.0, %v1162
      %1164 = vdwg.mxu0
      %1165 = vrot.lane.b32.xlu0 %v728, 96
      %v1166 = vpop.permute.xlu0 %1165
      %v1169 = vsel %vm804, %v1138, 0
      %1171 = vmatpush.msra.mxu0 0.0
      %1172 = vmatpush.msra.mxu0 0.0
      %1173 = vmatpush.msra.mxu0 0.0
      %1174 = vmatpush.msra.mxu0 0.0
      %1175 = vmatpush.msra.mxu0 0.0
      %1176 = vmatpush.msra.mxu0 0.0
      %1177 = vmatpush.msra.mxu0 0.0
      %1178 = vmatpush.msra.mxu0 0.0
      %1179 = vmatpush.msra.mxu0 0.0
      %1180 = vmatpush.msra.mxu0 0.0
      %1181 = vmatpush.msra.mxu0 0.0
      %1182 = vmatpush.msra.mxu0 0.0
      %1183 = vmatpush.msra.mxu0 0.0
      %1184 = vmatpush.msra.mxu0 0.0
      %1185 = vmatpush.msra.mxu0 0.0
      %1186 = vmatpush.msra.mxu0 %v1166
      %1187 = vmatmul.f32.gmra.mxu0 %v1169
      %v1188 = vpop.f32.mrf.mxu0
      %v1189 = vadd.f32 0.0, %v1188
      %1190 = vdwg.mxu0
      %v1191 = vpack.c.bf16 %v1189, %v1163
      %v1194 = vunpack.c.l.b16 %v737
      %v1195 = vunpack.c.l.b16 %v738
      %v1196 = vpack.c.b16 %v1195, %v1194
      %v1199 = vsel %vm744, %v1191, 0
      %1201 = vmatpush.bf16.msra.mxu0 0
      %1202 = vmatpush.bf16.msra.mxu0 0
      %1203 = vmatpush.bf16.msra.mxu0 0
      %1204 = vmatpush.bf16.msra.mxu0 0
      %1205 = vmatpush.bf16.msra.mxu0 0
      %1206 = vmatpush.bf16.msra.mxu0 0
      %1207 = vmatpush.bf16.msra.mxu0 0
      %1208 = vmatpush.bf16.msra.mxu0 %v1196
      %1209 = vmatmul.bf16.gmra.mxu0 %v1199
      %v1210 = vpop.f32.mrf.mxu0
      %v1211 = vadd.f32 0.0, %v1210
      %v1212 = vpop.f32.mrf.mxu0
      %v1213 = vadd.f32 0.0, %v1212
      %1214 = vdwg.mxu0
      %v1215 = vadd.f32 %v1053, %v1211
      %v1216 = vadd.f32 %v1055, %v1213
      %1217 = vrot.lane.b32.xlu0 %v712, 80
      %v1218 = vpop.permute.xlu0 %1217
      %1219 = vrot.lane.b32.xlu0 %v712, 16
      %v1220 = vpop.permute.xlu0 %1219
      %v1221 = vsel %vm744, %v1218, 0
      %v1223 = vsel %vm744, %v1220, 0
      %1225 = vmatpush.xpose.msra.mxu0 0.0
      %1226 = vmatpush.xpose.msra.mxu0 0.0
      %1227 = vmatpush.xpose.msra.mxu0 0.0
      %1228 = vmatpush.xpose.msra.mxu0 0.0
      %1229 = vmatpush.xpose.msra.mxu0 0.0
      %1230 = vmatpush.xpose.msra.mxu0 0.0
      %1231 = vmatpush.xpose.msra.mxu0 0.0
      %1232 = vmatpush.xpose.msra.mxu0 0.0
      %1233 = vmatpush.xpose.msra.mxu0 0.0
      %1234 = vmatpush.xpose.msra.mxu0 0.0
      %1235 = vmatpush.xpose.msra.mxu0 0.0
      %1236 = vmatpush.xpose.msra.mxu0 0.0
      %1237 = vmatpush.xpose.msra.mxu0 0.0
      %1238 = vmatpush.xpose.msra.mxu0 0.0
      %1239 = vmatpush.xpose.msra.mxu0 0.0
      %1240 = vmatpush.xpose.msra.mxu0 %v1223
      %1241 = vmatmul.f32.gmra.mxu0 %v1221
      %v1242 = vpop.f32.mrf.mxu0
      %v1243 = vadd.f32 0.0, %v1242
      %1244 = vdwg.mxu0
      %1245 = vrot.lane.b32.xlu0 %v714, 80
      %v1246 = vpop.permute.xlu0 %1245
      %1247 = vrot.lane.b32.xlu0 %v714, 16
      %v1248 = vpop.permute.xlu0 %1247
      %v1249 = vsel %vm744, %v1246, 0
      %v1251 = vsel %vm744, %v1248, 0
      %1253 = vmatpush.xpose.msra.mxu0 0.0
      %1254 = vmatpush.xpose.msra.mxu0 0.0
      %1255 = vmatpush.xpose.msra.mxu0 0.0
      %1256 = vmatpush.xpose.msra.mxu0 0.0
      %1257 = vmatpush.xpose.msra.mxu0 0.0
      %1258 = vmatpush.xpose.msra.mxu0 0.0
      %1259 = vmatpush.xpose.msra.mxu0 0.0
      %1260 = vmatpush.xpose.msra.mxu0 0.0
      %1261 = vmatpush.xpose.msra.mxu0 0.0
      %1262 = vmatpush.xpose.msra.mxu0 0.0
      %1263 = vmatpush.xpose.msra.mxu0 0.0
      %1264 = vmatpush.xpose.msra.mxu0 0.0
      %1265 = vmatpush.xpose.msra.mxu0 0.0
      %1266 = vmatpush.xpose.msra.mxu0 0.0
      %1267 = vmatpush.xpose.msra.mxu0 0.0
      %1268 = vmatpush.xpose.msra.mxu0 %v1251
      %1269 = vmatmul.f32.gmra.mxu0 %v1249
      %v1270 = vpop.f32.mrf.mxu0
      %v1271 = vadd.f32 0.0, %v1270
      %1272 = vdwg.mxu0
      %v1273 = vmul.f32 %v1243, 0.25
      %v1274 = vmul.f32 %v1271, 0.25
      %v1275 = vadd.f32 %v1273, %v798
      %v1276 = vadd.f32 %v1274, %v799
      %v1277 = vsel %vm804, %v1275, -inf
      %1278 = vmax.xlane.f32.xlu0 %v1277
      %v1279 = vpop.xlane.xlu0 %1278
      %v1280 = vsel %vm804, %v1276, -inf
      %1281 = vmax.xlane.f32.xlu0 %v1280
      %v1282 = vpop.xlane.xlu0 %1281
      %v1283 = vsub.f32 %v1275, %v1279
      %v1284 = vsub.f32 %v1276, %v1282
      %v1285 = vmul.f32 %v1283, 1.442695
      %v1286 = vpow.pop %v1285
      %v1287 = vmul.f32 %v1284, 1.442695
      %v1288 = vpow.pop %v1287
      %v1289 = vsel %vm804, %v1286, 0.0
      %1290 = vadd.xlane.f32.xlu0 %v1289
      %v1291 = vpop.xlane.xlu0 %1290
      %v1292 = vsel %vm804, %v1288, 0.0
      %1293 = vadd.xlane.f32.xlu0 %v1292
      %v1294 = vpop.xlane.xlu0 %1293
      %v1295 = vrcp.pop %v1291
      %v1296 = vrcp.pop %v1294
      %v1297 = vmul.f32 %v1286, %v1295
      %v1298 = vmul.f32 %v1288, %v1296
      %1299 = vrot.lane.b32.xlu0 %v726, 80
      %v1300 = vpop.permute.xlu0 %1299
      %v1303 = vsel %vm804, %v1297, 0
      %1305 = vmatpush.msra.mxu0 0.0
      %1306 = vmatpush.msra.mxu0 0.0
      %1307 = vmatpush.msra.mxu0 0.0
      %1308 = vmatpush.msra.mxu0 0.0
      %1309 = vmatpush.msra.mxu0 0.0
      %1310 = vmatpush.msra.mxu0 0.0
      %1311 = vmatpush.msra.mxu0 0.0
      %1312 = vmatpush.msra.mxu0 0.0
      %1313 = vmatpush.msra.mxu0 0.0
      %1314 = vmatpush.msra.mxu0 0.0
      %1315 = vmatpush.msra.mxu0 0.0
      %1316 = vmatpush.msra.mxu0 0.0
      %1317 = vmatpush.msra.mxu0 0.0
      %1318 = vmatpush.msra.mxu0 0.0
      %1319 = vmatpush.msra.mxu0 0.0
      %1320 = vmatpush.msra.mxu0 %v1300
      %1321 = vmatmul.f32.gmra.mxu0 %v1303
      %v1322 = vpop.f32.mrf.mxu0
      %v1323 = vadd.f32 0.0, %v1322
      %1324 = vdwg.mxu0
      %1325 = vrot.lane.b32.xlu0 %v728, 80
      %v1326 = vpop.permute.xlu0 %1325
      %v1329 = vsel %vm804, %v1298, 0
      %1331 = vmatpush.msra.mxu0 0.0
      %1332 = vmatpush.msra.mxu0 0.0
      %1333 = vmatpush.msra.mxu0 0.0
      %1334 = vmatpush.msra.mxu0 0.0
      %1335 = vmatpush.msra.mxu0 0.0
      %1336 = vmatpush.msra.mxu0 0.0
      %1337 = vmatpush.msra.mxu0 0.0
      %1338 = vmatpush.msra.mxu0 0.0
      %1339 = vmatpush.msra.mxu0 0.0
      %1340 = vmatpush.msra.mxu0 0.0
      %1341 = vmatpush.msra.mxu0 0.0
      %1342 = vmatpush.msra.mxu0 0.0
      %1343 = vmatpush.msra.mxu0 0.0
      %1344 = vmatpush.msra.mxu0 0.0
      %1345 = vmatpush.msra.mxu0 0.0
      %1346 = vmatpush.msra.mxu0 %v1326
      %1347 = vmatmul.f32.gmra.mxu0 %v1329
      %v1348 = vpop.f32.mrf.mxu0
      %v1349 = vadd.f32 0.0, %v1348
      %1350 = vdwg.mxu0
      %v1351 = vpack.c.bf16 %v1349, %v1323
      %v1354 = vunpack.c.l.b16 %v739
      %v1355 = vunpack.c.l.b16 %v740
      %v1356 = vpack.c.b16 %v1355, %v1354
      %v1359 = vsel %vm744, %v1351, 0
      %1361 = vmatpush.bf16.msra.mxu0 0
      %1362 = vmatpush.bf16.msra.mxu0 0
      %1363 = vmatpush.bf16.msra.mxu0 0
      %1364 = vmatpush.bf16.msra.mxu0 0
      %1365 = vmatpush.bf16.msra.mxu0 0
      %1366 = vmatpush.bf16.msra.mxu0 0
      %1367 = vmatpush.bf16.msra.mxu0 0
      %1368 = vmatpush.bf16.msra.mxu0 %v1356
      %1369 = vmatmul.bf16.gmra.mxu0 %v1359
      %v1370 = vpop.f32.mrf.mxu0
      %v1371 = vadd.f32 0.0, %v1370
      %v1372 = vpop.f32.mrf.mxu0
      %v1373 = vadd.f32 0.0, %v1372
      %1374 = vdwg.mxu0
      %v1375 = vadd.f32 %v1215, %v1371
      %v1376 = vadd.f32 %v1216, %v1373
      %v1377 = vld [vmem:[%s601] sm:$0x1]
      %v1379 = vperm.slane %v1377, 0
      %v1381 = vadd.f32 %v1375, %v1379
      %v1382 = vadd.f32 %v1376, %v1379
      %v1383 = vadd.f32 %v1381, %v641
      %v1384 = vadd.f32 %v1382, %v642
      %v1385 = vld [vmem:[%s604] sm:$0x1]
      %v1386 = vld [vmem:[%s607] sm:$0x1]
      %v1387 = vsel %vm698, %v1383, 0.0
      %1388 = vadd.xlane.f32.xlu0 %v1387
      %v1389 = vpop.xlane.xlu0 %1388
      %v1390 = vsel %vm698, %v1384, 0.0
      %1391 = vadd.xlane.f32.xlu0 %v1390
      %v1392 = vpop.xlane.xlu0 %1391
      %v1393 = vrcp.pop 64.0
      %v1394 = vmul.f32 64.0, %v1393
      %v1395 = vsub.f32 1.0, %v1394
      %v1396 = vmul.f32 %v1393, %v1395
      %v1397 = vadd.f32 %v1393, %v1396
      %vm1398 = vweird.f32 %v1393
      %v1399 = vsel %vm1398, %v1393, %v1397
      %v1400 = vmul.f32 %v1389, %v1399
      %v1401 = vmul.f32 %v1392, %v1399
      %v1402 = vsub.f32 %v1383, %v1400
      %v1403 = vsub.f32 %v1384, %v1401
      %v1404 = vmul.f32 %v1402, %v1402
      %v1405 = vmul.f32 %v1403, %v1403
      %v1406 = vsel %vm698, %v1404, 0.0
      %1407 = vadd.xlane.f32.xlu0 %v1406
      %v1408 = vpop.xlane.xlu0 %1407
      %v1409 = vsel %vm698, %v1405, 0.0
      %1410 = vadd.xlane.f32.xlu0 %v1409
      %v1411 = vpop.xlane.xlu0 %1410
      %v1412 = vmul.f32 %v1408, %v1399
      %v1413 = vmul.f32 %v1411, %v1399
      %v1414 = vadd.f32 %v1412, 1e-05
      %v1415 = vadd.f32 %v1413, 1e-05
      %v1416 = vrsqrt.pop %v1414
      %v1417 = vmul.f32 %v1416, %v1414
      %v1418 = vmul.f32 %v1417, %v1416
      %v1419 = vmul.f32 0.5, %v1418
      %v1420 = vsub.f32 1.5, %v1419
      %v1421 = vmul.f32 %v1416, %v1420
      %vm1422 = vweird.f32 %v1414
      %vm1423 = vweird.f32 %v1416
      %vm1424 = vmor %vm1422, %vm1423
      %v1425 = vsel %vm1424, %v1416, %v1421
      %v1426 = vrsqrt.pop %v1415
      %v1427 = vmul.f32 %v1426, %v1415
      %v1428 = vmul.f32 %v1427, %v1426
      %v1429 = vmul.f32 0.5, %v1428
      %v1430 = vsub.f32 1.5, %v1429
      %v1431 = vmul.f32 %v1426, %v1430
      %vm1432 = vweird.f32 %v1415
      %vm1433 = vweird.f32 %v1426
      %vm1434 = vmor %vm1432, %vm1433
      %v1435 = vsel %vm1434, %v1426, %v1431
      %v1436 = vmul.f32 %v1402, %v1425
      %v1437 = vmul.f32 %v1403, %v1435
      %v1439 = vperm.slane %v1385, 0
      %v1441 = vmul.f32 %v1436, %v1439
      %v1442 = vmul.f32 %v1437, %v1439
      %v1444 = vperm.slane %v1386, 0
      %v1446 = vadd.f32 %v1441, %v1444
      %v1447 = vadd.f32 %v1442, %v1444
      %v1448 = vpack.c.bf16 %v1447, %v1446
      %v1449 = vld [vmem:[%s612] sm:$0xff]
      %v1450 = vld [vmem:[%s612 + $0x8] sm:$0xff]
      %v1451 = vld [vmem:[%s612 + $0x10] sm:$0xff]
      %v1452 = vld [vmem:[%s612 + $0x18] sm:$0xff]
      %v1453 = vld [vmem:[%s612 + $0x20] sm:$0xff]
      %v1454 = vld [vmem:[%s612 + $0x28] sm:$0xff]
      %v1455 = vld [vmem:[%s612 + $0x30] sm:$0xff]
      %v1456 = vld [vmem:[%s612 + $0x38] sm:$0xff]
      %v1457 = vld [vmem:[%s616] sm:$0x3]
      %v1459 = vperm.slane %v1457, 0
      %v1460 = vperm.slane %v1457, 1
      %v1471 = vunpack.c.l.b16 %v1449
      %v1472 = vunpack.c.h.b16 %v1449
      %v1473 = vunpack.c.l.b16 %v1450
      %v1474 = vunpack.c.h.b16 %v1450
      %v1475 = vunpack.c.l.b16 %v1451
      %v1476 = vunpack.c.h.b16 %v1451
      %v1477 = vunpack.c.l.b16 %v1452
      %v1478 = vunpack.c.h.b16 %v1452
      %v1479 = vunpack.c.l.b16 %v1453
      %v1480 = vunpack.c.h.b16 %v1453
      %v1481 = vunpack.c.l.b16 %v1454
      %v1482 = vunpack.c.h.b16 %v1454
      %v1483 = vunpack.c.l.b16 %v1455
      %v1484 = vunpack.c.h.b16 %v1455
      %v1485 = vunpack.c.l.b16 %v1456
      %v1486 = vunpack.c.h.b16 %v1456
      %v1487 = vpack.c.b16 %v1473, %v1471
      %v1488 = vpack.c.b16 %v1474, %v1472
      %v1489 = vpack.c.b16 %v1477, %v1475
      %v1490 = vpack.c.b16 %v1478, %v1476
      %v1491 = vpack.c.b16 %v1481, %v1479
      %v1492 = vpack.c.b16 %v1482, %v1480
      %v1493 = vpack.c.b16 %v1485, %v1483
      %v1494 = vpack.c.b16 %v1486, %v1484
      %v1504 = vsel %vm698, %v1448, 0
      %1506 = vmatpush.bf16.msra.mxu0 0
      %1507 = vmatpush.bf16.msra.mxu0 0
      %1508 = vmatpush.bf16.msra.mxu0 0
      %1509 = vmatpush.bf16.msra.mxu0 0
      %1510 = vmatpush.bf16.msra.mxu0 %v1493
      %1511 = vmatpush.bf16.msra.mxu0 %v1491
      %1512 = vmatpush.bf16.msra.mxu0 %v1489
      %1513 = vmatpush.bf16.msra.mxu0 %v1487
      %1514 = vmatmul.bf16.gmra.mxu0 %v1504
      %v1515 = vpop.f32.mrf.mxu0
      %v1516 = vadd.f32 %v1459, %v1515
      %v1517 = vpop.f32.mrf.mxu0
      %v1518 = vadd.f32 %v1459, %v1517
      %1519 = vdwg.mxu0
      %1520 = vmatpush.bf16.msra.mxu0 0
      %1521 = vmatpush.bf16.msra.mxu0 0
      %1522 = vmatpush.bf16.msra.mxu0 0
      %1523 = vmatpush.bf16.msra.mxu0 0
      %1524 = vmatpush.bf16.msra.mxu0 %v1494
      %1525 = vmatpush.bf16.msra.mxu0 %v1492
      %1526 = vmatpush.bf16.msra.mxu0 %v1490
      %1527 = vmatpush.bf16.msra.mxu0 %v1488
      %1528 = vmatmul.bf16.gmra.mxu0 %v1504
      %v1529 = vpop.f32.mrf.mxu0
      %v1530 = vadd.f32 %v1460, %v1529
      %v1531 = vpop.f32.mrf.mxu0
      %v1532 = vadd.f32 %v1460, %v1531
      %1533 = vdwg.mxu0
      %v1534 = vmax.f32 %v1516, 0.0
      %v1535 = vmax.f32 %v1530, 0.0
      %v1536 = vmax.f32 %v1518, 0.0
      %v1537 = vmax.f32 %v1532, 0.0
      %v1538 = vpack.c.bf16 %v1536, %v1534
      %v1539 = vpack.c.bf16 %v1537, %v1535
      %v1540 = vld [vmem:[%s621] sm:$0xf]
      %v1541 = vld [vmem:[%s621 + $0x4] sm:$0xf]
      %v1542 = vld [vmem:[%s621 + $0x8] sm:$0xf]
      %v1543 = vld [vmem:[%s621 + $0xc] sm:$0xf]
      %v1544 = vld [vmem:[%s621 + $0x10] sm:$0xf]
      %v1545 = vld [vmem:[%s621 + $0x14] sm:$0xf]
      %v1546 = vld [vmem:[%s621 + $0x18] sm:$0xf]
      %v1547 = vld [vmem:[%s621 + $0x1c] sm:$0xf]
      %v1548 = vld [vmem:[%s621 + $0x20] sm:$0xf]
      %v1549 = vld [vmem:[%s621 + $0x24] sm:$0xf]
      %v1550 = vld [vmem:[%s621 + $0x28] sm:$0xf]
      %v1551 = vld [vmem:[%s621 + $0x2c] sm:$0xf]
      %v1552 = vld [vmem:[%s621 + $0x30] sm:$0xf]
      %v1553 = vld [vmem:[%s621 + $0x34] sm:$0xf]
      %v1554 = vld [vmem:[%s621 + $0x38] sm:$0xf]
      %v1555 = vld [vmem:[%s621 + $0x3c] sm:$0xf]
      %v1556 = vld [vmem:[%s621 + $0x40] sm:$0xf]
      %v1557 = vld [vmem:[%s621 + $0x44] sm:$0xf]
      %v1558 = vld [vmem:[%s621 + $0x48] sm:$0xf]
      %v1559 = vld [vmem:[%s621 + $0x4c] sm:$0xf]
      %v1560 = vld [vmem:[%s621 + $0x50] sm:$0xf]
      %v1561 = vld [vmem:[%s621 + $0x54] sm:$0xf]
      %v1562 = vld [vmem:[%s621 + $0x58] sm:$0xf]
      %v1563 = vld [vmem:[%s621 + $0x5c] sm:$0xf]
      %v1564 = vld [vmem:[%s621 + $0x60] sm:$0xf]
      %v1565 = vld [vmem:[%s621 + $0x64] sm:$0xf]
      %v1566 = vld [vmem:[%s621 + $0x68] sm:$0xf]
      %v1567 = vld [vmem:[%s621 + $0x6c] sm:$0xf]
      %v1568 = vld [vmem:[%s621 + $0x70] sm:$0xf]
      %v1569 = vld [vmem:[%s621 + $0x74] sm:$0xf]
      %v1570 = vld [vmem:[%s621 + $0x78] sm:$0xf]
      %v1571 = vld [vmem:[%s621 + $0x7c] sm:$0xf]
      %v1604 = vunpack.c.l.b16 %v1540
      %v1605 = vunpack.c.l.b16 %v1541
      %v1606 = vunpack.c.l.b16 %v1542
      %v1607 = vunpack.c.l.b16 %v1543
      %v1608 = vunpack.c.l.b16 %v1544
      %v1609 = vunpack.c.l.b16 %v1545
      %v1610 = vunpack.c.l.b16 %v1546
      %v1611 = vunpack.c.l.b16 %v1547
      %v1612 = vunpack.c.l.b16 %v1548
      %v1613 = vunpack.c.l.b16 %v1549
      %v1614 = vunpack.c.l.b16 %v1550
      %v1615 = vunpack.c.l.b16 %v1551
      %v1616 = vunpack.c.l.b16 %v1552
      %v1617 = vunpack.c.l.b16 %v1553
      %v1618 = vunpack.c.l.b16 %v1554
      %v1619 = vunpack.c.l.b16 %v1555
      %v1620 = vunpack.c.l.b16 %v1556
      %v1621 = vunpack.c.l.b16 %v1557
      %v1622 = vunpack.c.l.b16 %v1558
      %v1623 = vunpack.c.l.b16 %v1559
      %v1624 = vunpack.c.l.b16 %v1560
      %v1625 = vunpack.c.l.b16 %v1561
      %v1626 = vunpack.c.l.b16 %v1562
      %v1627 = vunpack.c.l.b16 %v1563
      %v1628 = vunpack.c.l.b16 %v1564
      %v1629 = vunpack.c.l.b16 %v1565
      %v1630 = vunpack.c.l.b16 %v1566
      %v1631 = vunpack.c.l.b16 %v1567
      %v1632 = vunpack.c.l.b16 %v1568
      %v1633 = vunpack.c.l.b16 %v1569
      %v1634 = vunpack.c.l.b16 %v1570
      %v1635 = vunpack.c.l.b16 %v1571
      %v1636 = vpack.c.b16 %v1605, %v1604
      %v1637 = vpack.c.b16 %v1607, %v1606
      %v1638 = vpack.c.b16 %v1609, %v1608
      %v1639 = vpack.c.b16 %v1611, %v1610
      %v1640 = vpack.c.b16 %v1613, %v1612
      %v1641 = vpack.c.b16 %v1615, %v1614
      %v1642 = vpack.c.b16 %v1617, %v1616
      %v1643 = vpack.c.b16 %v1619, %v1618
      %v1644 = vpack.c.b16 %v1621, %v1620
      %v1645 = vpack.c.b16 %v1623, %v1622
      %v1646 = vpack.c.b16 %v1625, %v1624
      %v1647 = vpack.c.b16 %v1627, %v1626
      %v1648 = vpack.c.b16 %v1629, %v1628
      %v1649 = vpack.c.b16 %v1631, %v1630
      %v1650 = vpack.c.b16 %v1633, %v1632
      %v1651 = vpack.c.b16 %v1635, %v1634
      %1668 = vmatpush.bf16.msra.mxu0 %v1643
      %1669 = vmatpush.bf16.msra.mxu0 %v1642
      %1670 = vmatpush.bf16.msra.mxu0 %v1641
      %1671 = vmatpush.bf16.msra.mxu0 %v1640
      %1672 = vmatpush.bf16.msra.mxu0 %v1639
      %1673 = vmatpush.bf16.msra.mxu0 %v1638
      %1674 = vmatpush.bf16.msra.mxu0 %v1637
      %1675 = vmatpush.bf16.msra.mxu0 %v1636
      %1676 = vmatmul.bf16.gmra.mxu0 %v1538
      %v1677 = vpop.f32.mrf.mxu0
      %v1678 = vadd.f32 0.0, %v1677
      %v1679 = vpop.f32.mrf.mxu0
      %v1680 = vadd.f32 0.0, %v1679
      %1681 = vdwg.mxu0
      %1682 = vmatpush.bf16.msra.mxu0 %v1651
      %1683 = vmatpush.bf16.msra.mxu0 %v1650
      %1684 = vmatpush.bf16.msra.mxu0 %v1649
      %1685 = vmatpush.bf16.msra.mxu0 %v1648
      %1686 = vmatpush.bf16.msra.mxu0 %v1647
      %1687 = vmatpush.bf16.msra.mxu0 %v1646
      %1688 = vmatpush.bf16.msra.mxu0 %v1645
      %1689 = vmatpush.bf16.msra.mxu0 %v1644
      %1690 = vmatmul.bf16.gmra.mxu0 %v1539
      %v1691 = vpop.f32.mrf.mxu0
      %v1692 = vadd.f32 %v1678, %v1691
      %v1693 = vpop.f32.mrf.mxu0
      %v1694 = vadd.f32 %v1680, %v1693
      %1695 = vdwg.mxu0
      %v1696 = vadd.f32 %v1446, %v1692
      %v1697 = vadd.f32 %v1447, %v1694
      %v1698 = vld [vmem:[%s624] sm:$0x1]
      %v1700 = vperm.slane %v1698, 0
      %v1702 = vadd.f32 %v1696, %v1700
      %v1703 = vadd.f32 %v1697, %v1700
      %v1704 = vld [vmem:[%s627] sm:$0x1]
      %v1705 = vld [vmem:[%s630] sm:$0x1]
      %v1706 = vsel %vm698, %v1702, 0.0
      %1707 = vadd.xlane.f32.xlu0 %v1706
      %v1708 = vpop.xlane.xlu0 %1707
      %v1709 = vsel %vm698, %v1703, 0.0
      %1710 = vadd.xlane.f32.xlu0 %v1709
      %v1711 = vpop.xlane.xlu0 %1710
      %v1712 = vmul.f32 %v1708, %v1399
      %v1713 = vmul.f32 %v1711, %v1399
      %v1714 = vsub.f32 %v1702, %v1712
      %v1715 = vsub.f32 %v1703, %v1713
      %v1716 = vmul.f32 %v1714, %v1714
      %v1717 = vmul.f32 %v1715, %v1715
      %v1718 = vsel %vm698, %v1716, 0.0
      %1719 = vadd.xlane.f32.xlu0 %v1718
      %v1720 = vpop.xlane.xlu0 %1719
      %v1721 = vsel %vm698, %v1717, 0.0
      %1722 = vadd.xlane.f32.xlu0 %v1721
      %v1723 = vpop.xlane.xlu0 %1722
      %v1724 = vmul.f32 %v1720, %v1399
      %v1725 = vmul.f32 %v1723, %v1399
      %v1726 = vadd.f32 %v1724, 1e-05
      %v1727 = vadd.f32 %v1725, 1e-05
      %v1728 = vrsqrt.pop %v1726
      %v1729 = vmul.f32 %v1728, %v1726
      %v1730 = vmul.f32 %v1729, %v1728
      %v1731 = vmul.f32 0.5, %v1730
      %v1732 = vsub.f32 1.5, %v1731
      %v1733 = vmul.f32 %v1728, %v1732
      %vm1734 = vweird.f32 %v1726
      %vm1735 = vweird.f32 %v1728
      %vm1736 = vmor %vm1734, %vm1735
      %v1737 = vsel %vm1736, %v1728, %v1733
      %v1738 = vrsqrt.pop %v1727
      %v1739 = vmul.f32 %v1738, %v1727
      %v1740 = vmul.f32 %v1739, %v1738
      %v1741 = vmul.f32 0.5, %v1740
      %v1742 = vsub.f32 1.5, %v1741
      %v1743 = vmul.f32 %v1738, %v1742
      %vm1744 = vweird.f32 %v1727
      %vm1745 = vweird.f32 %v1738
      %vm1746 = vmor %vm1744, %vm1745
      %v1747 = vsel %vm1746, %v1738, %v1743
      %v1748 = vmul.f32 %v1714, %v1737
      %v1749 = vmul.f32 %v1715, %v1747
      %v1751 = vperm.slane %v1704, 0
      %v1753 = vmul.f32 %v1748, %v1751
      %v1754 = vmul.f32 %v1749, %v1751
      %v1756 = vperm.slane %v1705, 0
      %v1758 = vadd.f32 %v1753, %v1756
      %v1759 = vadd.f32 %v1754, %v1756
      %1760 = vst.msk [vmem:[#allocation2] sm:$0xff] %vm698, %v1758
      %1761 = vst.msk [vmem:[#allocation2 + $0x8] sm:$0xff] %vm698, %v1759
      %p1762 = scmp.eq.s32.totalorder %s25, 1
      // Predicated region
      $region81: #{transformer_forward.2} parent=75 // pred_check
        %p1763 = pneg %p1762
      $region82: #{transformer_forward.2} parent=75 // pred_check_branch
        %1765 = sbr.rel (%p1763) target = $region84
      $region83: #{transformer_forward.2} parent=75 // pred_region
        %1766 = vst.msk [vmem:[%s14] sm:$0xff] %vm698, %v1758
        %1767 = vst.msk [vmem:[%s14 + $0x8] sm:$0xff] %vm698, %v1759
      $region84: #{transformer_forward.2} parent=75 // pred_fallthru
        _
      // Predicated region
      $region85: #{transformer_forward.2} parent=75 // pred_check
        %p1768 = pneg %p392
      $region86: #{transformer_forward.2} parent=75 // pred_check_branch
        %1770 = sbr.rel (%p1768) target = $region88
      $region87: #{transformer_forward.2} parent=75 // pred_region
        _
      $region88: #{transformer_forward.2} parent=75 // pred_fallthru
        _
      // Predicated region
      $region89: #{transformer_forward.2} parent=75 // pred_check
        %p1771 = pneg %p392
      $region90: #{transformer_forward.2} parent=75 // pred_check_branch
        %1773 = sbr.rel (%p1771) target = $region92
      $region91: #{transformer_forward.2} parent=75 // pred_region
        _
      $region92: #{transformer_forward.2} parent=75 // pred_fallthru
        _
    $region76: #{transformer_forward.2} parent=5 // pred_fallthru
      _
    %p1774 = scmp.le.s32.totalorder 2, %s20
    // Predicated region
    $region93: #{transformer_forward.2} parent=5 // pred_check
      %p1775 = pneg %p1774
    $region94: #{transformer_forward.2} parent=5 // pred_check_branch
      %1777 = sbr.rel (%p1775) target = $region96
    $region95: #{transformer_forward.2} parent=5 // pred_region
      %s1778 = ssub.s32 %s20, 2
    $region96: #{transformer_forward.2} parent=5 // pred_fallthru
      _
  $region6: #{transformer_forward.2} parent=0 // loop_footer
    %s24 = sadd.s32 1, %s20
  $region7: #{transformer_forward.2} parent=0 // loop_footer_branch
    %19 = sbr.rel target = $region3
  $region8: #{transformer_forward.2} parent=0 // loop_exit
    _

// kernel: transformer_forward.3
$region0: #{transformer_forward.3}
  #allocation0 [shape = 'u32[]', space=smem, size = 0x4, offset = 0x4, fixed_abs, tag = 'smem constant byte address 0x4 - core index']
  #allocation1 [shape = 'u32[72,128]{1,0:T(1,128)}', space=vmem, size = 0x9000, scoped, tag = 'internal scratch']
  #allocation2 [shape = 'f32[16,64]{1,0:T(8,128)}', space=vmem, size = 0x2000, scoped, tag = 'scratch operand']
  %s0 = inlined_call_operand.vmem [shape: f32[16,64], index: 0, kind: input, shape index: {}]
  %s1 = inlined_call_operand.vmem [shape: f32[16,64], index: 1, kind: input, shape index: {}]
  %s2 = inlined_call_operand.vmem [shape: f32[2,8], index: 2, kind: input, shape index: {}]
  %s3 = inlined_call_operand.vmem [shape: bf16[2,64,192], index: 3, kind: input, shape index: {}]
  %s4 = inlined_call_operand.vmem [shape: f32[2,1,192], index: 4, kind: input, shape index: {}]
  %s5 = inlined_call_operand.vmem [shape: bf16[2,64,64], index: 5, kind: input, shape index: {}]
  %s6 = inlined_call_operand.vmem [shape: f32[2,1,64], index: 6, kind: input, shape index: {}]
  %s7 = inlined_call_operand.vmem [shape: f32[2,1,64], index: 7, kind: input, shape index: {}]
  %s8 = inlined_call_operand.vmem [shape: f32[2,1,64], index: 8, kind: input, shape index: {}]
  %s9 = inlined_call_operand.vmem [shape: bf16[2,64,64], index: 9, kind: input, shape index: {}]
  %s10 = inlined_call_operand.vmem [shape: f32[2,1,64], index: 10, kind: input, shape index: {}]
  %s11 = inlined_call_operand.vmem [shape: bf16[2,64,128], index: 11, kind: input, shape index: {}]
  %s12 = inlined_call_operand.vmem [shape: f32[2,1,128], index: 12, kind: input, shape index: {}]
  %s13 = inlined_call_operand.vmem [shape: bf16[2,64,64], index: 13, kind: input, shape index: {}]
  %s14 = inlined_call_operand.vmem [shape: f32[2,1,64], index: 14, kind: input, shape index: {}]
  %s15 = inlined_call_operand.vmem [shape: f32[2,1,64], index: 15, kind: input, shape index: {}]
  %s16 = inlined_call_operand.vmem [shape: f32[2,1,64], index: 16, kind: input, shape index: {}]
  %s17 = inlined_call_operand.vmem [shape: bf16[2,64,256], index: 17, kind: input, shape index: {}]
  %s18 = inlined_call_operand.vmem [shape: f32[2,1,256], index: 18, kind: input, shape index: {}]
  %s19 = inlined_call_operand.vmem [shape: bf16[2,256,64], index: 19, kind: input, shape index: {}]
  %s20 = inlined_call_operand.vmem [shape: f32[2,1,64], index: 20, kind: input, shape index: {}]
  %s21 = inlined_call_operand.vmem [shape: f32[2,1,64], index: 21, kind: input, shape index: {}]
  %s22 = inlined_call_operand.vmem [shape: f32[2,1,64], index: 22, kind: input, shape index: {}]
  %s23 = inlined_call_operand.hbm [shape: bf16[64,128], index: 23, kind: input, shape index: {}]
  %s24 = inlined_call_operand.vmem [shape: f32[1,128], index: 24, kind: input, shape index: {}]
  %s25 = inlined_call_operand.vmem [shape: f32[16,128], index: 25, kind: output, shape index: {}]
  %s26 = sld [smem:[#allocation0]]
  $region145: #{transformer_forward.3} parent=0
    _
  %s28 = ssub.s32 1, %s26
  %s29 = scalar_select 0, %s28, %s26
  $region1: #{transformer_forward.3} parent=0
    #allocation3 [shape = 'u8[16384]{0}', space=vmem, size = 0x4000, scoped, tag = 'input window, operand 23, single buffered']
    #allocation4 [shape = 's32[2]{0}', space=sflag, size = 0x8, scoped, tag = 'scoped memory for transformer_forward.3']
    %30 = vsyncpa [#allocation4], 0
    loop: start=0, step=1, limit=4
    $region2: #{transformer_forward.3} parent=1 // loop_pre_header
      _
    $region3: #{transformer_forward.3} parent=1 // loop_header
      %s32 = sphi 0, %s36
      %p33 = scmp.ge.s32.totalorder %s32, 4
      %s40 = sphi 0, %s40
      %s42 = sphi 0, %s40
      %s43 = sphi 0, %s42
      %s57 = sphi 0, %s43
      %s61 = sphi 0, %s61
      %s63 = sphi 0, %s61
      %s64 = sphi 0, %s63
      %s78 = sphi 0, %s64
      %s82 = sphi 0, %s82
      %s84 = sphi 0, %s82
      %s85 = sphi 0, %s84
      %s99 = sphi 0, %s85
      %s105 = sphi 0, %s107
      %s108 = sphi 0, %s105
      %s109 = sphi 0, %s108
      %s125 = sphi 0, %s109
      %s131 = sphi 0, %s133
      %s134 = sphi 0, %s131
      %s135 = sphi 0, %s134
      %s151 = sphi 0, %s135
      %s157 = sphi 0, %s159
      %s160 = sphi 0, %s157
      %s161 = sphi 0, %s160
      %s177 = sphi 0, %s161
      %s183 = sphi 0, %s185
      %s186 = sphi 0, %s183
      %s187 = sphi 0, %s186
      %s203 = sphi 0, %s187
      %s209 = sphi 0, %s211
      %s212 = sphi 0, %s209
      %s213 = sphi 0, %s212
      %s229 = sphi 0, %s213
      %s235 = sphi 0, %s237
      %s238 = sphi 0, %s235
      %s239 = sphi 0, %s238
      %s255 = sphi 0, %s239
      %s261 = sphi 0, %s263
      %s264 = sphi 0, %s261
      %s265 = sphi 0, %s264
      %s281 = sphi 0, %s265
      %s287 = sphi 0, %s289
      %s290 = sphi 0, %s287
      %s291 = sphi 0, %s290
      %s307 = sphi 0, %s291
      %s313 = sphi 0, %s315
      %s316 = sphi 0, %s313
      %s317 = sphi 0, %s316
      %s333 = sphi 0, %s317
      %s339 = sphi 0, %s341
      %s342 = sphi 0, %s339
      %s343 = sphi 0, %s342
      %s359 = sphi 0, %s343
      %s365 = sphi 0, %s367
      %s368 = sphi 0, %s365
      %s369 = sphi 0, %s368
      %s385 = sphi 0, %s369
      %s391 = sphi 0, %s393
      %s394 = sphi 0, %s391
      %s395 = sphi 0, %s394
      %s411 = sphi 0, %s395
      %s417 = sphi 0, %s419
      %s420 = sphi 0, %s417
      %s421 = sphi 0, %s420
      %s437 = sphi 0, %s421
      %s443 = sphi 0, %s445
      %s446 = sphi 0, %s443
      %s447 = sphi 0, %s446
      %s463 = sphi 0, %s447
      %s469 = sphi 0, %s471
      %s472 = sphi 0, %s469
      %s473 = sphi 0, %s472
      %s489 = sphi 0, %s473
      %s495 = sphi 0, %s497
      %s498 = sphi 0, %s495
      %s499 = sphi 0, %s498
      %s515 = sphi 0, %s499
      %s521 = sphi 0, %s523
      %s524 = sphi 0, %s521
      %s525 = sphi 0, %s524
      %s541 = sphi 0, %s525
      %s547 = sphi 0, %s549
      %s550 = sphi 0, %s547
      %s551 = sphi 0, %s550
      %s567 = sphi 0, %s551
      %s573 = sphi 0, %s575
      %s576 = sphi 0, %s573
      %s577 = sphi 0, %s576
      %s593 = sphi 0, %s577
      %s599 = sphi 0, %s601
      %s602 = sphi 0, %s599
      %s603 = sphi 0, %s602
      %s619 = sphi 0, %s603
      %s623 = sphi 0, %s623
      %s625 = sphi 0, %s623
      %s626 = sphi 0, %s625
      %s640 = sphi 0, %s626
      %s644 = sphi 0, %s644
      %s646 = sphi 0, %s644
      %s647 = sphi 0, %s646
      %s661 = sphi 0, %s647
      %s665 = sphi 0, %s665
      %s667 = sphi 0, %s665
      %s668 = sphi 0, %s667
      %s682 = sphi 0, %s668
    $region4: #{transformer_forward.3} parent=1 // loop_header_branch
      %35 = sbr.rel (%p33) target = $region8
    $region5: #{transformer_forward.3} parent=1 // loop_body
      %s37 = ssub.s32 %s32, 1
      %s38 = ssub.s32 %s32, 2
      %s39 = sadd.s32 %s32, 1
      %s41 = sadd.s32 %s40, 1
      %p44 = scmp.eq.s32.totalorder %s32, 1
      %p45 = scmp.ne.s32.totalorder %s40, %s42
      %p46 = scmp.eq.s32.totalorder %s32, 0
      %p47 = por %p45, %p46
      %p48 = scmp.ne.s32.totalorder %s40, %s42
      %p49 = scmp.eq.s32.totalorder %s37, 1
      %p50 = por %p48, %p49
      %p51 = scmp.ne.s32.totalorder %s42, %s43
      %p52 = scmp.eq.s32.totalorder %s37, 0
      %p53 = por %p51, %p52
      %p54 = scmp.ne.s32.totalorder %s42, %s43
      %p55 = scmp.eq.s32.totalorder %s38, 1
      %p56 = por %p54, %p55
      %p58 = scmp.ne.s32.totalorder %s43, %s57
      %p59 = scmp.eq.s32.totalorder %s38, 0
      %p60 = por %p58, %p59
      %s62 = sadd.s32 %s61, 1
      %p65 = scmp.eq.s32.totalorder %s32, 1
      %p66 = scmp.ne.s32.totalorder %s61, %s63
      %p67 = scmp.eq.s32.totalorder %s32, 0
      %p68 = por %p66, %p67
      %p69 = scmp.ne.s32.totalorder %s61, %s63
      %p70 = scmp.eq.s32.totalorder %s37, 1
      %p71 = por %p69, %p70
      %p72 = scmp.ne.s32.totalorder %s63, %s64
      %p73 = scmp.eq.s32.totalorder %s37, 0
      %p74 = por %p72, %p73
      %p75 = scmp.ne.s32.totalorder %s63, %s64
      %p76 = scmp.eq.s32.totalorder %s38, 1
      %p77 = por %p75, %p76
      %p79 = scmp.ne.s32.totalorder %s64, %s78
      %p80 = scmp.eq.s32.totalorder %s38, 0
      %p81 = por %p79, %p80
      %s83 = sadd.s32 %s82, 1
      %p86 = scmp.eq.s32.totalorder %s32, 1
      %p87 = scmp.ne.s32.totalorder %s82, %s84
      %p88 = scmp.eq.s32.totalorder %s32, 0
      %p89 = por %p87, %p88
      %p90 = scmp.ne.s32.totalorder %s82, %s84
      %p91 = scmp.eq.s32.totalorder %s37, 1
      %p92 = por %p90, %p91
      %p93 = scmp.ne.s32.totalorder %s84, %s85
      %p94 = scmp.eq.s32.totalorder %s37, 0
      %p95 = por %p93, %p94
      %p96 = scmp.ne.s32.totalorder %s84, %s85
      %p97 = scmp.eq.s32.totalorder %s38, 1
      %p98 = por %p96, %p97
      %p100 = scmp.ne.s32.totalorder %s85, %s99
      %p101 = scmp.eq.s32.totalorder %s38, 0
      %p102 = por %p100, %p101
      %s103 = ssub.s32 %s32, %s39
      %p104 = scmp.eq.s32.totalorder %s103, 0
      %s106 = sadd.s32 %s105, 1
      %s107 = scalar_select %p104, %s105, %s106
      %p110 = pneg %p104
      %p111 = scmp.eq.s32.totalorder %s32, 1
      %p112 = por %p110, %p111
      %p113 = scmp.ne.s32.totalorder %s105, %s108
      %p114 = scmp.eq.s32.totalorder %s32, 0
      %p115 = por %p113, %p114
      %p116 = scmp.ne.s32.totalorder %s105, %s108
      %p117 = scmp.eq.s32.totalorder %s37, 1
      %p118 = por %p116, %p117
      %p119 = scmp.ne.s32.totalorder %s108, %s109
      %p120 = scmp.eq.s32.totalorder %s37, 0
      %p121 = por %p119, %p120
      %p122 = scmp.ne.s32.totalorder %s108, %s109
      %p123 = scmp.eq.s32.totalorder %s38, 1
      %p124 = por %p122, %p123
      %p126 = scmp.ne.s32.totalorder %s109, %s125
      %p127 = scmp.eq.s32.totalorder %s38, 0
      %p128 = por %p126, %p127
      %s129 = ssub.s32 %s32, %s39
      %p130 = scmp.eq.s32.totalorder %s129, 0
      %s132 = sadd.s32 %s131, 1
      %s133 = scalar_select %p130, %s131, %s132
      %p136 = pneg %p130
      %p137 = scmp.eq.s32.totalorder %s32, 1
      %p138 = por %p136, %p137
      %p139 = scmp.ne.s32.totalorder %s131, %s134
      %p140 = scmp.eq.s32.totalorder %s32, 0
      %p141 = por %p139, %p140
      %p142 = scmp.ne.s32.totalorder %s131, %s134
      %p143 = scmp.eq.s32.totalorder %s37, 1
      %p144 = por %p142, %p143
      %p145 = scmp.ne.s32.totalorder %s134, %s135
      %p146 = scmp.eq.s32.totalorder %s37, 0
      %p147 = por %p145, %p146
      %p148 = scmp.ne.s32.totalorder %s134, %s135
      %p149 = scmp.eq.s32.totalorder %s38, 1
      %p150 = por %p148, %p149
      %p152 = scmp.ne.s32.totalorder %s135, %s151
      %p153 = scmp.eq.s32.totalorder %s38, 0
      %p154 = por %p152, %p153
      %s155 = ssub.s32 %s32, %s39
      %p156 = scmp.eq.s32.totalorder %s155, 0
      %s158 = sadd.s32 %s157, 1
      %s159 = scalar_select %p156, %s157, %s158
      %p162 = pneg %p156
      %p163 = scmp.eq.s32.totalorder %s32, 1
      %p164 = por %p162, %p163
      %p165 = scmp.ne.s32.totalorder %s157, %s160
      %p166 = scmp.eq.s32.totalorder %s32, 0
      %p167 = por %p165, %p166
      %p168 = scmp.ne.s32.totalorder %s157, %s160
      %p169 = scmp.eq.s32.totalorder %s37, 1
      %p170 = por %p168, %p169
      %p171 = scmp.ne.s32.totalorder %s160, %s161
      %p172 = scmp.eq.s32.totalorder %s37, 0
      %p173 = por %p171, %p172
      %p174 = scmp.ne.s32.totalorder %s160, %s161
      %p175 = scmp.eq.s32.totalorder %s38, 1
      %p176 = por %p174, %p175
      %p178 = scmp.ne.s32.totalorder %s161, %s177
      %p179 = scmp.eq.s32.totalorder %s38, 0
      %p180 = por %p178, %p179
      %s181 = ssub.s32 %s32, %s39
      %p182 = scmp.eq.s32.totalorder %s181, 0
      %s184 = sadd.s32 %s183, 1
      %s185 = scalar_select %p182, %s183, %s184
      %p188 = pneg %p182
      %p189 = scmp.eq.s32.totalorder %s32, 1
      %p190 = por %p188, %p189
      %p191 = scmp.ne.s32.totalorder %s183, %s186
      %p192 = scmp.eq.s32.totalorder %s32, 0
      %p193 = por %p191, %p192
      %p194 = scmp.ne.s32.totalorder %s183, %s186
      %p195 = scmp.eq.s32.totalorder %s37, 1
      %p196 = por %p194, %p195
      %p197 = scmp.ne.s32.totalorder %s186, %s187
      %p198 = scmp.eq.s32.totalorder %s37, 0
      %p199 = por %p197, %p198
      %p200 = scmp.ne.s32.totalorder %s186, %s187
      %p201 = scmp.eq.s32.totalorder %s38, 1
      %p202 = por %p200, %p201
      %p204 = scmp.ne.s32.totalorder %s187, %s203
      %p205 = scmp.eq.s32.totalorder %s38, 0
      %p206 = por %p204, %p205
      %s207 = ssub.s32 %s32, %s39
      %p208 = scmp.eq.s32.totalorder %s207, 0
      %s210 = sadd.s32 %s209, 1
      %s211 = scalar_select %p208, %s209, %s210
      %p214 = pneg %p208
      %p215 = scmp.eq.s32.totalorder %s32, 1
      %p216 = por %p214, %p215
      %p217 = scmp.ne.s32.totalorder %s209, %s212
      %p218 = scmp.eq.s32.totalorder %s32, 0
      %p219 = por %p217, %p218
      %p220 = scmp.ne.s32.totalorder %s209, %s212
      %p221 = scmp.eq.s32.totalorder %s37, 1
      %p222 = por %p220, %p221
      %p223 = scmp.ne.s32.totalorder %s212, %s213
      %p224 = scmp.eq.s32.totalorder %s37, 0
      %p225 = por %p223, %p224
      %p226 = scmp.ne.s32.totalorder %s212, %s213
      %p227 = scmp.eq.s32.totalorder %s38, 1
      %p228 = por %p226, %p227
      %p230 = scmp.ne.s32.totalorder %s213, %s229
      %p231 = scmp.eq.s32.totalorder %s38, 0
      %p232 = por %p230, %p231
      %s233 = ssub.s32 %s32, %s39
      %p234 = scmp.eq.s32.totalorder %s233, 0
      %s236 = sadd.s32 %s235, 1
      %s237 = scalar_select %p234, %s235, %s236
      %p240 = pneg %p234
      %p241 = scmp.eq.s32.totalorder %s32, 1
      %p242 = por %p240, %p241
      %p243 = scmp.ne.s32.totalorder %s235, %s238
      %p244 = scmp.eq.s32.totalorder %s32, 0
      %p245 = por %p243, %p244
      %p246 = scmp.ne.s32.totalorder %s235, %s238
      %p247 = scmp.eq.s32.totalorder %s37, 1
      %p248 = por %p246, %p247
      %p249 = scmp.ne.s32.totalorder %s238, %s239
      %p250 = scmp.eq.s32.totalorder %s37, 0
      %p251 = por %p249, %p250
      %p252 = scmp.ne.s32.totalorder %s238, %s239
      %p253 = scmp.eq.s32.totalorder %s38, 1
      %p254 = por %p252, %p253
      %p256 = scmp.ne.s32.totalorder %s239, %s255
      %p257 = scmp.eq.s32.totalorder %s38, 0
      %p258 = por %p256, %p257
      %s259 = ssub.s32 %s32, %s39
      %p260 = scmp.eq.s32.totalorder %s259, 0
      %s262 = sadd.s32 %s261, 1
      %s263 = scalar_select %p260, %s261, %s262
      %p266 = pneg %p260
      %p267 = scmp.eq.s32.totalorder %s32, 1
      %p268 = por %p266, %p267
      %p269 = scmp.ne.s32.totalorder %s261, %s264
      %p270 = scmp.eq.s32.totalorder %s32, 0
      %p271 = por %p269, %p270
      %p272 = scmp.ne.s32.totalorder %s261, %s264
      %p273 = scmp.eq.s32.totalorder %s37, 1
      %p274 = por %p272, %p273
      %p275 = scmp.ne.s32.totalorder %s264, %s265
      %p276 = scmp.eq.s32.totalorder %s37, 0
      %p277 = por %p275, %p276
      %p278 = scmp.ne.s32.totalorder %s264, %s265
      %p279 = scmp.eq.s32.totalorder %s38, 1
      %p280 = por %p278, %p279
      %p282 = scmp.ne.s32.totalorder %s265, %s281
      %p283 = scmp.eq.s32.totalorder %s38, 0
      %p284 = por %p282, %p283
      %s285 = ssub.s32 %s32, %s39
      %p286 = scmp.eq.s32.totalorder %s285, 0
      %s288 = sadd.s32 %s287, 1
      %s289 = scalar_select %p286, %s287, %s288
      %p292 = pneg %p286
      %p293 = scmp.eq.s32.totalorder %s32, 1
      %p294 = por %p292, %p293
      %p295 = scmp.ne.s32.totalorder %s287, %s290
      %p296 = scmp.eq.s32.totalorder %s32, 0
      %p297 = por %p295, %p296
      %p298 = scmp.ne.s32.totalorder %s287, %s290
      %p299 = scmp.eq.s32.totalorder %s37, 1
      %p300 = por %p298, %p299
      %p301 = scmp.ne.s32.totalorder %s290, %s291
      %p302 = scmp.eq.s32.totalorder %s37, 0
      %p303 = por %p301, %p302
      %p304 = scmp.ne.s32.totalorder %s290, %s291
      %p305 = scmp.eq.s32.totalorder %s38, 1
      %p306 = por %p304, %p305
      %p308 = scmp.ne.s32.totalorder %s291, %s307
      %p309 = scmp.eq.s32.totalorder %s38, 0
      %p310 = por %p308, %p309
      %s311 = ssub.s32 %s32, %s39
      %p312 = scmp.eq.s32.totalorder %s311, 0
      %s314 = sadd.s32 %s313, 1
      %s315 = scalar_select %p312, %s313, %s314
      %p318 = pneg %p312
      %p319 = scmp.eq.s32.totalorder %s32, 1
      %p320 = por %p318, %p319
      %p321 = scmp.ne.s32.totalorder %s313, %s316
      %p322 = scmp.eq.s32.totalorder %s32, 0
      %p323 = por %p321, %p322
      %p324 = scmp.ne.s32.totalorder %s313, %s316
      %p325 = scmp.eq.s32.totalorder %s37, 1
      %p326 = por %p324, %p325
      %p327 = scmp.ne.s32.totalorder %s316, %s317
      %p328 = scmp.eq.s32.totalorder %s37, 0
      %p329 = por %p327, %p328
      %p330 = scmp.ne.s32.totalorder %s316, %s317
      %p331 = scmp.eq.s32.totalorder %s38, 1
      %p332 = por %p330, %p331
      %p334 = scmp.ne.s32.totalorder %s317, %s333
      %p335 = scmp.eq.s32.totalorder %s38, 0
      %p336 = por %p334, %p335
      %s337 = ssub.s32 %s32, %s39
      %p338 = scmp.eq.s32.totalorder %s337, 0
      %s340 = sadd.s32 %s339, 1
      %s341 = scalar_select %p338, %s339, %s340
      %p344 = pneg %p338
      %p345 = scmp.eq.s32.totalorder %s32, 1
      %p346 = por %p344, %p345
      %p347 = scmp.ne.s32.totalorder %s339, %s342
      %p348 = scmp.eq.s32.totalorder %s32, 0
      %p349 = por %p347, %p348
      %p350 = scmp.ne.s32.totalorder %s339, %s342
      %p351 = scmp.eq.s32.totalorder %s37, 1
      %p352 = por %p350, %p351
      %p353 = scmp.ne.s32.totalorder %s342, %s343
      %p354 = scmp.eq.s32.totalorder %s37, 0
      %p355 = por %p353, %p354
      %p356 = scmp.ne.s32.totalorder %s342, %s343
      %p357 = scmp.eq.s32.totalorder %s38, 1
      %p358 = por %p356, %p357
      %p360 = scmp.ne.s32.totalorder %s343, %s359
      %p361 = scmp.eq.s32.totalorder %s38, 0
      %p362 = por %p360, %p361
      %s363 = ssub.s32 %s32, %s39
      %p364 = scmp.eq.s32.totalorder %s363, 0
      %s366 = sadd.s32 %s365, 1
      %s367 = scalar_select %p364, %s365, %s366
      %p370 = pneg %p364
      %p371 = scmp.eq.s32.totalorder %s32, 1
      %p372 = por %p370, %p371
      %p373 = scmp.ne.s32.totalorder %s365, %s368
      %p374 = scmp.eq.s32.totalorder %s32, 0
      %p375 = por %p373, %p374
      %p376 = scmp.ne.s32.totalorder %s365, %s368
      %p377 = scmp.eq.s32.totalorder %s37, 1
      %p378 = por %p376, %p377
      %p379 = scmp.ne.s32.totalorder %s368, %s369
      %p380 = scmp.eq.s32.totalorder %s37, 0
      %p381 = por %p379, %p380
      %p382 = scmp.ne.s32.totalorder %s368, %s369
      %p383 = scmp.eq.s32.totalorder %s38, 1
      %p384 = por %p382, %p383
      %p386 = scmp.ne.s32.totalorder %s369, %s385
      %p387 = scmp.eq.s32.totalorder %s38, 0
      %p388 = por %p386, %p387
      %s389 = ssub.s32 %s32, %s39
      %p390 = scmp.eq.s32.totalorder %s389, 0
      %s392 = sadd.s32 %s391, 1
      %s393 = scalar_select %p390, %s391, %s392
      %p396 = pneg %p390
      %p397 = scmp.eq.s32.totalorder %s32, 1
      %p398 = por %p396, %p397
      %p399 = scmp.ne.s32.totalorder %s391, %s394
      %p400 = scmp.eq.s32.totalorder %s32, 0
      %p401 = por %p399, %p400
      %p402 = scmp.ne.s32.totalorder %s391, %s394
      %p403 = scmp.eq.s32.totalorder %s37, 1
      %p404 = por %p402, %p403
      %p405 = scmp.ne.s32.totalorder %s394, %s395
      %p406 = scmp.eq.s32.totalorder %s37, 0
      %p407 = por %p405, %p406
      %p408 = scmp.ne.s32.totalorder %s394, %s395
      %p409 = scmp.eq.s32.totalorder %s38, 1
      %p410 = por %p408, %p409
      %p412 = scmp.ne.s32.totalorder %s395, %s411
      %p413 = scmp.eq.s32.totalorder %s38, 0
      %p414 = por %p412, %p413
      %s415 = ssub.s32 %s32, %s39
      %p416 = scmp.eq.s32.totalorder %s415, 0
      %s418 = sadd.s32 %s417, 1
      %s419 = scalar_select %p416, %s417, %s418
      %p422 = pneg %p416
      %p423 = scmp.eq.s32.totalorder %s32, 1
      %p424 = por %p422, %p423
      %p425 = scmp.ne.s32.totalorder %s417, %s420
      %p426 = scmp.eq.s32.totalorder %s32, 0
      %p427 = por %p425, %p426
      %p428 = scmp.ne.s32.totalorder %s417, %s420
      %p429 = scmp.eq.s32.totalorder %s37, 1
      %p430 = por %p428, %p429
      %p431 = scmp.ne.s32.totalorder %s420, %s421
      %p432 = scmp.eq.s32.totalorder %s37, 0
      %p433 = por %p431, %p432
      %p434 = scmp.ne.s32.totalorder %s420, %s421
      %p435 = scmp.eq.s32.totalorder %s38, 1
      %p436 = por %p434, %p435
      %p438 = scmp.ne.s32.totalorder %s421, %s437
      %p439 = scmp.eq.s32.totalorder %s38, 0
      %p440 = por %p438, %p439
      %s441 = ssub.s32 %s32, %s39
      %p442 = scmp.eq.s32.totalorder %s441, 0
      %s444 = sadd.s32 %s443, 1
      %s445 = scalar_select %p442, %s443, %s444
      %p448 = pneg %p442
      %p449 = scmp.eq.s32.totalorder %s32, 1
      %p450 = por %p448, %p449
      %p451 = scmp.ne.s32.totalorder %s443, %s446
      %p452 = scmp.eq.s32.totalorder %s32, 0
      %p453 = por %p451, %p452
      %p454 = scmp.ne.s32.totalorder %s443, %s446
      %p455 = scmp.eq.s32.totalorder %s37, 1
      %p456 = por %p454, %p455
      %p457 = scmp.ne.s32.totalorder %s446, %s447
      %p458 = scmp.eq.s32.totalorder %s37, 0
      %p459 = por %p457, %p458
      %p460 = scmp.ne.s32.totalorder %s446, %s447
      %p461 = scmp.eq.s32.totalorder %s38, 1
      %p462 = por %p460, %p461
      %p464 = scmp.ne.s32.totalorder %s447, %s463
      %p465 = scmp.eq.s32.totalorder %s38, 0
      %p466 = por %p464, %p465
      %s467 = ssub.s32 %s32, %s39
      %p468 = scmp.eq.s32.totalorder %s467, 0
      %s470 = sadd.s32 %s469, 1
      %s471 = scalar_select %p468, %s469, %s470
      %p474 = pneg %p468
      %p475 = scmp.eq.s32.totalorder %s32, 1
      %p476 = por %p474, %p475
      %p477 = scmp.ne.s32.totalorder %s469, %s472
      %p478 = scmp.eq.s32.totalorder %s32, 0
      %p479 = por %p477, %p478
      %p480 = scmp.ne.s32.totalorder %s469, %s472
      %p481 = scmp.eq.s32.totalorder %s37, 1
      %p482 = por %p480, %p481
      %p483 = scmp.ne.s32.totalorder %s472, %s473
      %p484 = scmp.eq.s32.totalorder %s37, 0
      %p485 = por %p483, %p484
      %p486 = scmp.ne.s32.totalorder %s472, %s473
      %p487 = scmp.eq.s32.totalorder %s38, 1
      %p488 = por %p486, %p487
      %p490 = scmp.ne.s32.totalorder %s473, %s489
      %p491 = scmp.eq.s32.totalorder %s38, 0
      %p492 = por %p490, %p491
      %s493 = ssub.s32 %s32, %s39
      %p494 = scmp.eq.s32.totalorder %s493, 0
      %s496 = sadd.s32 %s495, 1
      %s497 = scalar_select %p494, %s495, %s496
      %p500 = pneg %p494
      %p501 = scmp.eq.s32.totalorder %s32, 1
      %p502 = por %p500, %p501
      %p503 = scmp.ne.s32.totalorder %s495, %s498
      %p504 = scmp.eq.s32.totalorder %s32, 0
      %p505 = por %p503, %p504
      %p506 = scmp.ne.s32.totalorder %s495, %s498
      %p507 = scmp.eq.s32.totalorder %s37, 1
      %p508 = por %p506, %p507
      %p509 = scmp.ne.s32.totalorder %s498, %s499
      %p510 = scmp.eq.s32.totalorder %s37, 0
      %p511 = por %p509, %p510
      %p512 = scmp.ne.s32.totalorder %s498, %s499
      %p513 = scmp.eq.s32.totalorder %s38, 1
      %p514 = por %p512, %p513
      %p516 = scmp.ne.s32.totalorder %s499, %s515
      %p517 = scmp.eq.s32.totalorder %s38, 0
      %p518 = por %p516, %p517
      %s519 = ssub.s32 %s32, %s39
      %p520 = scmp.eq.s32.totalorder %s519, 0
      %s522 = sadd.s32 %s521, 1
      %s523 = scalar_select %p520, %s521, %s522
      %p526 = pneg %p520
      %p527 = scmp.eq.s32.totalorder %s32, 1
      %p528 = por %p526, %p527
      %p529 = scmp.ne.s32.totalorder %s521, %s524
      %p530 = scmp.eq.s32.totalorder %s32, 0
      %p531 = por %p529, %p530
      %p532 = scmp.ne.s32.totalorder %s521, %s524
      %p533 = scmp.eq.s32.totalorder %s37, 1
      %p534 = por %p532, %p533
      %p535 = scmp.ne.s32.totalorder %s524, %s525
      %p536 = scmp.eq.s32.totalorder %s37, 0
      %p537 = por %p535, %p536
      %p538 = scmp.ne.s32.totalorder %s524, %s525
      %p539 = scmp.eq.s32.totalorder %s38, 1
      %p540 = por %p538, %p539
      %p542 = scmp.ne.s32.totalorder %s525, %s541
      %p543 = scmp.eq.s32.totalorder %s38, 0
      %p544 = por %p542, %p543
      %s545 = ssub.s32 %s32, %s39
      %p546 = scmp.eq.s32.totalorder %s545, 0
      %s548 = sadd.s32 %s547, 1
      %s549 = scalar_select %p546, %s547, %s548
      %p552 = pneg %p546
      %p553 = scmp.eq.s32.totalorder %s32, 1
      %p554 = por %p552, %p553
      %p555 = scmp.ne.s32.totalorder %s547, %s550
      %p556 = scmp.eq.s32.totalorder %s32, 0
      %p557 = por %p555, %p556
      %p558 = scmp.ne.s32.totalorder %s547, %s550
      %p559 = scmp.eq.s32.totalorder %s37, 1
      %p560 = por %p558, %p559
      %p561 = scmp.ne.s32.totalorder %s550, %s551
      %p562 = scmp.eq.s32.totalorder %s37, 0
      %p563 = por %p561, %p562
      %p564 = scmp.ne.s32.totalorder %s550, %s551
      %p565 = scmp.eq.s32.totalorder %s38, 1
      %p566 = por %p564, %p565
      %p568 = scmp.ne.s32.totalorder %s551, %s567
      %p569 = scmp.eq.s32.totalorder %s38, 0
      %p570 = por %p568, %p569
      %s571 = ssub.s32 %s32, %s39
      %p572 = scmp.eq.s32.totalorder %s571, 0
      %s574 = sadd.s32 %s573, 1
      %s575 = scalar_select %p572, %s573, %s574
      %p578 = pneg %p572
      %p579 = scmp.eq.s32.totalorder %s32, 1
      %p580 = por %p578, %p579
      %p581 = scmp.ne.s32.totalorder %s573, %s576
      %p582 = scmp.eq.s32.totalorder %s32, 0
      %p583 = por %p581, %p582
      %p584 = scmp.ne.s32.totalorder %s573, %s576
      %p585 = scmp.eq.s32.totalorder %s37, 1
      %p586 = por %p584, %p585
      %p587 = scmp.ne.s32.totalorder %s576, %s577
      %p588 = scmp.eq.s32.totalorder %s37, 0
      %p589 = por %p587, %p588
      %p590 = scmp.ne.s32.totalorder %s576, %s577
      %p591 = scmp.eq.s32.totalorder %s38, 1
      %p592 = por %p590, %p591
      %p594 = scmp.ne.s32.totalorder %s577, %s593
      %p595 = scmp.eq.s32.totalorder %s38, 0
      %p596 = por %p594, %p595
      %s597 = ssub.s32 %s32, %s39
      %p598 = scmp.eq.s32.totalorder %s597, 0
      %s600 = sadd.s32 %s599, 1
      %s601 = scalar_select %p598, %s599, %s600
      %p604 = pneg %p598
      %p605 = scmp.eq.s32.totalorder %s32, 1
      %p606 = por %p604, %p605
      %p607 = scmp.ne.s32.totalorder %s599, %s602
      %p608 = scmp.eq.s32.totalorder %s32, 0
      %p609 = por %p607, %p608
      %p610 = scmp.ne.s32.totalorder %s599, %s602
      %p611 = scmp.eq.s32.totalorder %s37, 1
      %p612 = por %p610, %p611
      %p613 = scmp.ne.s32.totalorder %s602, %s603
      %p614 = scmp.eq.s32.totalorder %s37, 0
      %p615 = por %p613, %p614
      %p616 = scmp.ne.s32.totalorder %s602, %s603
      %p617 = scmp.eq.s32.totalorder %s38, 1
      %p618 = por %p616, %p617
      %p620 = scmp.ne.s32.totalorder %s603, %s619
      %p621 = scmp.eq.s32.totalorder %s38, 0
      %p622 = por %p620, %p621
      %s624 = sadd.s32 %s623, 1
      %p627 = scmp.eq.s32.totalorder %s32, 1
      %p628 = scmp.ne.s32.totalorder %s623, %s625
      %p629 = scmp.eq.s32.totalorder %s32, 0
      %p630 = por %p628, %p629
      %p631 = scmp.ne.s32.totalorder %s623, %s625
      %p632 = scmp.eq.s32.totalorder %s37, 1
      %p633 = por %p631, %p632
      %p634 = scmp.ne.s32.totalorder %s625, %s626
      %p635 = scmp.eq.s32.totalorder %s37, 0
      %p636 = por %p634, %p635
      %p637 = scmp.ne.s32.totalorder %s625, %s626
      %p638 = scmp.eq.s32.totalorder %s38, 1
      %p639 = por %p637, %p638
      %p641 = scmp.ne.s32.totalorder %s626, %s640
      %p642 = scmp.eq.s32.totalorder %s38, 0
      %p643 = por %p641, %p642
      %s645 = sadd.s32 %s644, 1
      %p648 = scmp.eq.s32.totalorder %s32, 1
      %p649 = scmp.ne.s32.totalorder %s644, %s646
      %p650 = scmp.eq.s32.totalorder %s32, 0
      %p651 = por %p649, %p650
      %p652 = scmp.ne.s32.totalorder %s644, %s646
      %p653 = scmp.eq.s32.totalorder %s37, 1
      %p654 = por %p652, %p653
      %p655 = scmp.ne.s32.totalorder %s646, %s647
      %p656 = scmp.eq.s32.totalorder %s37, 0
      %p657 = por %p655, %p656
      %p658 = scmp.ne.s32.totalorder %s646, %s647
      %p659 = scmp.eq.s32.totalorder %s38, 1
      %p660 = por %p658, %p659
      %p662 = scmp.ne.s32.totalorder %s647, %s661
      %p663 = scmp.eq.s32.totalorder %s38, 0
      %p664 = por %p662, %p663
      %s666 = sadd.s32 %s665, 1
      %p669 = scmp.eq.s32.totalorder %s32, 1
      %p670 = scmp.ne.s32.totalorder %s665, %s667
      %p671 = scmp.eq.s32.totalorder %s32, 0
      %p672 = por %p670, %p671
      %p673 = scmp.ne.s32.totalorder %s665, %s667
      %p674 = scmp.eq.s32.totalorder %s37, 1
      %p675 = por %p673, %p674
      %p676 = scmp.ne.s32.totalorder %s667, %s668
      %p677 = scmp.eq.s32.totalorder %s37, 0
      %p678 = por %p676, %p677
      %p679 = scmp.ne.s32.totalorder %s667, %s668
      %p680 = scmp.eq.s32.totalorder %s38, 1
      %p681 = por %p679, %p680
      %p683 = scmp.ne.s32.totalorder %s668, %s682
      %p684 = scmp.eq.s32.totalorder %s38, 0
      %p685 = por %p683, %p684
      %p686 = scmp.le.s32.totalorder 1, %s32
      %p687 = scmp.lt.s32.totalorder %s32, 3
      %p688 = pnand %p686, %p687
      %p689 = pneg %p688
      // Predicated region
      $region9: #{transformer_forward.3} parent=5 // pred_check
        _
      $region10: #{transformer_forward.3} parent=5 // pred_check_branch
        %691 = sbr.rel (%p688) target = $region12
      $region11: #{transformer_forward.3} parent=5 // pred_region
        %s692 = ssub.s32 %s32, 1
        // Predicated region
        $region13: #{transformer_forward.3} parent=11 // pred_check
          %p693 = pneg %p53
        $region14: #{transformer_forward.3} parent=11 // pred_check_branch
          %695 = sbr.rel (%p693) target = $region16
        $region15: #{transformer_forward.3} parent=11 // pred_region
          _
        $region16: #{transformer_forward.3} parent=11 // pred_fallthru
          _
        // Predicated region
        $region17: #{transformer_forward.3} parent=11 // pred_check
          %p696 = pneg %p74
        $region18: #{transformer_forward.3} parent=11 // pred_check_branch
          %698 = sbr.rel (%p696) target = $region20
        $region19: #{transformer_forward.3} parent=11 // pred_region
          _
        $region20: #{transformer_forward.3} parent=11 // pred_fallthru
          _
        // Predicated region
        $region21: #{transformer_forward.3} parent=11 // pred_check
          %p699 = pneg %p95
        $region22: #{transformer_forward.3} parent=11 // pred_check_branch
          %701 = sbr.rel (%p699) target = $region24
        $region23: #{transformer_forward.3} parent=11 // pred_region
          _
        $region24: #{transformer_forward.3} parent=11 // pred_fallthru
          _
        // Predicated region
        $region25: #{transformer_forward.3} parent=11 // pred_check
          %p702 = pneg %p636
        $region26: #{transformer_forward.3} parent=11 // pred_check_branch
          %704 = sbr.rel (%p702) target = $region28
        $region27: #{transformer_forward.3} parent=11 // pred_region
          %706 = vsyncadd [#allocation4], 0
          %s707 = sshll.u32 %s23, 4
          %s708 = int_to_ptr.hbm [resolvable:$true] %s707
          %s709 = sshll.u32 [#allocation3], 4
          %s710 = int_to_ptr.vmem [resolvable:$true] %s709
          %715 = dma.hbm_to_vmem [thread:$0]  %s708, 512, %s710, [#allocation4], 64, 64, 4
        $region28: #{transformer_forward.3} parent=11 // pred_fallthru
          _
        // Predicated region
        $region29: #{transformer_forward.3} parent=11 // pred_check
          %p716 = pneg %p657
        $region30: #{transformer_forward.3} parent=11 // pred_check_branch
          %718 = sbr.rel (%p716) target = $region32
        $region31: #{transformer_forward.3} parent=11 // pred_region
          _
        $region32: #{transformer_forward.3} parent=11 // pred_fallthru
          _
      $region12: #{transformer_forward.3} parent=5 // pred_fallthru
        _
      %p719 = scmp.lt.s32.totalorder %s32, 2
      // Predicated region
      $region33: #{transformer_forward.3} parent=5 // pred_check
        %p720 = pneg %p719
      $region34: #{transformer_forward.3} parent=5 // pred_check_branch
        %722 = sbr.rel (%p720) target = $region36
      $region35: #{transformer_forward.3} parent=5 // pred_region
        // Predicated region
        $region37: #{transformer_forward.3} parent=35 // pred_check
          %p723 = pneg %p115
        $region38: #{transformer_forward.3} parent=35 // pred_check_branch
          %725 = sbr.rel (%p723) target = $region40
        $region39: #{transformer_forward.3} parent=35 // pred_region
          %p726 = scmp.lt.s32.totalorder %s32, 1
          %s727 = scalar_select %p726, %s32, 1
          %s728 = smul.addr %s727, 16
          %s729 = smul.addr %s728, 4
          %s730 = scalar_lea.vmem %s3, %s729
        $region40: #{transformer_forward.3} parent=35 // pred_fallthru
          _
        // Predicated region
        $region41: #{transformer_forward.3} parent=35 // pred_check
          %p731 = pneg %p141
        $region42: #{transformer_forward.3} parent=35 // pred_check_branch
          %733 = sbr.rel (%p731) target = $region44
        $region43: #{transformer_forward.3} parent=35 // pred_region
          %p734 = scmp.lt.s32.totalorder %s32, 1
          %s735 = scalar_select %p734, %s32, 1
          %s736 = smul.addr %s735, 2
          %s737 = scalar_lea.vmem %s4, %s736
        $region44: #{transformer_forward.3} parent=35 // pred_fallthru
          _
        // Predicated region
        $region45: #{transformer_forward.3} parent=35 // pred_check
          %p738 = pneg %p167
        $region46: #{transformer_forward.3} parent=35 // pred_check_branch
          %740 = sbr.rel (%p738) target = $region48
        $region47: #{transformer_forward.3} parent=35 // pred_region
          %p741 = scmp.lt.s32.totalorder %s32, 1
          %s742 = scalar_select %p741, %s32, 1
          %s743 = smul.addr %s742, 8
          %s744 = smul.addr %s743, 4
          %s745 = scalar_lea.vmem %s5, %s744
        $region48: #{transformer_forward.3} parent=35 // pred_fallthru
          _
        // Predicated region
        $region49: #{transformer_forward.3} parent=35 // pred_check
          %p746 = pneg %p193
        $region50: #{transformer_forward.3} parent=35 // pred_check_branch
          %748 = sbr.rel (%p746) target = $region52
        $region51: #{transformer_forward.3} parent=35 // pred_region
          %p749 = scmp.lt.s32.totalorder %s32, 1
          %s750 = scalar_select %p749, %s32, 1
          %s751 = scalar_lea.vmem %s6, %s750
        $region52: #{transformer_forward.3} parent=35 // pred_fallthru
          _
        // Predicated region
        $region53: #{transformer_forward.3} parent=35 // pred_check
          %p752 = pneg %p219
        $region54: #{transformer_forward.3} parent=35 // pred_check_branch
          %754 = sbr.rel (%p752) target = $region56
        $region55: #{transformer_forward.3} parent=35 // pred_region
          %p755 = scmp.lt.s32.totalorder %s32, 1
          %s756 = scalar_select %p755, %s32, 1
          %s757 = scalar_lea.vmem %s7, %s756
        $region56: #{transformer_forward.3} parent=35 // pred_fallthru
          _
        // Predicated region
        $region57: #{transformer_forward.3} parent=35 // pred_check
          %p758 = pneg %p245
        $region58: #{transformer_forward.3} parent=35 // pred_check_branch
          %760 = sbr.rel (%p758) target = $region60
        $region59: #{transformer_forward.3} parent=35 // pred_region
          %p761 = scmp.lt.s32.totalorder %s32, 1
          %s762 = scalar_select %p761, %s32, 1
          %s763 = scalar_lea.vmem %s8, %s762
        $region60: #{transformer_forward.3} parent=35 // pred_fallthru
          _
        // Predicated region
        $region61: #{transformer_forward.3} parent=35 // pred_check
          %p764 = pneg %p271
        $region62: #{transformer_forward.3} parent=35 // pred_check_branch
          %766 = sbr.rel (%p764) target = $region64
        $region63: #{transformer_forward.3} parent=35 // pred_region
          %p767 = scmp.lt.s32.totalorder %s32, 1
          %s768 = scalar_select %p767, %s32, 1
          %s769 = smul.addr %s768, 8
          %s770 = smul.addr %s769, 4
          %s771 = scalar_lea.vmem %s9, %s770
        $region64: #{transformer_forward.3} parent=35 // pred_fallthru
          _
        // Predicated region
        $region65: #{transformer_forward.3} parent=35 // pred_check
          %p772 = pneg %p297
        $region66: #{transformer_forward.3} parent=35 // pred_check_branch
          %774 = sbr.rel (%p772) target = $region68
        $region67: #{transformer_forward.3} parent=35 // pred_region
          %p775 = scmp.lt.s32.totalorder %s32, 1
          %s776 = scalar_select %p775, %s32, 1
          %s777 = scalar_lea.vmem %s10, %s776
        $region68: #{transformer_forward.3} parent=35 // pred_fallthru
          _
        // Predicated region
        $region69: #{transformer_forward.3} parent=35 // pred_check
          %p778 = pneg %p323
        $region70: #{transformer_forward.3} parent=35 // pred_check_branch
          %780 = sbr.rel (%p778) target = $region72
        $region71: #{transformer_forward.3} parent=35 // pred_region
          %p781 = scmp.lt.s32.totalorder %s32, 1
          %s782 = scalar_select %p781, %s32, 1
          %s783 = smul.addr %s782, 8
          %s784 = smul.addr %s783, 4
          %s785 = scalar_lea.vmem %s11, %s784
        $region72: #{transformer_forward.3} parent=35 // pred_fallthru
          _
        // Predicated region
        $region73: #{transformer_forward.3} parent=35 // pred_check
          %p786 = pneg %p349
        $region74: #{transformer_forward.3} parent=35 // pred_check_branch
          %788 = sbr.rel (%p786) target = $region76
        $region75: #{transformer_forward.3} parent=35 // pred_region
          %p789 = scmp.lt.s32.totalorder %s32, 1
          %s790 = scalar_select %p789, %s32, 1
          %s791 = scalar_lea.vmem %s12, %s790
        $region76: #{transformer_forward.3} parent=35 // pred_fallthru
          _
        // Predicated region
        $region77: #{transformer_forward.3} parent=35 // pred_check
          %p792 = pneg %p375
        $region78: #{transformer_forward.3} parent=35 // pred_check_branch
          %794 = sbr.rel (%p792) target = $region80
        $region79: #{transformer_forward.3} parent=35 // pred_region
          %p795 = scmp.lt.s32.totalorder %s32, 1
          %s796 = scalar_select %p795, %s32, 1
          %s797 = smul.addr %s796, 8
          %s798 = smul.addr %s797, 4
          %s799 = scalar_lea.vmem %s13, %s798
        $region80: #{transformer_forward.3} parent=35 // pred_fallthru
          _
        // Predicated region
        $region81: #{transformer_forward.3} parent=35 // pred_check
          %p800 = pneg %p401
        $region82: #{transformer_forward.3} parent=35 // pred_check_branch
          %802 = sbr.rel (%p800) target = $region84
        $region83: #{transformer_forward.3} parent=35 // pred_region
          %p803 = scmp.lt.s32.totalorder %s32, 1
          %s804 = scalar_select %p803, %s32, 1
          %s805 = scalar_lea.vmem %s14, %s804
        $region84: #{transformer_forward.3} parent=35 // pred_fallthru
          _
        // Predicated region
        $region85: #{transformer_forward.3} parent=35 // pred_check
          %p806 = pneg %p427
        $region86: #{transformer_forward.3} parent=35 // pred_check_branch
          %808 = sbr.rel (%p806) target = $region88
        $region87: #{transformer_forward.3} parent=35 // pred_region
          %p809 = scmp.lt.s32.totalorder %s32, 1
          %s810 = scalar_select %p809, %s32, 1
          %s811 = scalar_lea.vmem %s15, %s810
        $region88: #{transformer_forward.3} parent=35 // pred_fallthru
          _
        // Predicated region
        $region89: #{transformer_forward.3} parent=35 // pred_check
          %p812 = pneg %p453
        $region90: #{transformer_forward.3} parent=35 // pred_check_branch
          %814 = sbr.rel (%p812) target = $region92
        $region91: #{transformer_forward.3} parent=35 // pred_region
          %p815 = scmp.lt.s32.totalorder %s32, 1
          %s816 = scalar_select %p815, %s32, 1
          %s817 = scalar_lea.vmem %s16, %s816
        $region92: #{transformer_forward.3} parent=35 // pred_fallthru
          _
        // Predicated region
        $region93: #{transformer_forward.3} parent=35 // pred_check
          %p818 = pneg %p479
        $region94: #{transformer_forward.3} parent=35 // pred_check_branch
          %820 = sbr.rel (%p818) target = $region96
        $region95: #{transformer_forward.3} parent=35 // pred_region
          %p821 = scmp.lt.s32.totalorder %s32, 1
          %s822 = scalar_select %p821, %s32, 1
          %s823 = smul.addr %s822, 16
          %s824 = smul.addr %s823, 4
          %s825 = scalar_lea.vmem %s17, %s824
        $region96: #{transformer_forward.3} parent=35 // pred_fallthru
          _
        // Predicated region
        $region97: #{transformer_forward.3} parent=35 // pred_check
          %p826 = pneg %p505
        $region98: #{transformer_forward.3} parent=35 // pred_check_branch
          %828 = sbr.rel (%p826) target = $region100
        $region99: #{transformer_forward.3} parent=35 // pred_region
          %p829 = scmp.lt.s32.totalorder %s32, 1
          %s830 = scalar_select %p829, %s32, 1
          %s831 = smul.addr %s830, 2
          %s832 = scalar_lea.vmem %s18, %s831
        $region100: #{transformer_forward.3} parent=35 // pred_fallthru
          _
        // Predicated region
        $region101: #{transformer_forward.3} parent=35 // pred_check
          %p833 = pneg %p531
        $region102: #{transformer_forward.3} parent=35 // pred_check_branch
          %835 = sbr.rel (%p833) target = $region104
        $region103: #{transformer_forward.3} parent=35 // pred_region
          %p836 = scmp.lt.s32.totalorder %s32, 1
          %s837 = scalar_select %p836, %s32, 1
          %s838 = smul.addr %s837, 32
          %s839 = smul.addr %s838, 4
          %s840 = scalar_lea.vmem %s19, %s839
        $region104: #{transformer_forward.3} parent=35 // pred_fallthru
          _
        // Predicated region
        $region105: #{transformer_forward.3} parent=35 // pred_check
          %p841 = pneg %p557
        $region106: #{transformer_forward.3} parent=35 // pred_check_branch
          %843 = sbr.rel (%p841) target = $region108
        $region107: #{transformer_forward.3} parent=35 // pred_region
          %p844 = scmp.lt.s32.totalorder %s32, 1
          %s845 = scalar_select %p844, %s32, 1
          %s846 = scalar_lea.vmem %s20, %s845
        $region108: #{transformer_forward.3} parent=35 // pred_fallthru
          _
        // Predicated region
        $region109: #{transformer_forward.3} parent=35 // pred_check
          %p847 = pneg %p583
        $region110: #{transformer_forward.3} parent=35 // pred_check_branch
          %849 = sbr.rel (%p847) target = $region112
        $region111: #{transformer_forward.3} parent=35 // pred_region
          %p850 = scmp.lt.s32.totalorder %s32, 1
          %s851 = scalar_select %p850, %s32, 1
          %s852 = scalar_lea.vmem %s21, %s851
        $region112: #{transformer_forward.3} parent=35 // pred_fallthru
          _
        // Predicated region
        $region113: #{transformer_forward.3} parent=35 // pred_check
          %p853 = pneg %p609
        $region114: #{transformer_forward.3} parent=35 // pred_check_branch
          %855 = sbr.rel (%p853) target = $region116
        $region115: #{transformer_forward.3} parent=35 // pred_region
          %p856 = scmp.lt.s32.totalorder %s32, 1
          %s857 = scalar_select %p856, %s32, 1
          %s858 = scalar_lea.vmem %s22, %s857
        $region116: #{transformer_forward.3} parent=35 // pred_fallthru
          _
      $region36: #{transformer_forward.3} parent=5 // pred_fallthru
        _
      %p859 = scmp.le.s32.totalorder 1, %s32
      %p860 = scmp.lt.s32.totalorder %s32, 3
      %p861 = pnand %p859, %p860
      %p862 = pneg %p861
      // Predicated region
      $region117: #{transformer_forward.3} parent=5 // pred_check
        _
      $region118: #{transformer_forward.3} parent=5 // pred_check_branch
        %864 = sbr.rel (%p861) target = $region120
      $region119: #{transformer_forward.3} parent=5 // pred_region
        %s865 = ssub.s32 %s32, 1
        // Predicated region
        $region121: #{transformer_forward.3} parent=119 // pred_check
          %p866 = pneg %p636
        $region122: #{transformer_forward.3} parent=119 // pred_check_branch
          %868 = sbr.rel (%p866) target = $region124
        $region123: #{transformer_forward.3} parent=119 // pred_region
          %870 = dma.done [#allocation4], 512
        $region124: #{transformer_forward.3} parent=119 // pred_fallthru
          _
        %p871 = pneg %p53
        %p872 = pneg %p50
        %p873 = pneg %p74
        %p874 = pneg %p71
        %p875 = pneg %p95
        %p876 = pneg %p92
        %p877 = scmp.lt.s32.totalorder %s37, 1
        %s878 = scalar_select %p877, %s37, 1
        %s879 = smul.addr %s878, 16
        %s880 = smul.addr %s879, 4
        %s881 = scalar_lea.vmem %s3, %s880
        %p882 = pneg %p121
        %p883 = pneg %p118
        %p884 = scmp.lt.s32.totalorder %s37, 1
        %s885 = scalar_select %p884, %s37, 1
        %s886 = smul.addr %s885, 2
        %s887 = scalar_lea.vmem %s4, %s886
        %p888 = pneg %p147
        %p889 = pneg %p144
        %p890 = scmp.lt.s32.totalorder %s37, 1
        %s891 = scalar_select %p890, %s37, 1
        %s892 = smul.addr %s891, 8
        %s893 = smul.addr %s892, 4
        %s894 = scalar_lea.vmem %s5, %s893
        %p895 = pneg %p173
        %p896 = pneg %p170
        %p897 = scmp.lt.s32.totalorder %s37, 1
        %s898 = scalar_select %p897, %s37, 1
        %s899 = scalar_lea.vmem %s6, %s898
        %p900 = pneg %p199
        %p901 = pneg %p196
        %p902 = scmp.lt.s32.totalorder %s37, 1
        %s903 = scalar_select %p902, %s37, 1
        %s904 = scalar_lea.vmem %s7, %s903
        %p905 = pneg %p225
        %p906 = pneg %p222
        %p907 = scmp.lt.s32.totalorder %s37, 1
        %s908 = scalar_select %p907, %s37, 1
        %s909 = scalar_lea.vmem %s8, %s908
        %p910 = pneg %p251
        %p911 = pneg %p248
        %p912 = scmp.lt.s32.totalorder %s37, 1
        %s913 = scalar_select %p912, %s37, 1
        %s914 = smul.addr %s913, 8
        %s915 = smul.addr %s914, 4
        %s916 = scalar_lea.vmem %s9, %s915
        %p917 = pneg %p277
        %p918 = pneg %p274
        %p919 = scmp.lt.s32.totalorder %s37, 1
        %s920 = scalar_select %p919, %s37, 1
        %s921 = scalar_lea.vmem %s10, %s920
        %p922 = pneg %p303
        %p923 = pneg %p300
        %p924 = scmp.lt.s32.totalorder %s37, 1
        %s925 = scalar_select %p924, %s37, 1
        %s926 = smul.addr %s925, 8
        %s927 = smul.addr %s926, 4
        %s928 = scalar_lea.vmem %s11, %s927
        %p929 = pneg %p329
        %p930 = pneg %p326
        %p931 = scmp.lt.s32.totalorder %s37, 1
        %s932 = scalar_select %p931, %s37, 1
        %s933 = scalar_lea.vmem %s12, %s932
        %p934 = pneg %p355
        %p935 = pneg %p352
        %p936 = scmp.lt.s32.totalorder %s37, 1
        %s937 = scalar_select %p936, %s37, 1
        %s938 = smul.addr %s937, 8
        %s939 = smul.addr %s938, 4
        %s940 = scalar_lea.vmem %s13, %s939
        %p941 = pneg %p381
        %p942 = pneg %p378
        %p943 = scmp.lt.s32.totalorder %s37, 1
        %s944 = scalar_select %p943, %s37, 1
        %s945 = scalar_lea.vmem %s14, %s944
        %p946 = pneg %p407
        %p947 = pneg %p404
        %p948 = scmp.lt.s32.totalorder %s37, 1
        %s949 = scalar_select %p948, %s37, 1
        %s950 = scalar_lea.vmem %s15, %s949
        %p951 = pneg %p433
        %p952 = pneg %p430
        %p953 = scmp.lt.s32.totalorder %s37, 1
        %s954 = scalar_select %p953, %s37, 1
        %s955 = scalar_lea.vmem %s16, %s954
        %p956 = pneg %p459
        %p957 = pneg %p456
        %p958 = scmp.lt.s32.totalorder %s37, 1
        %s959 = scalar_select %p958, %s37, 1
        %s960 = smul.addr %s959, 16
        %s961 = smul.addr %s960, 4
        %s962 = scalar_lea.vmem %s17, %s961
        %p963 = pneg %p485
        %p964 = pneg %p482
        %p965 = scmp.lt.s32.totalorder %s37, 1
        %s966 = scalar_select %p965, %s37, 1
        %s967 = smul.addr %s966, 2
        %s968 = scalar_lea.vmem %s18, %s967
        %p969 = pneg %p511
        %p970 = pneg %p508
        %p971 = scmp.lt.s32.totalorder %s37, 1
        %s972 = scalar_select %p971, %s37, 1
        %s973 = smul.addr %s972, 32
        %s974 = smul.addr %s973, 4
        %s975 = scalar_lea.vmem %s19, %s974
        %p976 = pneg %p537
        %p977 = pneg %p534
        %p978 = scmp.lt.s32.totalorder %s37, 1
        %s979 = scalar_select %p978, %s37, 1
        %s980 = scalar_lea.vmem %s20, %s979
        %p981 = pneg %p563
        %p982 = pneg %p560
        %p983 = scmp.lt.s32.totalorder %s37, 1
        %s984 = scalar_select %p983, %s37, 1
        %s985 = scalar_lea.vmem %s21, %s984
        %p986 = pneg %p589
        %p987 = pneg %p586
        %p988 = scmp.lt.s32.totalorder %s37, 1
        %s989 = scalar_select %p988, %s37, 1
        %s990 = scalar_lea.vmem %s22, %s989
        %p991 = pneg %p615
        %p992 = pneg %p612
        %p993 = pneg %p636
        %p994 = pneg %p633
        %p995 = pneg %p657
        %p996 = pneg %p654
        %p997 = pneg %p678
        %p998 = pneg %p675
        %p999 = scmp.lt.s32.totalorder %s37, 1
        %s1000 = scalar_select %p999, %s37, 1
        %s1001 = smul.addr %s1000, 16
        %s1002 = smul.addr %s1001, 4
        %s1003 = scalar_lea.vmem %s3, %s1002
        %p1004 = scmp.lt.s32.totalorder %s37, 1
        %s1005 = scalar_select %p1004, %s37, 1
        %s1006 = smul.addr %s1005, 2
        %s1007 = scalar_lea.vmem %s4, %s1006
        %p1008 = scmp.lt.s32.totalorder %s37, 1
        %s1009 = scalar_select %p1008, %s37, 1
        %s1010 = smul.addr %s1009, 8
        %s1011 = smul.addr %s1010, 4
        %s1012 = scalar_lea.vmem %s5, %s1011
        %p1013 = scmp.lt.s32.totalorder %s37, 1
        %s1014 = scalar_select %p1013, %s37, 1
        %s1015 = scalar_lea.vmem %s6, %s1014
        %p1016 = scmp.lt.s32.totalorder %s37, 1
        %s1017 = scalar_select %p1016, %s37, 1
        %s1018 = scalar_lea.vmem %s7, %s1017
        %p1019 = scmp.lt.s32.totalorder %s37, 1
        %s1020 = scalar_select %p1019, %s37, 1
        %s1021 = scalar_lea.vmem %s8, %s1020
        %p1022 = scmp.lt.s32.totalorder %s37, 1
        %s1023 = scalar_select %p1022, %s37, 1
        %s1024 = smul.addr %s1023, 8
        %s1025 = smul.addr %s1024, 4
        %s1026 = scalar_lea.vmem %s9, %s1025
        %p1027 = scmp.lt.s32.totalorder %s37, 1
        %s1028 = scalar_select %p1027, %s37, 1
        %s1029 = scalar_lea.vmem %s10, %s1028
        %p1030 = scmp.lt.s32.totalorder %s37, 1
        %s1031 = scalar_select %p1030, %s37, 1
        %s1032 = smul.addr %s1031, 8
        %s1033 = smul.addr %s1032, 4
        %s1034 = scalar_lea.vmem %s11, %s1033
        %p1035 = scmp.lt.s32.totalorder %s37, 1
        %s1036 = scalar_select %p1035, %s37, 1
        %s1037 = scalar_lea.vmem %s12, %s1036
        %p1038 = scmp.lt.s32.totalorder %s37, 1
        %s1039 = scalar_select %p1038, %s37, 1
        %s1040 = smul.addr %s1039, 8
        %s1041 = smul.addr %s1040, 4
        %s1042 = scalar_lea.vmem %s13, %s1041
        %p1043 = scmp.lt.s32.totalorder %s37, 1
        %s1044 = scalar_select %p1043, %s37, 1
        %s1045 = scalar_lea.vmem %s14, %s1044
        %p1046 = scmp.lt.s32.totalorder %s37, 1
        %s1047 = scalar_select %p1046, %s37, 1
        %s1048 = scalar_lea.vmem %s15, %s1047
        %p1049 = scmp.lt.s32.totalorder %s37, 1
        %s1050 = scalar_select %p1049, %s37, 1
        %s1051 = scalar_lea.vmem %s16, %s1050
        %p1052 = scmp.lt.s32.totalorder %s37, 1
        %s1053 = scalar_select %p1052, %s37, 1
        %s1054 = smul.addr %s1053, 16
        %s1055 = smul.addr %s1054, 4
        %s1056 = scalar_lea.vmem %s17, %s1055
        %p1057 = scmp.lt.s32.totalorder %s37, 1
        %s1058 = scalar_select %p1057, %s37, 1
        %s1059 = smul.addr %s1058, 2
        %s1060 = scalar_lea.vmem %s18, %s1059
        %p1061 = scmp.lt.s32.totalorder %s37, 1
        %s1062 = scalar_select %p1061, %s37, 1
        %s1063 = smul.addr %s1062, 32
        %s1064 = smul.addr %s1063, 4
        %s1065 = scalar_lea.vmem %s19, %s1064
        %p1066 = scmp.lt.s32.totalorder %s37, 1
        %s1067 = scalar_select %p1066, %s37, 1
        %s1068 = scalar_lea.vmem %s20, %s1067
        %p1069 = scmp.lt.s32.totalorder %s37, 1
        %s1070 = scalar_select %p1069, %s37, 1
        %s1071 = scalar_lea.vmem %s21, %s1070
        %p1072 = scmp.lt.s32.totalorder %s37, 1
        %s1073 = scalar_select %p1072, %s37, 1
        %s1074 = scalar_lea.vmem %s22, %s1073
        %p1076 = scmp.eq.s32.totalorder %s37, 0
        // Predicated region
        $region125: #{transformer_forward.3} parent=119 // pred_check
          %p1077 = pneg %p1076
        $region126: #{transformer_forward.3} parent=119 // pred_check_branch
          %1079 = sbr.rel (%p1077) target = $region128
        $region127: #{transformer_forward.3} parent=119 // pred_region
          %v1080 = vld [vmem:[%s0] sm:$0xff]
          %v1081 = vld [vmem:[%s0 + $0x8] sm:$0xff]
          %vm1082 = vcmask 523264
          %1083 = vst.msk [vmem:[#allocation2] sm:$0xff] %vm1082, %v1080
          %1084 = vst.msk [vmem:[#allocation2 + $0x8] sm:$0xff] %vm1082, %v1081
        $region128: #{transformer_forward.3} parent=119 // pred_fallthru
          _
        %v1085 = vld [vmem:[#allocation2] sm:$0xff]
        %v1086 = vld [vmem:[#allocation2 + $0x8] sm:$0xff]
        %v1087 = vlaneseq
        %v1088 = vshrl.u32 %v1087, 7
        %v1089 = vlaneseq
        %v1090 = vand.u32 %v1089, 127
        %vm1091 = vcmp.le.s32.totalorder %v1090, %v1088
        %v1092 = vsel %vm1091, 0.0, -1e+09
        %v1093 = vpack.c.bf16 %v1086, %v1085
        %v1094 = vld [vmem:[%s1003] sm:$0xff]
        %v1095 = vld [vmem:[%s1003 + $0x8] sm:$0xff]
        %v1096 = vld [vmem:[%s1003 + $0x10] sm:$0xff]
        %v1097 = vld [vmem:[%s1003 + $0x18] sm:$0xff]
        %v1098 = vld [vmem:[%s1003 + $0x20] sm:$0xff]
        %v1099 = vld [vmem:[%s1003 + $0x28] sm:$0xff]
        %v1100 = vld [vmem:[%s1003 + $0x30] sm:$0xff]
        %v1101 = vld [vmem:[%s1003 + $0x38] sm:$0xff]
        %v1102 = vld [vmem:[%s1007] sm:$0x3]
        %v1104 = vperm.slane %v1102, 0
        %v1105 = vperm.slane %v1102, 1
        %v1116 = vunpack.c.l.b16 %v1094
        %v1117 = vunpack.c.h.b16 %v1094
        %v1118 = vunpack.c.l.b16 %v1095
        %v1119 = vunpack.c.h.b16 %v1095
        %v1120 = vunpack.c.l.b16 %v1096
        %v1121 = vunpack.c.h.b16 %v1096
        %v1122 = vunpack.c.l.b16 %v1097
        %v1123 = vunpack.c.h.b16 %v1097
        %v1124 = vunpack.c.l.b16 %v1098
        %v1125 = vunpack.c.h.b16 %v1098
        %v1126 = vunpack.c.l.b16 %v1099
        %v1127 = vunpack.c.h.b16 %v1099
        %v1128 = vunpack.c.l.b16 %v1100
        %v1129 = vunpack.c.h.b16 %v1100
        %v1130 = vunpack.c.l.b16 %v1101
        %v1131 = vunpack.c.h.b16 %v1101
        %v1132 = vpack.c.b16 %v1118, %v1116
        %v1133 = vpack.c.b16 %v1119, %v1117
        %v1134 = vpack.c.b16 %v1122, %v1120
        %v1135 = vpack.c.b16 %v1123, %v1121
        %v1136 = vpack.c.b16 %v1126, %v1124
        %v1137 = vpack.c.b16 %v1127, %v1125
        %v1138 = vpack.c.b16 %v1130, %v1128
        %v1139 = vpack.c.b16 %v1131, %v1129
        %vm1148 = vcmask 523264
        %v1150 = vsel %vm1148, %v1093, 0
        %1152 = vmatpush.bf16.msra.mxu0 0
        %1153 = vmatpush.bf16.msra.mxu0 0
        %1154 = vmatpush.bf16.msra.mxu0 0
        %1155 = vmatpush.bf16.msra.mxu0 0
        %1156 = vmatpush.bf16.msra.mxu0 %v1138
        %1157 = vmatpush.bf16.msra.mxu0 %v1136
        %1158 = vmatpush.bf16.msra.mxu0 %v1134
        %1159 = vmatpush.bf16.msra.mxu0 %v1132
        %1160 = vmatmul.bf16.gmra.mxu0 %v1150
        %v1161 = vpop.f32.mrf.mxu0
        %v1162 = vadd.f32 %v1104, %v1161
        %v1163 = vpop.f32.mrf.mxu0
        %v1164 = vadd.f32 %v1104, %v1163
        %1165 = vdwg.mxu0
        %1166 = vmatpush.bf16.msra.mxu0 0
        %1167 = vmatpush.bf16.msra.mxu0 0
        %1168 = vmatpush.bf16.msra.mxu0 0
        %1169 = vmatpush.bf16.msra.mxu0 0
        %1170 = vmatpush.bf16.msra.mxu0 %v1139
        %1171 = vmatpush.bf16.msra.mxu0 %v1137
        %1172 = vmatpush.bf16.msra.mxu0 %v1135
        %1173 = vmatpush.bf16.msra.mxu0 %v1133
        %1174 = vmatmul.bf16.gmra.mxu0 %v1150
        %v1175 = vpop.f32.mrf.mxu0
        %v1176 = vadd.f32 %v1105, %v1175
        %v1177 = vpop.f32.mrf.mxu0
        %v1178 = vadd.f32 %v1105, %v1177
        %1179 = vdwg.mxu0
        %v1180 = vld [vmem:[%s1012] sm:$0xf]
        %v1181 = vld [vmem:[%s1012 + $0x4] sm:$0xf]
        %v1182 = vld [vmem:[%s1012 + $0x8] sm:$0xf]
        %v1183 = vld [vmem:[%s1012 + $0xc] sm:$0xf]
        %v1184 = vld [vmem:[%s1012 + $0x10] sm:$0xf]
        %v1185 = vld [vmem:[%s1012 + $0x14] sm:$0xf]
        %v1186 = vld [vmem:[%s1012 + $0x18] sm:$0xf]
        %v1187 = vld [vmem:[%s1012 + $0x1c] sm:$0xf]
        %1189 = vrot.lane.b32.xlu0 %v1162, 64
        %v1190 = vpop.permute.xlu0 %1189
        %vm1191 = vcmask 130048
        %v1192 = vsel %vm1191, %v1162, 0
        %v1194 = vsel %vm1191, %v1190, 0
        %1196 = vmatpush.xpose.msra.mxu0 0.0
        %1197 = vmatpush.xpose.msra.mxu0 0.0
        %1198 = vmatpush.xpose.msra.mxu0 0.0
        %1199 = vmatpush.xpose.msra.mxu0 0.0
        %1200 = vmatpush.xpose.msra.mxu0 0.0
        %1201 = vmatpush.xpose.msra.mxu0 0.0
        %1202 = vmatpush.xpose.msra.mxu0 0.0
        %1203 = vmatpush.xpose.msra.mxu0 0.0
        %1204 = vmatpush.xpose.msra.mxu0 0.0
        %1205 = vmatpush.xpose.msra.mxu0 0.0
        %1206 = vmatpush.xpose.msra.mxu0 0.0
        %1207 = vmatpush.xpose.msra.mxu0 0.0
        %1208 = vmatpush.xpose.msra.mxu0 0.0
        %1209 = vmatpush.xpose.msra.mxu0 0.0
        %1210 = vmatpush.xpose.msra.mxu0 0.0
        %1211 = vmatpush.xpose.msra.mxu0 %v1194
        %1212 = vmatmul.f32.gmra.mxu0 %v1192
        %v1213 = vpop.f32.mrf.mxu0
        %v1214 = vadd.f32 0.0, %v1213
        %1215 = vdwg.mxu0
        %1217 = vrot.lane.b32.xlu0 %v1164, 64
        %v1218 = vpop.permute.xlu0 %1217
        %v1219 = vsel %vm1191, %v1164, 0
        %v1221 = vsel %vm1191, %v1218, 0
        %1223 = vmatpush.xpose.msra.mxu0 0.0
        %1224 = vmatpush.xpose.msra.mxu0 0.0
        %1225 = vmatpush.xpose.msra.mxu0 0.0
        %1226 = vmatpush.xpose.msra.mxu0 0.0
        %1227 = vmatpush.xpose.msra.mxu0 0.0
        %1228 = vmatpush.xpose.msra.mxu0 0.0
        %1229 = vmatpush.xpose.msra.mxu0 0.0
        %1230 = vmatpush.xpose.msra.mxu0 0.0
        %1231 = vmatpush.xpose.msra.mxu0 0.0
        %1232 = vmatpush.xpose.msra.mxu0 0.0
        %1233 = vmatpush.xpose.msra.mxu0 0.0
        %1234 = vmatpush.xpose.msra.mxu0 0.0
        %1235 = vmatpush.xpose.msra.mxu0 0.0
        %1236 = vmatpush.xpose.msra.mxu0 0.0
        %1237 = vmatpush.xpose.msra.mxu0 0.0
        %1238 = vmatpush.xpose.msra.mxu0 %v1221
        %1239 = vmatmul.f32.gmra.mxu0 %v1219
        %v1240 = vpop.f32.mrf.mxu0
        %v1241 = vadd.f32 0.0, %v1240
        %1242 = vdwg.mxu0
        %v1243 = vmul.f32 %v1214, 0.25
        %v1244 = vmul.f32 %v1241, 0.25
        %v1245 = vadd.f32 %v1243, %v1092
        %v1246 = vadd.f32 %v1244, %v1092
        %vm1247 = vcmask 64512
        %v1248 = vsel %vm1247, %v1245, -inf
        %1249 = vmax.xlane.f32.xlu0 %v1248
        %v1250 = vpop.xlane.xlu0 %1249
        %v1251 = vsel %vm1247, %v1246, -inf
        %1252 = vmax.xlane.f32.xlu0 %v1251
        %v1253 = vpop.xlane.xlu0 %1252
        %v1254 = vsub.f32 %v1245, %v1250
        %v1255 = vsub.f32 %v1246, %v1253
        %v1256 = vmul.f32 %v1254, 1.442695
        %v1257 = vpow.pop %v1256
        %v1258 = vmul.f32 %v1255, 1.442695
        %v1259 = vpow.pop %v1258
        %v1260 = vsel %vm1247, %v1257, 0.0
        %1261 = vadd.xlane.f32.xlu0 %v1260
        %v1262 = vpop.xlane.xlu0 %1261
        %v1263 = vsel %vm1247, %v1259, 0.0
        %1264 = vadd.xlane.f32.xlu0 %v1263
        %v1265 = vpop.xlane.xlu0 %1264
        %v1266 = vrcp.pop %v1262
        %v1267 = vrcp.pop %v1265
        %v1268 = vmul.f32 %v1257, %v1266
        %v1269 = vmul.f32 %v1259, %v1267
        %v1271 = vsel %vm1247, %v1268, 0
        %1273 = vmatpush.msra.mxu0 0.0
        %1274 = vmatpush.msra.mxu0 0.0
        %1275 = vmatpush.msra.mxu0 0.0
        %1276 = vmatpush.msra.mxu0 0.0
        %1277 = vmatpush.msra.mxu0 0.0
        %1278 = vmatpush.msra.mxu0 0.0
        %1279 = vmatpush.msra.mxu0 0.0
        %1280 = vmatpush.msra.mxu0 0.0
        %1281 = vmatpush.msra.mxu0 0.0
        %1282 = vmatpush.msra.mxu0 0.0
        %1283 = vmatpush.msra.mxu0 0.0
        %1284 = vmatpush.msra.mxu0 0.0
        %1285 = vmatpush.msra.mxu0 0.0
        %1286 = vmatpush.msra.mxu0 0.0
        %1287 = vmatpush.msra.mxu0 0.0
        %1288 = vmatpush.msra.mxu0 %v1176
        %1289 = vmatmul.f32.gmra.mxu0 %v1271
        %v1290 = vpop.f32.mrf.mxu0
        %v1291 = vadd.f32 0.0, %v1290
        %1292 = vdwg.mxu0
        %v1294 = vsel %vm1247, %v1269, 0
        %1296 = vmatpush.msra.mxu0 0.0
        %1297 = vmatpush.msra.mxu0 0.0
        %1298 = vmatpush.msra.mxu0 0.0
        %1299 = vmatpush.msra.mxu0 0.0
        %1300 = vmatpush.msra.mxu0 0.0
        %1301 = vmatpush.msra.mxu0 0.0
        %1302 = vmatpush.msra.mxu0 0.0
        %1303 = vmatpush.msra.mxu0 0.0
        %1304 = vmatpush.msra.mxu0 0.0
        %1305 = vmatpush.msra.mxu0 0.0
        %1306 = vmatpush.msra.mxu0 0.0
        %1307 = vmatpush.msra.mxu0 0.0
        %1308 = vmatpush.msra.mxu0 0.0
        %1309 = vmatpush.msra.mxu0 0.0
        %1310 = vmatpush.msra.mxu0 0.0
        %1311 = vmatpush.msra.mxu0 %v1178
        %1312 = vmatmul.f32.gmra.mxu0 %v1294
        %v1313 = vpop.f32.mrf.mxu0
        %v1314 = vadd.f32 0.0, %v1313
        %1315 = vdwg.mxu0
        %v1316 = vpack.c.bf16 %v1314, %v1291
        %1317 = vrot.lane.b32.xlu0 %v1162, 112
        %v1318 = vpop.permute.xlu0 %1317
        %1319 = vrot.lane.b32.xlu0 %v1162, 48
        %v1320 = vpop.permute.xlu0 %1319
        %v1321 = vsel %vm1191, %v1318, 0
        %v1323 = vsel %vm1191, %v1320, 0
        %1325 = vmatpush.xpose.msra.mxu0 0.0
        %1326 = vmatpush.xpose.msra.mxu0 0.0
        %1327 = vmatpush.xpose.msra.mxu0 0.0
        %1328 = vmatpush.xpose.msra.mxu0 0.0
        %1329 = vmatpush.xpose.msra.mxu0 0.0
        %1330 = vmatpush.xpose.msra.mxu0 0.0
        %1331 = vmatpush.xpose.msra.mxu0 0.0
        %1332 = vmatpush.xpose.msra.mxu0 0.0
        %1333 = vmatpush.xpose.msra.mxu0 0.0
        %1334 = vmatpush.xpose.msra.mxu0 0.0
        %1335 = vmatpush.xpose.msra.mxu0 0.0
        %1336 = vmatpush.xpose.msra.mxu0 0.0
        %1337 = vmatpush.xpose.msra.mxu0 0.0
        %1338 = vmatpush.xpose.msra.mxu0 0.0
        %1339 = vmatpush.xpose.msra.mxu0 0.0
        %1340 = vmatpush.xpose.msra.mxu0 %v1323
        %1341 = vmatmul.f32.gmra.mxu0 %v1321
        %v1342 = vpop.f32.mrf.mxu0
        %v1343 = vadd.f32 0.0, %v1342
        %1344 = vdwg.mxu0
        %1345 = vrot.lane.b32.xlu0 %v1164, 112
        %v1346 = vpop.permute.xlu0 %1345
        %1347 = vrot.lane.b32.xlu0 %v1164, 48
        %v1348 = vpop.permute.xlu0 %1347
        %v1349 = vsel %vm1191, %v1346, 0
        %v1351 = vsel %vm1191, %v1348, 0
        %1353 = vmatpush.xpose.msra.mxu0 0.0
        %1354 = vmatpush.xpose.msra.mxu0 0.0
        %1355 = vmatpush.xpose.msra.mxu0 0.0
        %1356 = vmatpush.xpose.msra.mxu0 0.0
        %1357 = vmatpush.xpose.msra.mxu0 0.0
        %1358 = vmatpush.xpose.msra.mxu0 0.0
        %1359 = vmatpush.xpose.msra.mxu0 0.0
        %1360 = vmatpush.xpose.msra.mxu0 0.0
        %1361 = vmatpush.xpose.msra.mxu0 0.0
        %1362 = vmatpush.xpose.msra.mxu0 0.0
        %1363 = vmatpush.xpose.msra.mxu0 0.0
        %1364 = vmatpush.xpose.msra.mxu0 0.0
        %1365 = vmatpush.xpose.msra.mxu0 0.0
        %1366 = vmatpush.xpose.msra.mxu0 0.0
        %1367 = vmatpush.xpose.msra.mxu0 0.0
        %1368 = vmatpush.xpose.msra.mxu0 %v1351
        %1369 = vmatmul.f32.gmra.mxu0 %v1349
        %v1370 = vpop.f32.mrf.mxu0
        %v1371 = vadd.f32 0.0, %v1370
        %1372 = vdwg.mxu0
        %v1373 = vmul.f32 %v1343, 0.25
        %v1374 = vmul.f32 %v1371, 0.25
        %v1375 = vadd.f32 %v1373, %v1092
        %v1376 = vadd.f32 %v1374, %v1092
        %v1377 = vsel %vm1247, %v1375, -inf
        %1378 = vmax.xlane.f32.xlu0 %v1377
        %v1379 = vpop.xlane.xlu0 %1378
        %v1380 = vsel %vm1247, %v1376, -inf
        %1381 = vmax.xlane.f32.xlu0 %v1380
        %v1382 = vpop.xlane.xlu0 %1381
        %v1383 = vsub.f32 %v1375, %v1379
        %v1384 = vsub.f32 %v1376, %v1382
        %v1385 = vmul.f32 %v1383, 1.442695
        %v1386 = vpow.pop %v1385
        %v1387 = vmul.f32 %v1384, 1.442695
        %v1388 = vpow.pop %v1387
        %v1389 = vsel %vm1247, %v1386, 0.0
        %1390 = vadd.xlane.f32.xlu0 %v1389
        %v1391 = vpop.xlane.xlu0 %1390
        %v1392 = vsel %vm1247, %v1388, 0.0
        %1393 = vadd.xlane.f32.xlu0 %v1392
        %v1394 = vpop.xlane.xlu0 %1393
        %v1395 = vrcp.pop %v1391
        %v1396 = vrcp.pop %v1394
        %v1397 = vmul.f32 %v1386, %v1395
        %v1398 = vmul.f32 %v1388, %v1396
        %1400 = vrot.lane.b32.xlu0 %v1176, 112
        %v1401 = vpop.permute.xlu0 %1400
        %v1404 = vsel %vm1247, %v1397, 0
        %1406 = vmatpush.msra.mxu0 0.0
        %1407 = vmatpush.msra.mxu0 0.0
        %1408 = vmatpush.msra.mxu0 0.0
        %1409 = vmatpush.msra.mxu0 0.0
        %1410 = vmatpush.msra.mxu0 0.0
        %1411 = vmatpush.msra.mxu0 0.0
        %1412 = vmatpush.msra.mxu0 0.0
        %1413 = vmatpush.msra.mxu0 0.0
        %1414 = vmatpush.msra.mxu0 0.0
        %1415 = vmatpush.msra.mxu0 0.0
        %1416 = vmatpush.msra.mxu0 0.0
        %1417 = vmatpush.msra.mxu0 0.0
        %1418 = vmatpush.msra.mxu0 0.0
        %1419 = vmatpush.msra.mxu0 0.0
        %1420 = vmatpush.msra.mxu0 0.0
        %1421 = vmatpush.msra.mxu0 %v1401
        %1422 = vmatmul.f32.gmra.mxu0 %v1404
        %v1423 = vpop.f32.mrf.mxu0
        %v1424 = vadd.f32 0.0, %v1423
        %1425 = vdwg.mxu0
        %1427 = vrot.lane.b32.xlu0 %v1178, 112
        %v1428 = vpop.permute.xlu0 %1427
        %v1431 = vsel %vm1247, %v1398, 0
        %1433 = vmatpush.msra.mxu0 0.0
        %1434 = vmatpush.msra.mxu0 0.0
        %1435 = vmatpush.msra.mxu0 0.0
        %1436 = vmatpush.msra.mxu0 0.0
        %1437 = vmatpush.msra.mxu0 0.0
        %1438 = vmatpush.msra.mxu0 0.0
        %1439 = vmatpush.msra.mxu0 0.0
        %1440 = vmatpush.msra.mxu0 0.0
        %1441 = vmatpush.msra.mxu0 0.0
        %1442 = vmatpush.msra.mxu0 0.0
        %1443 = vmatpush.msra.mxu0 0.0
        %1444 = vmatpush.msra.mxu0 0.0
        %1445 = vmatpush.msra.mxu0 0.0
        %1446 = vmatpush.msra.mxu0 0.0
        %1447 = vmatpush.msra.mxu0 0.0
        %1448 = vmatpush.msra.mxu0 %v1428
        %1449 = vmatmul.f32.gmra.mxu0 %v1431
        %v1450 = vpop.f32.mrf.mxu0
        %v1451 = vadd.f32 0.0, %v1450
        %1452 = vdwg.mxu0
        %v1453 = vpack.c.bf16 %v1451, %v1424
        %v1456 = vunpack.c.l.b16 %v1182
        %v1457 = vunpack.c.l.b16 %v1183
        %v1458 = vpack.c.b16 %v1457, %v1456
        %v1461 = vsel %vm1191, %v1453, 0
        %1463 = vmatpush.bf16.msra.mxu0 0
        %1464 = vmatpush.bf16.msra.mxu0 0
        %1465 = vmatpush.bf16.msra.mxu0 0
        %1466 = vmatpush.bf16.msra.mxu0 0
        %1467 = vmatpush.bf16.msra.mxu0 0
        %1468 = vmatpush.bf16.msra.mxu0 0
        %1469 = vmatpush.bf16.msra.mxu0 0
        %1470 = vmatpush.bf16.msra.mxu0 %v1458
        %1471 = vmatmul.bf16.gmra.mxu0 %v1461
        %v1472 = vpop.f32.mrf.mxu0
        %v1473 = vadd.f32 0.0, %v1472
        %v1474 = vpop.f32.mrf.mxu0
        %v1475 = vadd.f32 0.0, %v1474
        %1476 = vdwg.mxu0
        %v1479 = vunpack.c.l.b16 %v1180
        %v1480 = vunpack.c.l.b16 %v1181
        %v1481 = vpack.c.b16 %v1480, %v1479
        %v1484 = vsel %vm1191, %v1316, 0
        %1486 = vmatpush.bf16.msra.mxu0 0
        %1487 = vmatpush.bf16.msra.mxu0 0
        %1488 = vmatpush.bf16.msra.mxu0 0
        %1489 = vmatpush.bf16.msra.mxu0 0
        %1490 = vmatpush.bf16.msra.mxu0 0
        %1491 = vmatpush.bf16.msra.mxu0 0
        %1492 = vmatpush.bf16.msra.mxu0 0
        %1493 = vmatpush.bf16.msra.mxu0 %v1481
        %1494 = vmatmul.bf16.gmra.mxu0 %v1484
        %v1495 = vpop.f32.mrf.mxu0
        %v1496 = vadd.f32 %v1473, %v1495
        %v1497 = vpop.f32.mrf.mxu0
        %v1498 = vadd.f32 %v1475, %v1497
        %1499 = vdwg.mxu0
        %1500 = vrot.lane.b32.xlu0 %v1162, 96
        %v1501 = vpop.permute.xlu0 %1500
        %1502 = vrot.lane.b32.xlu0 %v1162, 32
        %v1503 = vpop.permute.xlu0 %1502
        %v1504 = vsel %vm1191, %v1501, 0
        %v1506 = vsel %vm1191, %v1503, 0
        %1508 = vmatpush.xpose.msra.mxu0 0.0
        %1509 = vmatpush.xpose.msra.mxu0 0.0
        %1510 = vmatpush.xpose.msra.mxu0 0.0
        %1511 = vmatpush.xpose.msra.mxu0 0.0
        %1512 = vmatpush.xpose.msra.mxu0 0.0
        %1513 = vmatpush.xpose.msra.mxu0 0.0
        %1514 = vmatpush.xpose.msra.mxu0 0.0
        %1515 = vmatpush.xpose.msra.mxu0 0.0
        %1516 = vmatpush.xpose.msra.mxu0 0.0
        %1517 = vmatpush.xpose.msra.mxu0 0.0
        %1518 = vmatpush.xpose.msra.mxu0 0.0
        %1519 = vmatpush.xpose.msra.mxu0 0.0
        %1520 = vmatpush.xpose.msra.mxu0 0.0
        %1521 = vmatpush.xpose.msra.mxu0 0.0
        %1522 = vmatpush.xpose.msra.mxu0 0.0
        %1523 = vmatpush.xpose.msra.mxu0 %v1506
        %1524 = vmatmul.f32.gmra.mxu0 %v1504
        %v1525 = vpop.f32.mrf.mxu0
        %v1526 = vadd.f32 0.0, %v1525
        %1527 = vdwg.mxu0
        %1528 = vrot.lane.b32.xlu0 %v1164, 96
        %v1529 = vpop.permute.xlu0 %1528
        %1530 = vrot.lane.b32.xlu0 %v1164, 32
        %v1531 = vpop.permute.xlu0 %1530
        %v1532 = vsel %vm1191, %v1529, 0
        %v1534 = vsel %vm1191, %v1531, 0
        %1536 = vmatpush.xpose.msra.mxu0 0.0
        %1537 = vmatpush.xpose.msra.mxu0 0.0
        %1538 = vmatpush.xpose.msra.mxu0 0.0
        %1539 = vmatpush.xpose.msra.mxu0 0.0
        %1540 = vmatpush.xpose.msra.mxu0 0.0
        %1541 = vmatpush.xpose.msra.mxu0 0.0
        %1542 = vmatpush.xpose.msra.mxu0 0.0
        %1543 = vmatpush.xpose.msra.mxu0 0.0
        %1544 = vmatpush.xpose.msra.mxu0 0.0
        %1545 = vmatpush.xpose.msra.mxu0 0.0
        %1546 = vmatpush.xpose.msra.mxu0 0.0
        %1547 = vmatpush.xpose.msra.mxu0 0.0
        %1548 = vmatpush.xpose.msra.mxu0 0.0
        %1549 = vmatpush.xpose.msra.mxu0 0.0
        %1550 = vmatpush.xpose.msra.mxu0 0.0
        %1551 = vmatpush.xpose.msra.mxu0 %v1534
        %1552 = vmatmul.f32.gmra.mxu0 %v1532
        %v1553 = vpop.f32.mrf.mxu0
        %v1554 = vadd.f32 0.0, %v1553
        %1555 = vdwg.mxu0
        %v1556 = vmul.f32 %v1526, 0.25
        %v1557 = vmul.f32 %v1554, 0.25
        %v1558 = vadd.f32 %v1556, %v1092
        %v1559 = vadd.f32 %v1557, %v1092
        %v1560 = vsel %vm1247, %v1558, -inf
        %1561 = vmax.xlane.f32.xlu0 %v1560
        %v1562 = vpop.xlane.xlu0 %1561
        %v1563 = vsel %vm1247, %v1559, -inf
        %1564 = vmax.xlane.f32.xlu0 %v1563
        %v1565 = vpop.xlane.xlu0 %1564
        %v1566 = vsub.f32 %v1558, %v1562
        %v1567 = vsub.f32 %v1559, %v1565
        %v1568 = vmul.f32 %v1566, 1.442695
        %v1569 = vpow.pop %v1568
        %v1570 = vmul.f32 %v1567, 1.442695
        %v1571 = vpow.pop %v1570
        %v1572 = vsel %vm1247, %v1569, 0.0
        %1573 = vadd.xlane.f32.xlu0 %v1572
        %v1574 = vpop.xlane.xlu0 %1573
        %v1575 = vsel %vm1247, %v1571, 0.0
        %1576 = vadd.xlane.f32.xlu0 %v1575
        %v1577 = vpop.xlane.xlu0 %1576
        %v1578 = vrcp.pop %v1574
        %v1579 = vrcp.pop %v1577
        %v1580 = vmul.f32 %v1569, %v1578
        %v1581 = vmul.f32 %v1571, %v1579
        %1582 = vrot.lane.b32.xlu0 %v1176, 96
        %v1583 = vpop.permute.xlu0 %1582
        %v1586 = vsel %vm1247, %v1580, 0
        %1588 = vmatpush.msra.mxu0 0.0
        %1589 = vmatpush.msra.mxu0 0.0
        %1590 = vmatpush.msra.mxu0 0.0
        %1591 = vmatpush.msra.mxu0 0.0
        %1592 = vmatpush.msra.mxu0 0.0
        %1593 = vmatpush.msra.mxu0 0.0
        %1594 = vmatpush.msra.mxu0 0.0
        %1595 = vmatpush.msra.mxu0 0.0
        %1596 = vmatpush.msra.mxu0 0.0
        %1597 = vmatpush.msra.mxu0 0.0
        %1598 = vmatpush.msra.mxu0 0.0
        %1599 = vmatpush.msra.mxu0 0.0
        %1600 = vmatpush.msra.mxu0 0.0
        %1601 = vmatpush.msra.mxu0 0.0
        %1602 = vmatpush.msra.mxu0 0.0
        %1603 = vmatpush.msra.mxu0 %v1583
        %1604 = vmatmul.f32.gmra.mxu0 %v1586
        %v1605 = vpop.f32.mrf.mxu0
        %v1606 = vadd.f32 0.0, %v1605
        %1607 = vdwg.mxu0
        %1608 = vrot.lane.b32.xlu0 %v1178, 96
        %v1609 = vpop.permute.xlu0 %1608
        %v1612 = vsel %vm1247, %v1581, 0
        %1614 = vmatpush.msra.mxu0 0.0
        %1615 = vmatpush.msra.mxu0 0.0
        %1616 = vmatpush.msra.mxu0 0.0
        %1617 = vmatpush.msra.mxu0 0.0
        %1618 = vmatpush.msra.mxu0 0.0
        %1619 = vmatpush.msra.mxu0 0.0
        %1620 = vmatpush.msra.mxu0 0.0
        %1621 = vmatpush.msra.mxu0 0.0
        %1622 = vmatpush.msra.mxu0 0.0
        %1623 = vmatpush.msra.mxu0 0.0
        %1624 = vmatpush.msra.mxu0 0.0
        %1625 = vmatpush.msra.mxu0 0.0
        %1626 = vmatpush.msra.mxu0 0.0
        %1627 = vmatpush.msra.mxu0 0.0
        %1628 = vmatpush.msra.mxu0 0.0
        %1629 = vmatpush.msra.mxu0 %v1609
        %1630 = vmatmul.f32.gmra.mxu0 %v1612
        %v1631 = vpop.f32.mrf.mxu0
        %v1632 = vadd.f32 0.0, %v1631
        %1633 = vdwg.mxu0
        %v1634 = vpack.c.bf16 %v1632, %v1606
        %v1637 = vunpack.c.l.b16 %v1184
        %v1638 = vunpack.c.l.b16 %v1185
        %v1639 = vpack.c.b16 %v1638, %v1637
        %v1642 = vsel %vm1191, %v1634, 0
        %1644 = vmatpush.bf16.msra.mxu0 0
        %1645 = vmatpush.bf16.msra.mxu0 0
        %1646 = vmatpush.bf16.msra.mxu0 0
        %1647 = vmatpush.bf16.msra.mxu0 0
        %1648 = vmatpush.bf16.msra.mxu0 0
        %1649 = vmatpush.bf16.msra.mxu0 0
        %1650 = vmatpush.bf16.msra.mxu0 0
        %1651 = vmatpush.bf16.msra.mxu0 %v1639
        %1652 = vmatmul.bf16.gmra.mxu0 %v1642
        %v1653 = vpop.f32.mrf.mxu0
        %v1654 = vadd.f32 0.0, %v1653
        %v1655 = vpop.f32.mrf.mxu0
        %v1656 = vadd.f32 0.0, %v1655
        %1657 = vdwg.mxu0
        %v1658 = vadd.f32 %v1496, %v1654
        %v1659 = vadd.f32 %v1498, %v1656
        %1660 = vrot.lane.b32.xlu0 %v1162, 80
        %v1661 = vpop.permute.xlu0 %1660
        %1662 = vrot.lane.b32.xlu0 %v1162, 16
        %v1663 = vpop.permute.xlu0 %1662
        %v1664 = vsel %vm1191, %v1661, 0
        %v1666 = vsel %vm1191, %v1663, 0
        %1668 = vmatpush.xpose.msra.mxu0 0.0
        %1669 = vmatpush.xpose.msra.mxu0 0.0
        %1670 = vmatpush.xpose.msra.mxu0 0.0
        %1671 = vmatpush.xpose.msra.mxu0 0.0
        %1672 = vmatpush.xpose.msra.mxu0 0.0
        %1673 = vmatpush.xpose.msra.mxu0 0.0
        %1674 = vmatpush.xpose.msra.mxu0 0.0
        %1675 = vmatpush.xpose.msra.mxu0 0.0
        %1676 = vmatpush.xpose.msra.mxu0 0.0
        %1677 = vmatpush.xpose.msra.mxu0 0.0
        %1678 = vmatpush.xpose.msra.mxu0 0.0
        %1679 = vmatpush.xpose.msra.mxu0 0.0
        %1680 = vmatpush.xpose.msra.mxu0 0.0
        %1681 = vmatpush.xpose.msra.mxu0 0.0
        %1682 = vmatpush.xpose.msra.mxu0 0.0
        %1683 = vmatpush.xpose.msra.mxu0 %v1666
        %1684 = vmatmul.f32.gmra.mxu0 %v1664
        %v1685 = vpop.f32.mrf.mxu0
        %v1686 = vadd.f32 0.0, %v1685
        %1687 = vdwg.mxu0
        %1688 = vrot.lane.b32.xlu0 %v1164, 80
        %v1689 = vpop.permute.xlu0 %1688
        %1690 = vrot.lane.b32.xlu0 %v1164, 16
        %v1691 = vpop.permute.xlu0 %1690
        %v1692 = vsel %vm1191, %v1689, 0
        %v1694 = vsel %vm1191, %v1691, 0
        %1696 = vmatpush.xpose.msra.mxu0 0.0
        %1697 = vmatpush.xpose.msra.mxu0 0.0
        %1698 = vmatpush.xpose.msra.mxu0 0.0
        %1699 = vmatpush.xpose.msra.mxu0 0.0
        %1700 = vmatpush.xpose.msra.mxu0 0.0
        %1701 = vmatpush.xpose.msra.mxu0 0.0
        %1702 = vmatpush.xpose.msra.mxu0 0.0
        %1703 = vmatpush.xpose.msra.mxu0 0.0
        %1704 = vmatpush.xpose.msra.mxu0 0.0
        %1705 = vmatpush.xpose.msra.mxu0 0.0
        %1706 = vmatpush.xpose.msra.mxu0 0.0
        %1707 = vmatpush.xpose.msra.mxu0 0.0
        %1708 = vmatpush.xpose.msra.mxu0 0.0
        %1709 = vmatpush.xpose.msra.mxu0 0.0
        %1710 = vmatpush.xpose.msra.mxu0 0.0
        %1711 = vmatpush.xpose.msra.mxu0 %v1694
        %1712 = vmatmul.f32.gmra.mxu0 %v1692
        %v1713 = vpop.f32.mrf.mxu0
        %v1714 = vadd.f32 0.0, %v1713
        %1715 = vdwg.mxu0
        %v1716 = vmul.f32 %v1686, 0.25
        %v1717 = vmul.f32 %v1714, 0.25
        %v1718 = vadd.f32 %v1716, %v1092
        %v1719 = vadd.f32 %v1717, %v1092
        %v1720 = vsel %vm1247, %v1718, -inf
        %1721 = vmax.xlane.f32.xlu0 %v1720
        %v1722 = vpop.xlane.xlu0 %1721
        %v1723 = vsel %vm1247, %v1719, -inf
        %1724 = vmax.xlane.f32.xlu0 %v1723
        %v1725 = vpop.xlane.xlu0 %1724
        %v1726 = vsub.f32 %v1718, %v1722
        %v1727 = vsub.f32 %v1719, %v1725
        %v1728 = vmul.f32 %v1726, 1.442695
        %v1729 = vpow.pop %v1728
        %v1730 = vmul.f32 %v1727, 1.442695
        %v1731 = vpow.pop %v1730
        %v1732 = vsel %vm1247, %v1729, 0.0
        %1733 = vadd.xlane.f32.xlu0 %v1732
        %v1734 = vpop.xlane.xlu0 %1733
        %v1735 = vsel %vm1247, %v1731, 0.0
        %1736 = vadd.xlane.f32.xlu0 %v1735
        %v1737 = vpop.xlane.xlu0 %1736
        %v1738 = vrcp.pop %v1734
        %v1739 = vrcp.pop %v1737
        %v1740 = vmul.f32 %v1729, %v1738
        %v1741 = vmul.f32 %v1731, %v1739
        %1742 = vrot.lane.b32.xlu0 %v1176, 80
        %v1743 = vpop.permute.xlu0 %1742
        %v1746 = vsel %vm1247, %v1740, 0
        %1748 = vmatpush.msra.mxu0 0.0
        %1749 = vmatpush.msra.mxu0 0.0
        %1750 = vmatpush.msra.mxu0 0.0
        %1751 = vmatpush.msra.mxu0 0.0
        %1752 = vmatpush.msra.mxu0 0.0
        %1753 = vmatpush.msra.mxu0 0.0
        %1754 = vmatpush.msra.mxu0 0.0
        %1755 = vmatpush.msra.mxu0 0.0
        %1756 = vmatpush.msra.mxu0 0.0
        %1757 = vmatpush.msra.mxu0 0.0
        %1758 = vmatpush.msra.mxu0 0.0
        %1759 = vmatpush.msra.mxu0 0.0
        %1760 = vmatpush.msra.mxu0 0.0
        %1761 = vmatpush.msra.mxu0 0.0
        %1762 = vmatpush.msra.mxu0 0.0
        %1763 = vmatpush.msra.mxu0 %v1743
        %1764 = vmatmul.f32.gmra.mxu0 %v1746
        %v1765 = vpop.f32.mrf.mxu0
        %v1766 = vadd.f32 0.0, %v1765
        %1767 = vdwg.mxu0
        %1768 = vrot.lane.b32.xlu0 %v1178, 80
        %v1769 = vpop.permute.xlu0 %1768
        %v1772 = vsel %vm1247, %v1741, 0
        %1774 = vmatpush.msra.mxu0 0.0
        %1775 = vmatpush.msra.mxu0 0.0
        %1776 = vmatpush.msra.mxu0 0.0
        %1777 = vmatpush.msra.mxu0 0.0
        %1778 = vmatpush.msra.mxu0 0.0
        %1779 = vmatpush.msra.mxu0 0.0
        %1780 = vmatpush.msra.mxu0 0.0
        %1781 = vmatpush.msra.mxu0 0.0
        %1782 = vmatpush.msra.mxu0 0.0
        %1783 = vmatpush.msra.mxu0 0.0
        %1784 = vmatpush.msra.mxu0 0.0
        %1785 = vmatpush.msra.mxu0 0.0
        %1786 = vmatpush.msra.mxu0 0.0
        %1787 = vmatpush.msra.mxu0 0.0
        %1788 = vmatpush.msra.mxu0 0.0
        %1789 = vmatpush.msra.mxu0 %v1769
        %1790 = vmatmul.f32.gmra.mxu0 %v1772
        %v1791 = vpop.f32.mrf.mxu0
        %v1792 = vadd.f32 0.0, %v1791
        %1793 = vdwg.mxu0
        %v1794 = vpack.c.bf16 %v1792, %v1766
        %v1797 = vunpack.c.l.b16 %v1186
        %v1798 = vunpack.c.l.b16 %v1187
        %v1799 = vpack.c.b16 %v1798, %v1797
        %v1802 = vsel %vm1191, %v1794, 0
        %1804 = vmatpush.bf16.msra.mxu0 0
        %1805 = vmatpush.bf16.msra.mxu0 0
        %1806 = vmatpush.bf16.msra.mxu0 0
        %1807 = vmatpush.bf16.msra.mxu0 0
        %1808 = vmatpush.bf16.msra.mxu0 0
        %1809 = vmatpush.bf16.msra.mxu0 0
        %1810 = vmatpush.bf16.msra.mxu0 0
        %1811 = vmatpush.bf16.msra.mxu0 %v1799
        %1812 = vmatmul.bf16.gmra.mxu0 %v1802
        %v1813 = vpop.f32.mrf.mxu0
        %v1814 = vadd.f32 0.0, %v1813
        %v1815 = vpop.f32.mrf.mxu0
        %v1816 = vadd.f32 0.0, %v1815
        %1817 = vdwg.mxu0
        %v1818 = vadd.f32 %v1658, %v1814
        %v1819 = vadd.f32 %v1659, %v1816
        %v1820 = vld [vmem:[%s1015] sm:$0x1]
        %v1822 = vperm.slane %v1820, 0
        %v1824 = vadd.f32 %v1818, %v1822
        %v1825 = vadd.f32 %v1819, %v1822
        %v1826 = vadd.f32 %v1824, %v1085
        %v1827 = vadd.f32 %v1825, %v1086
        %v1828 = vld [vmem:[%s1018] sm:$0x1]
        %v1829 = vld [vmem:[%s1021] sm:$0x1]
        %v1830 = vsel %vm1148, %v1826, 0.0
        %1831 = vadd.xlane.f32.xlu0 %v1830
        %v1832 = vpop.xlane.xlu0 %1831
        %v1833 = vsel %vm1148, %v1827, 0.0
        %1834 = vadd.xlane.f32.xlu0 %v1833
        %v1835 = vpop.xlane.xlu0 %1834
        %v1836 = vrcp.pop 64.0
        %v1837 = vmul.f32 64.0, %v1836
        %v1838 = vsub.f32 1.0, %v1837
        %v1839 = vmul.f32 %v1836, %v1838
        %v1840 = vadd.f32 %v1836, %v1839
        %vm1841 = vweird.f32 %v1836
        %v1842 = vsel %vm1841, %v1836, %v1840
        %v1843 = vmul.f32 %v1832, %v1842
        %v1844 = vmul.f32 %v1835, %v1842
        %v1845 = vsub.f32 %v1826, %v1843
        %v1846 = vsub.f32 %v1827, %v1844
        %v1847 = vmul.f32 %v1845, %v1845
        %v1848 = vmul.f32 %v1846, %v1846
        %v1849 = vsel %vm1148, %v1847, 0.0
        %1850 = vadd.xlane.f32.xlu0 %v1849
        %v1851 = vpop.xlane.xlu0 %1850
        %v1852 = vsel %vm1148, %v1848, 0.0
        %1853 = vadd.xlane.f32.xlu0 %v1852
        %v1854 = vpop.xlane.xlu0 %1853
        %v1855 = vmul.f32 %v1851, %v1842
        %v1856 = vmul.f32 %v1854, %v1842
        %v1857 = vadd.f32 %v1855, 1e-05
        %v1858 = vadd.f32 %v1856, 1e-05
        %v1859 = vrsqrt.pop %v1857
        %v1860 = vmul.f32 %v1859, %v1857
        %v1861 = vmul.f32 %v1860, %v1859
        %v1862 = vmul.f32 0.5, %v1861
        %v1863 = vsub.f32 1.5, %v1862
        %v1864 = vmul.f32 %v1859, %v1863
        %vm1865 = vweird.f32 %v1857
        %vm1866 = vweird.f32 %v1859
        %vm1867 = vmor %vm1865, %vm1866
        %v1868 = vsel %vm1867, %v1859, %v1864
        %v1869 = vrsqrt.pop %v1858
        %v1870 = vmul.f32 %v1869, %v1858
        %v1871 = vmul.f32 %v1870, %v1869
        %v1872 = vmul.f32 0.5, %v1871
        %v1873 = vsub.f32 1.5, %v1872
        %v1874 = vmul.f32 %v1869, %v1873
        %vm1875 = vweird.f32 %v1858
        %vm1876 = vweird.f32 %v1869
        %vm1877 = vmor %vm1875, %vm1876
        %v1878 = vsel %vm1877, %v1869, %v1874
        %v1879 = vmul.f32 %v1845, %v1868
        %v1880 = vmul.f32 %v1846, %v1878
        %v1882 = vperm.slane %v1828, 0
        %v1884 = vmul.f32 %v1879, %v1882
        %v1885 = vmul.f32 %v1880, %v1882
        %v1887 = vperm.slane %v1829, 0
        %v1889 = vadd.f32 %v1884, %v1887
        %v1890 = vadd.f32 %v1885, %v1887
        %v1891 = vld [vmem:[%s1] sm:$0xff]
        %v1892 = vld [vmem:[%s1 + $0x8] sm:$0xff]
        %v1893 = vpack.c.bf16 %v1890, %v1889
        %v1894 = vld [vmem:[%s1026] sm:$0xf]
        %v1895 = vld [vmem:[%s1026 + $0x4] sm:$0xf]
        %v1896 = vld [vmem:[%s1026 + $0x8] sm:$0xf]
        %v1897 = vld [vmem:[%s1026 + $0xc] sm:$0xf]
        %v1898 = vld [vmem:[%s1026 + $0x10] sm:$0xf]
        %v1899 = vld [vmem:[%s1026 + $0x14] sm:$0xf]
        %v1900 = vld [vmem:[%s1026 + $0x18] sm:$0xf]
        %v1901 = vld [vmem:[%s1026 + $0x1c] sm:$0xf]
        %v1902 = vld [vmem:[%s1029] sm:$0x1]
        %v1904 = vperm.slane %v1902, 0
        %v1914 = vunpack.c.l.b16 %v1894
        %v1915 = vunpack.c.l.b16 %v1895
        %v1916 = vunpack.c.l.b16 %v1896
        %v1917 = vunpack.c.l.b16 %v1897
        %v1918 = vunpack.c.l.b16 %v1898
        %v1919 = vunpack.c.l.b16 %v1899
        %v1920 = vunpack.c.l.b16 %v1900
        %v1921 = vunpack.c.l.b16 %v1901
        %v1922 = vpack.c.b16 %v1915, %v1914
        %v1923 = vpack.c.b16 %v1917, %v1916
        %v1924 = vpack.c.b16 %v1919, %v1918
        %v1925 = vpack.c.b16 %v1921, %v1920
        %v1931 = vsel %vm1148, %v1893, 0
        %1933 = vmatpush.bf16.msra.mxu0 0
        %1934 = vmatpush.bf16.msra.mxu0 0
        %1935 = vmatpush.bf16.msra.mxu0 0
        %1936 = vmatpush.bf16.msra.mxu0 0
        %1937 = vmatpush.bf16.msra.mxu0 %v1925
        %1938 = vmatpush.bf16.msra.mxu0 %v1924
        %1939 = vmatpush.bf16.msra.mxu0 %v1923
        %1940 = vmatpush.bf16.msra.mxu0 %v1922
        %1941 = vmatmul.bf16.gmra.mxu0 %v1931
        %v1942 = vpop.f32.mrf.mxu0
        %v1943 = vadd.f32 %v1904, %v1942
        %v1944 = vpop.f32.mrf.mxu0
        %v1945 = vadd.f32 %v1904, %v1944
        %1946 = vdwg.mxu0
        %v1947 = vpack.c.bf16 %v1892, %v1891
        %v1948 = vld [vmem:[%s1034] sm:$0xf]
        %v1949 = vld [vmem:[%s1034 + $0x4] sm:$0xf]
        %v1950 = vld [vmem:[%s1034 + $0x8] sm:$0xf]
        %v1951 = vld [vmem:[%s1034 + $0xc] sm:$0xf]
        %v1952 = vld [vmem:[%s1034 + $0x10] sm:$0xf]
        %v1953 = vld [vmem:[%s1034 + $0x14] sm:$0xf]
        %v1954 = vld [vmem:[%s1034 + $0x18] sm:$0xf]
        %v1955 = vld [vmem:[%s1034 + $0x1c] sm:$0xf]
        %v1956 = vld [vmem:[%s1037] sm:$0x1]
        %v1958 = vperm.slane %v1956, 0
        %v1968 = vunpack.c.l.b16 %v1948
        %v1969 = vunpack.c.l.b16 %v1949
        %v1970 = vunpack.c.l.b16 %v1950
        %v1971 = vunpack.c.l.b16 %v1951
        %v1972 = vunpack.c.l.b16 %v1952
        %v1973 = vunpack.c.l.b16 %v1953
        %v1974 = vunpack.c.l.b16 %v1954
        %v1975 = vunpack.c.l.b16 %v1955
        %v1976 = vpack.c.b16 %v1969, %v1968
        %v1977 = vpack.c.b16 %v1971, %v1970
        %v1978 = vpack.c.b16 %v1973, %v1972
        %v1979 = vpack.c.b16 %v1975, %v1974
        %v1985 = vsel %vm1148, %v1947, 0
        %1987 = vmatpush.bf16.msra.mxu0 0
        %1988 = vmatpush.bf16.msra.mxu0 0
        %1989 = vmatpush.bf16.msra.mxu0 0
        %1990 = vmatpush.bf16.msra.mxu0 0
        %1991 = vmatpush.bf16.msra.mxu0 %v1979
        %1992 = vmatpush.bf16.msra.mxu0 %v1978
        %1993 = vmatpush.bf16.msra.mxu0 %v1977
        %1994 = vmatpush.bf16.msra.mxu0 %v1976
        %1995 = vmatmul.bf16.gmra.mxu0 %v1985
        %v1996 = vpop.f32.mrf.mxu0
        %v1997 = vadd.f32 %v1958, %v1996
        %v1998 = vpop.f32.mrf.mxu0
        %v1999 = vadd.f32 %v1958, %v1998
        %2000 = vdwg.mxu0
        %v2001 = vld [vmem:[%s2] sm:$0x3]
        %v2003 = vrot.slane %v2001, 1
        %v2004 = vld [vmem:[%s1042] sm:$0xf]
        %v2005 = vld [vmem:[%s1042 + $0x4] sm:$0xf]
        %v2006 = vld [vmem:[%s1042 + $0x8] sm:$0xf]
        %v2007 = vld [vmem:[%s1042 + $0xc] sm:$0xf]
        %v2008 = vld [vmem:[%s1042 + $0x10] sm:$0xf]
        %v2009 = vld [vmem:[%s1042 + $0x14] sm:$0xf]
        %v2010 = vld [vmem:[%s1042 + $0x18] sm:$0xf]
        %v2011 = vld [vmem:[%s1042 + $0x1c] sm:$0xf]
        %v2013 = vsel %vm1191, %v1943, 0
        %v2016 = vsel %vm1191, %v1997, 0
        %2018 = vmatpush.xpose.msra.mxu0 0.0
        %2019 = vmatpush.xpose.msra.mxu0 0.0
        %2020 = vmatpush.xpose.msra.mxu0 0.0
        %2021 = vmatpush.xpose.msra.mxu0 0.0
        %2022 = vmatpush.xpose.msra.mxu0 0.0
        %2023 = vmatpush.xpose.msra.mxu0 0.0
        %2024 = vmatpush.xpose.msra.mxu0 0.0
        %2025 = vmatpush.xpose.msra.mxu0 0.0
        %2026 = vmatpush.xpose.msra.mxu0 0.0
        %2027 = vmatpush.xpose.msra.mxu0 0.0
        %2028 = vmatpush.xpose.msra.mxu0 0.0
        %2029 = vmatpush.xpose.msra.mxu0 0.0
        %2030 = vmatpush.xpose.msra.mxu0 0.0
        %2031 = vmatpush.xpose.msra.mxu0 0.0
        %2032 = vmatpush.xpose.msra.mxu0 0.0
        %2033 = vmatpush.xpose.msra.mxu0 %v2016
        %2034 = vmatmul.f32.gmra.mxu0 %v2013
        %v2035 = vpop.f32.mrf.mxu0
        %v2036 = vadd.f32 0.0, %v2035
        %2037 = vdwg.mxu0
        %v2039 = vsel %vm1191, %v1945, 0
        %v2042 = vsel %vm1191, %v1999, 0
        %2044 = vmatpush.xpose.msra.mxu0 0.0
        %2045 = vmatpush.xpose.msra.mxu0 0.0
        %2046 = vmatpush.xpose.msra.mxu0 0.0
        %2047 = vmatpush.xpose.msra.mxu0 0.0
        %2048 = vmatpush.xpose.msra.mxu0 0.0
        %2049 = vmatpush.xpose.msra.mxu0 0.0
        %2050 = vmatpush.xpose.msra.mxu0 0.0
        %2051 = vmatpush.xpose.msra.mxu0 0.0
        %2052 = vmatpush.xpose.msra.mxu0 0.0
        %2053 = vmatpush.xpose.msra.mxu0 0.0
        %2054 = vmatpush.xpose.msra.mxu0 0.0
        %2055 = vmatpush.xpose.msra.mxu0 0.0
        %2056 = vmatpush.xpose.msra.mxu0 0.0
        %2057 = vmatpush.xpose.msra.mxu0 0.0
        %2058 = vmatpush.xpose.msra.mxu0 0.0
        %2059 = vmatpush.xpose.msra.mxu0 %v2042
        %2060 = vmatmul.f32.gmra.mxu0 %v2039
        %v2061 = vpop.f32.mrf.mxu0
        %v2062 = vadd.f32 0.0, %v2061
        %2063 = vdwg.mxu0
        %v2064 = vmul.f32 %v2036, 0.25
        %v2065 = vmul.f32 %v2062, 0.25
        %v2066 = vperm.slane %v2001, 0
        %v2067 = vperm.slane %v2003, 0
        %v2070 = vadd.f32 %v2064, %v2066
        %v2071 = vadd.f32 %v2065, %v2067
        %v2072 = vsel %vm1247, %v2070, -inf
        %2073 = vmax.xlane.f32.xlu0 %v2072
        %v2074 = vpop.xlane.xlu0 %2073
        %v2075 = vsel %vm1247, %v2071, -inf
        %2076 = vmax.xlane.f32.xlu0 %v2075
        %v2077 = vpop.xlane.xlu0 %2076
        %v2078 = vsub.f32 %v2070, %v2074
        %v2079 = vsub.f32 %v2071, %v2077
        %v2080 = vmul.f32 %v2078, 1.442695
        %v2081 = vpow.pop %v2080
        %v2082 = vmul.f32 %v2079, 1.442695
        %v2083 = vpow.pop %v2082
        %v2084 = vsel %vm1247, %v2081, 0.0
        %2085 = vadd.xlane.f32.xlu0 %v2084
        %v2086 = vpop.xlane.xlu0 %2085
        %v2087 = vsel %vm1247, %v2083, 0.0
        %2088 = vadd.xlane.f32.xlu0 %v2087
        %v2089 = vpop.xlane.xlu0 %2088
        %v2090 = vrcp.pop %v2086
        %v2091 = vrcp.pop %v2089
        %v2092 = vmul.f32 %v2081, %v2090
        %v2093 = vmul.f32 %v2083, %v2091
        %2094 = vrot.lane.b32.xlu0 %v1997, 64
        %v2095 = vpop.permute.xlu0 %2094
        %v2098 = vsel %vm1247, %v2092, 0
        %2100 = vmatpush.msra.mxu0 0.0
        %2101 = vmatpush.msra.mxu0 0.0
        %2102 = vmatpush.msra.mxu0 0.0
        %2103 = vmatpush.msra.mxu0 0.0
        %2104 = vmatpush.msra.mxu0 0.0
        %2105 = vmatpush.msra.mxu0 0.0
        %2106 = vmatpush.msra.mxu0 0.0
        %2107 = vmatpush.msra.mxu0 0.0
        %2108 = vmatpush.msra.mxu0 0.0
        %2109 = vmatpush.msra.mxu0 0.0
        %2110 = vmatpush.msra.mxu0 0.0
        %2111 = vmatpush.msra.mxu0 0.0
        %2112 = vmatpush.msra.mxu0 0.0
        %2113 = vmatpush.msra.mxu0 0.0
        %2114 = vmatpush.msra.mxu0 0.0
        %2115 = vmatpush.msra.mxu0 %v2095
        %2116 = vmatmul.f32.gmra.mxu0 %v2098
        %v2117 = vpop.f32.mrf.mxu0
        %v2118 = vadd.f32 0.0, %v2117
        %2119 = vdwg.mxu0
        %2120 = vrot.lane.b32.xlu0 %v1999, 64
        %v2121 = vpop.permute.xlu0 %2120
        %v2124 = vsel %vm1247, %v2093, 0
        %2126 = vmatpush.msra.mxu0 0.0
        %2127 = vmatpush.msra.mxu0 0.0
        %2128 = vmatpush.msra.mxu0 0.0
        %2129 = vmatpush.msra.mxu0 0.0
        %2130 = vmatpush.msra.mxu0 0.0
        %2131 = vmatpush.msra.mxu0 0.0
        %2132 = vmatpush.msra.mxu0 0.0
        %2133 = vmatpush.msra.mxu0 0.0
        %2134 = vmatpush.msra.mxu0 0.0
        %2135 = vmatpush.msra.mxu0 0.0
        %2136 = vmatpush.msra.mxu0 0.0
        %2137 = vmatpush.msra.mxu0 0.0
        %2138 = vmatpush.msra.mxu0 0.0
        %2139 = vmatpush.msra.mxu0 0.0
        %2140 = vmatpush.msra.mxu0 0.0
        %2141 = vmatpush.msra.mxu0 %v2121
        %2142 = vmatmul.f32.gmra.mxu0 %v2124
        %v2143 = vpop.f32.mrf.mxu0
        %v2144 = vadd.f32 0.0, %v2143
        %2145 = vdwg.mxu0
        %v2146 = vpack.c.bf16 %v2144, %v2118
        %2147 = vrot.lane.b32.xlu0 %v1943, 112
        %v2148 = vpop.permute.xlu0 %2147
        %2149 = vrot.lane.b32.xlu0 %v1997, 112
        %v2150 = vpop.permute.xlu0 %2149
        %v2151 = vsel %vm1191, %v2148, 0
        %v2153 = vsel %vm1191, %v2150, 0
        %2155 = vmatpush.xpose.msra.mxu0 0.0
        %2156 = vmatpush.xpose.msra.mxu0 0.0
        %2157 = vmatpush.xpose.msra.mxu0 0.0
        %2158 = vmatpush.xpose.msra.mxu0 0.0
        %2159 = vmatpush.xpose.msra.mxu0 0.0
        %2160 = vmatpush.xpose.msra.mxu0 0.0
        %2161 = vmatpush.xpose.msra.mxu0 0.0
        %2162 = vmatpush.xpose.msra.mxu0 0.0
        %2163 = vmatpush.xpose.msra.mxu0 0.0
        %2164 = vmatpush.xpose.msra.mxu0 0.0
        %2165 = vmatpush.xpose.msra.mxu0 0.0
        %2166 = vmatpush.xpose.msra.mxu0 0.0
        %2167 = vmatpush.xpose.msra.mxu0 0.0
        %2168 = vmatpush.xpose.msra.mxu0 0.0
        %2169 = vmatpush.xpose.msra.mxu0 0.0
        %2170 = vmatpush.xpose.msra.mxu0 %v2153
        %2171 = vmatmul.f32.gmra.mxu0 %v2151
        %v2172 = vpop.f32.mrf.mxu0
        %v2173 = vadd.f32 0.0, %v2172
        %2174 = vdwg.mxu0
        %2175 = vrot.lane.b32.xlu0 %v1945, 112
        %v2176 = vpop.permute.xlu0 %2175
        %2177 = vrot.lane.b32.xlu0 %v1999, 112
        %v2178 = vpop.permute.xlu0 %2177
        %v2179 = vsel %vm1191, %v2176, 0
        %v2181 = vsel %vm1191, %v2178, 0
        %2183 = vmatpush.xpose.msra.mxu0 0.0
        %2184 = vmatpush.xpose.msra.mxu0 0.0
        %2185 = vmatpush.xpose.msra.mxu0 0.0
        %2186 = vmatpush.xpose.msra.mxu0 0.0
        %2187 = vmatpush.xpose.msra.mxu0 0.0
        %2188 = vmatpush.xpose.msra.mxu0 0.0
        %2189 = vmatpush.xpose.msra.mxu0 0.0
        %2190 = vmatpush.xpose.msra.mxu0 0.0
        %2191 = vmatpush.xpose.msra.mxu0 0.0
        %2192 = vmatpush.xpose.msra.mxu0 0.0
        %2193 = vmatpush.xpose.msra.mxu0 0.0
        %2194 = vmatpush.xpose.msra.mxu0 0.0
        %2195 = vmatpush.xpose.msra.mxu0 0.0
        %2196 = vmatpush.xpose.msra.mxu0 0.0
        %2197 = vmatpush.xpose.msra.mxu0 0.0
        %2198 = vmatpush.xpose.msra.mxu0 %v2181
        %2199 = vmatmul.f32.gmra.mxu0 %v2179
        %v2200 = vpop.f32.mrf.mxu0
        %v2201 = vadd.f32 0.0, %v2200
        %2202 = vdwg.mxu0
        %v2203 = vmul.f32 %v2173, 0.25
        %v2204 = vmul.f32 %v2201, 0.25
        %v2205 = vadd.f32 %v2203, %v2066
        %v2206 = vadd.f32 %v2204, %v2067
        %v2207 = vsel %vm1247, %v2205, -inf
        %2208 = vmax.xlane.f32.xlu0 %v2207
        %v2209 = vpop.xlane.xlu0 %2208
        %v2210 = vsel %vm1247, %v2206, -inf
        %2211 = vmax.xlane.f32.xlu0 %v2210
        %v2212 = vpop.xlane.xlu0 %2211
        %v2213 = vsub.f32 %v2205, %v2209
        %v2214 = vsub.f32 %v2206, %v2212
        %v2215 = vmul.f32 %v2213, 1.442695
        %v2216 = vpow.pop %v2215
        %v2217 = vmul.f32 %v2214, 1.442695
        %v2218 = vpow.pop %v2217
        %v2219 = vsel %vm1247, %v2216, 0.0
        %2220 = vadd.xlane.f32.xlu0 %v2219
        %v2221 = vpop.xlane.xlu0 %2220
        %v2222 = vsel %vm1247, %v2218, 0.0
        %2223 = vadd.xlane.f32.xlu0 %v2222
        %v2224 = vpop.xlane.xlu0 %2223
        %v2225 = vrcp.pop %v2221
        %v2226 = vrcp.pop %v2224
        %v2227 = vmul.f32 %v2216, %v2225
        %v2228 = vmul.f32 %v2218, %v2226
        %2229 = vrot.lane.b32.xlu0 %v1997, 48
        %v2230 = vpop.permute.xlu0 %2229
        %v2233 = vsel %vm1247, %v2227, 0
        %2235 = vmatpush.msra.mxu0 0.0
        %2236 = vmatpush.msra.mxu0 0.0
        %2237 = vmatpush.msra.mxu0 0.0
        %2238 = vmatpush.msra.mxu0 0.0
        %2239 = vmatpush.msra.mxu0 0.0
        %2240 = vmatpush.msra.mxu0 0.0
        %2241 = vmatpush.msra.mxu0 0.0
        %2242 = vmatpush.msra.mxu0 0.0
        %2243 = vmatpush.msra.mxu0 0.0
        %2244 = vmatpush.msra.mxu0 0.0
        %2245 = vmatpush.msra.mxu0 0.0
        %2246 = vmatpush.msra.mxu0 0.0
        %2247 = vmatpush.msra.mxu0 0.0
        %2248 = vmatpush.msra.mxu0 0.0
        %2249 = vmatpush.msra.mxu0 0.0
        %2250 = vmatpush.msra.mxu0 %v2230
        %2251 = vmatmul.f32.gmra.mxu0 %v2233
        %v2252 = vpop.f32.mrf.mxu0
        %v2253 = vadd.f32 0.0, %v2252
        %2254 = vdwg.mxu0
        %2255 = vrot.lane.b32.xlu0 %v1999, 48
        %v2256 = vpop.permute.xlu0 %2255
        %v2259 = vsel %vm1247, %v2228, 0
        %2261 = vmatpush.msra.mxu0 0.0
        %2262 = vmatpush.msra.mxu0 0.0
        %2263 = vmatpush.msra.mxu0 0.0
        %2264 = vmatpush.msra.mxu0 0.0
        %2265 = vmatpush.msra.mxu0 0.0
        %2266 = vmatpush.msra.mxu0 0.0
        %2267 = vmatpush.msra.mxu0 0.0
        %2268 = vmatpush.msra.mxu0 0.0
        %2269 = vmatpush.msra.mxu0 0.0
        %2270 = vmatpush.msra.mxu0 0.0
        %2271 = vmatpush.msra.mxu0 0.0
        %2272 = vmatpush.msra.mxu0 0.0
        %2273 = vmatpush.msra.mxu0 0.0
        %2274 = vmatpush.msra.mxu0 0.0
        %2275 = vmatpush.msra.mxu0 0.0
        %2276 = vmatpush.msra.mxu0 %v2256
        %2277 = vmatmul.f32.gmra.mxu0 %v2259
        %v2278 = vpop.f32.mrf.mxu0
        %v2279 = vadd.f32 0.0, %v2278
        %2280 = vdwg.mxu0
        %v2281 = vpack.c.bf16 %v2279, %v2253
        %v2284 = vunpack.c.l.b16 %v2006
        %v2285 = vunpack.c.l.b16 %v2007
        %v2286 = vpack.c.b16 %v2285, %v2284
        %v2289 = vsel %vm1191, %v2281, 0
        %2291 = vmatpush.bf16.msra.mxu0 0
        %2292 = vmatpush.bf16.msra.mxu0 0
        %2293 = vmatpush.bf16.msra.mxu0 0
        %2294 = vmatpush.bf16.msra.mxu0 0
        %2295 = vmatpush.bf16.msra.mxu0 0
        %2296 = vmatpush.bf16.msra.mxu0 0
        %2297 = vmatpush.bf16.msra.mxu0 0
        %2298 = vmatpush.bf16.msra.mxu0 %v2286
        %2299 = vmatmul.bf16.gmra.mxu0 %v2289
        %v2300 = vpop.f32.mrf.mxu0
        %v2301 = vadd.f32 0.0, %v2300
        %v2302 = vpop.f32.mrf.mxu0
        %v2303 = vadd.f32 0.0, %v2302
        %2304 = vdwg.mxu0
        %v2307 = vunpack.c.l.b16 %v2004
        %v2308 = vunpack.c.l.b16 %v2005
        %v2309 = vpack.c.b16 %v2308, %v2307
        %v2312 = vsel %vm1191, %v2146, 0
        %2314 = vmatpush.bf16.msra.mxu0 0
        %2315 = vmatpush.bf16.msra.mxu0 0
        %2316 = vmatpush.bf16.msra.mxu0 0
        %2317 = vmatpush.bf16.msra.mxu0 0
        %2318 = vmatpush.bf16.msra.mxu0 0
        %2319 = vmatpush.bf16.msra.mxu0 0
        %2320 = vmatpush.bf16.msra.mxu0 0
        %2321 = vmatpush.bf16.msra.mxu0 %v2309
        %2322 = vmatmul.bf16.gmra.mxu0 %v2312
        %v2323 = vpop.f32.mrf.mxu0
        %v2324 = vadd.f32 %v2301, %v2323
        %v2325 = vpop.f32.mrf.mxu0
        %v2326 = vadd.f32 %v2303, %v2325
        %2327 = vdwg.mxu0
        %2328 = vrot.lane.b32.xlu0 %v1943, 96
        %v2329 = vpop.permute.xlu0 %2328
        %2330 = vrot.lane.b32.xlu0 %v1997, 96
        %v2331 = vpop.permute.xlu0 %2330
        %v2332 = vsel %vm1191, %v2329, 0
        %v2334 = vsel %vm1191, %v2331, 0
        %2336 = vmatpush.xpose.msra.mxu0 0.0
        %2337 = vmatpush.xpose.msra.mxu0 0.0
        %2338 = vmatpush.xpose.msra.mxu0 0.0
        %2339 = vmatpush.xpose.msra.mxu0 0.0
        %2340 = vmatpush.xpose.msra.mxu0 0.0
        %2341 = vmatpush.xpose.msra.mxu0 0.0
        %2342 = vmatpush.xpose.msra.mxu0 0.0
        %2343 = vmatpush.xpose.msra.mxu0 0.0
        %2344 = vmatpush.xpose.msra.mxu0 0.0
        %2345 = vmatpush.xpose.msra.mxu0 0.0
        %2346 = vmatpush.xpose.msra.mxu0 0.0
        %2347 = vmatpush.xpose.msra.mxu0 0.0
        %2348 = vmatpush.xpose.msra.mxu0 0.0
        %2349 = vmatpush.xpose.msra.mxu0 0.0
        %2350 = vmatpush.xpose.msra.mxu0 0.0
        %2351 = vmatpush.xpose.msra.mxu0 %v2334
        %2352 = vmatmul.f32.gmra.mxu0 %v2332
        %v2353 = vpop.f32.mrf.mxu0
        %v2354 = vadd.f32 0.0, %v2353
        %2355 = vdwg.mxu0
        %2356 = vrot.lane.b32.xlu0 %v1945, 96
        %v2357 = vpop.permute.xlu0 %2356
        %2358 = vrot.lane.b32.xlu0 %v1999, 96
        %v2359 = vpop.permute.xlu0 %2358
        %v2360 = vsel %vm1191, %v2357, 0
        %v2362 = vsel %vm1191, %v2359, 0
        %2364 = vmatpush.xpose.msra.mxu0 0.0
        %2365 = vmatpush.xpose.msra.mxu0 0.0
        %2366 = vmatpush.xpose.msra.mxu0 0.0
        %2367 = vmatpush.xpose.msra.mxu0 0.0
        %2368 = vmatpush.xpose.msra.mxu0 0.0
        %2369 = vmatpush.xpose.msra.mxu0 0.0
        %2370 = vmatpush.xpose.msra.mxu0 0.0
        %2371 = vmatpush.xpose.msra.mxu0 0.0
        %2372 = vmatpush.xpose.msra.mxu0 0.0
        %2373 = vmatpush.xpose.msra.mxu0 0.0
        %2374 = vmatpush.xpose.msra.mxu0 0.0
        %2375 = vmatpush.xpose.msra.mxu0 0.0
        %2376 = vmatpush.xpose.msra.mxu0 0.0
        %2377 = vmatpush.xpose.msra.mxu0 0.0
        %2378 = vmatpush.xpose.msra.mxu0 0.0
        %2379 = vmatpush.xpose.msra.mxu0 %v2362
        %2380 = vmatmul.f32.gmra.mxu0 %v2360
        %v2381 = vpop.f32.mrf.mxu0
        %v2382 = vadd.f32 0.0, %v2381
        %2383 = vdwg.mxu0
        %v2384 = vmul.f32 %v2354, 0.25
        %v2385 = vmul.f32 %v2382, 0.25
        %v2386 = vadd.f32 %v2384, %v2066
        %v2387 = vadd.f32 %v2385, %v2067
        %v2388 = vsel %vm1247, %v2386, -inf
        %2389 = vmax.xlane.f32.xlu0 %v2388
        %v2390 = vpop.xlane.xlu0 %2389
        %v2391 = vsel %vm1247, %v2387, -inf
        %2392 = vmax.xlane.f32.xlu0 %v2391
        %v2393 = vpop.xlane.xlu0 %2392
        %v2394 = vsub.f32 %v2386, %v2390
        %v2395 = vsub.f32 %v2387, %v2393
        %v2396 = vmul.f32 %v2394, 1.442695
        %v2397 = vpow.pop %v2396
        %v2398 = vmul.f32 %v2395, 1.442695
        %v2399 = vpow.pop %v2398
        %v2400 = vsel %vm1247, %v2397, 0.0
        %2401 = vadd.xlane.f32.xlu0 %v2400
        %v2402 = vpop.xlane.xlu0 %2401
        %v2403 = vsel %vm1247, %v2399, 0.0
        %2404 = vadd.xlane.f32.xlu0 %v2403
        %v2405 = vpop.xlane.xlu0 %2404
        %v2406 = vrcp.pop %v2402
        %v2407 = vrcp.pop %v2405
        %v2408 = vmul.f32 %v2397, %v2406
        %v2409 = vmul.f32 %v2399, %v2407
        %2410 = vrot.lane.b32.xlu0 %v1997, 32
        %v2411 = vpop.permute.xlu0 %2410
        %v2414 = vsel %vm1247, %v2408, 0
        %2416 = vmatpush.msra.mxu0 0.0
        %2417 = vmatpush.msra.mxu0 0.0
        %2418 = vmatpush.msra.mxu0 0.0
        %2419 = vmatpush.msra.mxu0 0.0
        %2420 = vmatpush.msra.mxu0 0.0
        %2421 = vmatpush.msra.mxu0 0.0
        %2422 = vmatpush.msra.mxu0 0.0
        %2423 = vmatpush.msra.mxu0 0.0
        %2424 = vmatpush.msra.mxu0 0.0
        %2425 = vmatpush.msra.mxu0 0.0
        %2426 = vmatpush.msra.mxu0 0.0
        %2427 = vmatpush.msra.mxu0 0.0
        %2428 = vmatpush.msra.mxu0 0.0
        %2429 = vmatpush.msra.mxu0 0.0
        %2430 = vmatpush.msra.mxu0 0.0
        %2431 = vmatpush.msra.mxu0 %v2411
        %2432 = vmatmul.f32.gmra.mxu0 %v2414
        %v2433 = vpop.f32.mrf.mxu0
        %v2434 = vadd.f32 0.0, %v2433
        %2435 = vdwg.mxu0
        %2436 = vrot.lane.b32.xlu0 %v1999, 32
        %v2437 = vpop.permute.xlu0 %2436
        %v2440 = vsel %vm1247, %v2409, 0
        %2442 = vmatpush.msra.mxu0 0.0
        %2443 = vmatpush.msra.mxu0 0.0
        %2444 = vmatpush.msra.mxu0 0.0
        %2445 = vmatpush.msra.mxu0 0.0
        %2446 = vmatpush.msra.mxu0 0.0
        %2447 = vmatpush.msra.mxu0 0.0
        %2448 = vmatpush.msra.mxu0 0.0
        %2449 = vmatpush.msra.mxu0 0.0
        %2450 = vmatpush.msra.mxu0 0.0
        %2451 = vmatpush.msra.mxu0 0.0
        %2452 = vmatpush.msra.mxu0 0.0
        %2453 = vmatpush.msra.mxu0 0.0
        %2454 = vmatpush.msra.mxu0 0.0
        %2455 = vmatpush.msra.mxu0 0.0
        %2456 = vmatpush.msra.mxu0 0.0
        %2457 = vmatpush.msra.mxu0 %v2437
        %2458 = vmatmul.f32.gmra.mxu0 %v2440
        %v2459 = vpop.f32.mrf.mxu0
        %v2460 = vadd.f32 0.0, %v2459
        %2461 = vdwg.mxu0
        %v2462 = vpack.c.bf16 %v2460, %v2434
        %v2465 = vunpack.c.l.b16 %v2008
        %v2466 = vunpack.c.l.b16 %v2009
        %v2467 = vpack.c.b16 %v2466, %v2465
        %v2470 = vsel %vm1191, %v2462, 0
        %2472 = vmatpush.bf16.msra.mxu0 0
        %2473 = vmatpush.bf16.msra.mxu0 0
        %2474 = vmatpush.bf16.msra.mxu0 0
        %2475 = vmatpush.bf16.msra.mxu0 0
        %2476 = vmatpush.bf16.msra.mxu0 0
        %2477 = vmatpush.bf16.msra.mxu0 0
        %2478 = vmatpush.bf16.msra.mxu0 0
        %2479 = vmatpush.bf16.msra.mxu0 %v2467
        %2480 = vmatmul.bf16.gmra.mxu0 %v2470
        %v2481 = vpop.f32.mrf.mxu0
        %v2482 = vadd.f32 0.0, %v2481
        %v2483 = vpop.f32.mrf.mxu0
        %v2484 = vadd.f32 0.0, %v2483
        %2485 = vdwg.mxu0
        %v2486 = vadd.f32 %v2324, %v2482
        %v2487 = vadd.f32 %v2326, %v2484
        %2488 = vrot.lane.b32.xlu0 %v1943, 80
        %v2489 = vpop.permute.xlu0 %2488
        %2490 = vrot.lane.b32.xlu0 %v1997, 80
        %v2491 = vpop.permute.xlu0 %2490
        %v2492 = vsel %vm1191, %v2489, 0
        %v2494 = vsel %vm1191, %v2491, 0
        %2496 = vmatpush.xpose.msra.mxu0 0.0
        %2497 = vmatpush.xpose.msra.mxu0 0.0
        %2498 = vmatpush.xpose.msra.mxu0 0.0
        %2499 = vmatpush.xpose.msra.mxu0 0.0
        %2500 = vmatpush.xpose.msra.mxu0 0.0
        %2501 = vmatpush.xpose.msra.mxu0 0.0
        %2502 = vmatpush.xpose.msra.mxu0 0.0
        %2503 = vmatpush.xpose.msra.mxu0 0.0
        %2504 = vmatpush.xpose.msra.mxu0 0.0
        %2505 = vmatpush.xpose.msra.mxu0 0.0
        %2506 = vmatpush.xpose.msra.mxu0 0.0
        %2507 = vmatpush.xpose.msra.mxu0 0.0
        %2508 = vmatpush.xpose.msra.mxu0 0.0
        %2509 = vmatpush.xpose.msra.mxu0 0.0
        %2510 = vmatpush.xpose.msra.mxu0 0.0
        %2511 = vmatpush.xpose.msra.mxu0 %v2494
        %2512 = vmatmul.f32.gmra.mxu0 %v2492
        %v2513 = vpop.f32.mrf.mxu0
        %v2514 = vadd.f32 0.0, %v2513
        %2515 = vdwg.mxu0
        %2516 = vrot.lane.b32.xlu0 %v1945, 80
        %v2517 = vpop.permute.xlu0 %2516
        %2518 = vrot.lane.b32.xlu0 %v1999, 80
        %v2519 = vpop.permute.xlu0 %2518
        %v2520 = vsel %vm1191, %v2517, 0
        %v2522 = vsel %vm1191, %v2519, 0
        %2524 = vmatpush.xpose.msra.mxu0 0.0
        %2525 = vmatpush.xpose.msra.mxu0 0.0
        %2526 = vmatpush.xpose.msra.mxu0 0.0
        %2527 = vmatpush.xpose.msra.mxu0 0.0
        %2528 = vmatpush.xpose.msra.mxu0 0.0
        %2529 = vmatpush.xpose.msra.mxu0 0.0
        %2530 = vmatpush.xpose.msra.mxu0 0.0
        %2531 = vmatpush.xpose.msra.mxu0 0.0
        %2532 = vmatpush.xpose.msra.mxu0 0.0
        %2533 = vmatpush.xpose.msra.mxu0 0.0
        %2534 = vmatpush.xpose.msra.mxu0 0.0
        %2535 = vmatpush.xpose.msra.mxu0 0.0
        %2536 = vmatpush.xpose.msra.mxu0 0.0
        %2537 = vmatpush.xpose.msra.mxu0 0.0
        %2538 = vmatpush.xpose.msra.mxu0 0.0
        %2539 = vmatpush.xpose.msra.mxu0 %v2522
        %2540 = vmatmul.f32.gmra.mxu0 %v2520
        %v2541 = vpop.f32.mrf.mxu0
        %v2542 = vadd.f32 0.0, %v2541
        %2543 = vdwg.mxu0
        %v2544 = vmul.f32 %v2514, 0.25
        %v2545 = vmul.f32 %v2542, 0.25
        %v2546 = vadd.f32 %v2544, %v2066
        %v2547 = vadd.f32 %v2545, %v2067
        %v2548 = vsel %vm1247, %v2546, -inf
        %2549 = vmax.xlane.f32.xlu0 %v2548
        %v2550 = vpop.xlane.xlu0 %2549
        %v2551 = vsel %vm1247, %v2547, -inf
        %2552 = vmax.xlane.f32.xlu0 %v2551
        %v2553 = vpop.xlane.xlu0 %2552
        %v2554 = vsub.f32 %v2546, %v2550
        %v2555 = vsub.f32 %v2547, %v2553
        %v2556 = vmul.f32 %v2554, 1.442695
        %v2557 = vpow.pop %v2556
        %v2558 = vmul.f32 %v2555, 1.442695
        %v2559 = vpow.pop %v2558
        %v2560 = vsel %vm1247, %v2557, 0.0
        %2561 = vadd.xlane.f32.xlu0 %v2560
        %v2562 = vpop.xlane.xlu0 %2561
        %v2563 = vsel %vm1247, %v2559, 0.0
        %2564 = vadd.xlane.f32.xlu0 %v2563
        %v2565 = vpop.xlane.xlu0 %2564
        %v2566 = vrcp.pop %v2562
        %v2567 = vrcp.pop %v2565
        %v2568 = vmul.f32 %v2557, %v2566
        %v2569 = vmul.f32 %v2559, %v2567
        %2570 = vrot.lane.b32.xlu0 %v1997, 16
        %v2571 = vpop.permute.xlu0 %2570
        %v2574 = vsel %vm1247, %v2568, 0
        %2576 = vmatpush.msra.mxu0 0.0
        %2577 = vmatpush.msra.mxu0 0.0
        %2578 = vmatpush.msra.mxu0 0.0
        %2579 = vmatpush.msra.mxu0 0.0
        %2580 = vmatpush.msra.mxu0 0.0
        %2581 = vmatpush.msra.mxu0 0.0
        %2582 = vmatpush.msra.mxu0 0.0
        %2583 = vmatpush.msra.mxu0 0.0
        %2584 = vmatpush.msra.mxu0 0.0
        %2585 = vmatpush.msra.mxu0 0.0
        %2586 = vmatpush.msra.mxu0 0.0
        %2587 = vmatpush.msra.mxu0 0.0
        %2588 = vmatpush.msra.mxu0 0.0
        %2589 = vmatpush.msra.mxu0 0.0
        %2590 = vmatpush.msra.mxu0 0.0
        %2591 = vmatpush.msra.mxu0 %v2571
        %2592 = vmatmul.f32.gmra.mxu0 %v2574
        %v2593 = vpop.f32.mrf.mxu0
        %v2594 = vadd.f32 0.0, %v2593
        %2595 = vdwg.mxu0
        %2596 = vrot.lane.b32.xlu0 %v1999, 16
        %v2597 = vpop.permute.xlu0 %2596
        %v2600 = vsel %vm1247, %v2569, 0
        %2602 = vmatpush.msra.mxu0 0.0
        %2603 = vmatpush.msra.mxu0 0.0
        %2604 = vmatpush.msra.mxu0 0.0
        %2605 = vmatpush.msra.mxu0 0.0
        %2606 = vmatpush.msra.mxu0 0.0
        %2607 = vmatpush.msra.mxu0 0.0
        %2608 = vmatpush.msra.mxu0 0.0
        %2609 = vmatpush.msra.mxu0 0.0
        %2610 = vmatpush.msra.mxu0 0.0
        %2611 = vmatpush.msra.mxu0 0.0
        %2612 = vmatpush.msra.mxu0 0.0
        %2613 = vmatpush.msra.mxu0 0.0
        %2614 = vmatpush.msra.mxu0 0.0
        %2615 = vmatpush.msra.mxu0 0.0
        %2616 = vmatpush.msra.mxu0 0.0
        %2617 = vmatpush.msra.mxu0 %v2597
        %2618 = vmatmul.f32.gmra.mxu0 %v2600
        %v2619 = vpop.f32.mrf.mxu0
        %v2620 = vadd.f32 0.0, %v2619
        %2621 = vdwg.mxu0
        %v2622 = vpack.c.bf16 %v2620, %v2594
        %v2625 = vunpack.c.l.b16 %v2010
        %v2626 = vunpack.c.l.b16 %v2011
        %v2627 = vpack.c.b16 %v2626, %v2625
        %v2630 = vsel %vm1191, %v2622, 0
        %2632 = vmatpush.bf16.msra.mxu0 0
        %2633 = vmatpush.bf16.msra.mxu0 0
        %2634 = vmatpush.bf16.msra.mxu0 0
        %2635 = vmatpush.bf16.msra.mxu0 0
        %2636 = vmatpush.bf16.msra.mxu0 0
        %2637 = vmatpush.bf16.msra.mxu0 0
        %2638 = vmatpush.bf16.msra.mxu0 0
        %2639 = vmatpush.bf16.msra.mxu0 %v2627
        %2640 = vmatmul.bf16.gmra.mxu0 %v2630
        %v2641 = vpop.f32.mrf.mxu0
        %v2642 = vadd.f32 0.0, %v2641
        %v2643 = vpop.f32.mrf.mxu0
        %v2644 = vadd.f32 0.0, %v2643
        %2645 = vdwg.mxu0
        %v2646 = vadd.f32 %v2486, %v2642
        %v2647 = vadd.f32 %v2487, %v2644
        %v2648 = vld [vmem:[%s1045] sm:$0x1]
        %v2650 = vperm.slane %v2648, 0
        %v2652 = vadd.f32 %v2646, %v2650
        %v2653 = vadd.f32 %v2647, %v2650
        %v2654 = vadd.f32 %v2652, %v1889
        %v2655 = vadd.f32 %v2653, %v1890
        %v2656 = vld [vmem:[%s1048] sm:$0x1]
        %v2657 = vld [vmem:[%s1051] sm:$0x1]
        %v2658 = vsel %vm1148, %v2654, 0.0
        %2659 = vadd.xlane.f32.xlu0 %v2658
        %v2660 = vpop.xlane.xlu0 %2659
        %v2661 = vsel %vm1148, %v2655, 0.0
        %2662 = vadd.xlane.f32.xlu0 %v2661
        %v2663 = vpop.xlane.xlu0 %2662
        %v2664 = vmul.f32 %v2660, %v1842
        %v2665 = vmul.f32 %v2663, %v1842
        %v2666 = vsub.f32 %v2654, %v2664
        %v2667 = vsub.f32 %v2655, %v2665
        %v2668 = vmul.f32 %v2666, %v2666
        %v2669 = vmul.f32 %v2667, %v2667
        %v2670 = vsel %vm1148, %v2668, 0.0
        %2671 = vadd.xlane.f32.xlu0 %v2670
        %v2672 = vpop.xlane.xlu0 %2671
        %v2673 = vsel %vm1148, %v2669, 0.0
        %2674 = vadd.xlane.f32.xlu0 %v2673
        %v2675 = vpop.xlane.xlu0 %2674
        %v2676 = vmul.f32 %v2672, %v1842
        %v2677 = vmul.f32 %v2675, %v1842
        %v2678 = vadd.f32 %v2676, 1e-05
        %v2679 = vadd.f32 %v2677, 1e-05
        %v2680 = vrsqrt.pop %v2678
        %v2681 = vmul.f32 %v2680, %v2678
        %v2682 = vmul.f32 %v2681, %v2680
        %v2683 = vmul.f32 0.5, %v2682
        %v2684 = vsub.f32 1.5, %v2683
        %v2685 = vmul.f32 %v2680, %v2684
        %vm2686 = vweird.f32 %v2678
        %vm2687 = vweird.f32 %v2680
        %vm2688 = vmor %vm2686, %vm2687
        %v2689 = vsel %vm2688, %v2680, %v2685
        %v2690 = vrsqrt.pop %v2679
        %v2691 = vmul.f32 %v2690, %v2679
        %v2692 = vmul.f32 %v2691, %v2690
        %v2693 = vmul.f32 0.5, %v2692
        %v2694 = vsub.f32 1.5, %v2693
        %v2695 = vmul.f32 %v2690, %v2694
        %vm2696 = vweird.f32 %v2679
        %vm2697 = vweird.f32 %v2690
        %vm2698 = vmor %vm2696, %vm2697
        %v2699 = vsel %vm2698, %v2690, %v2695
        %v2700 = vmul.f32 %v2666, %v2689
        %v2701 = vmul.f32 %v2667, %v2699
        %v2703 = vperm.slane %v2656, 0
        %v2705 = vmul.f32 %v2700, %v2703
        %v2706 = vmul.f32 %v2701, %v2703
        %v2708 = vperm.slane %v2657, 0
        %v2710 = vadd.f32 %v2705, %v2708
        %v2711 = vadd.f32 %v2706, %v2708
        %v2712 = vpack.c.bf16 %v2711, %v2710
        %v2713 = vld [vmem:[%s1056] sm:$0xff]
        %v2714 = vld [vmem:[%s1056 + $0x8] sm:$0xff]
        %v2715 = vld [vmem:[%s1056 + $0x10] sm:$0xff]
        %v2716 = vld [vmem:[%s1056 + $0x18] sm:$0xff]
        %v2717 = vld [vmem:[%s1056 + $0x20] sm:$0xff]
        %v2718 = vld [vmem:[%s1056 + $0x28] sm:$0xff]
        %v2719 = vld [vmem:[%s1056 + $0x30] sm:$0xff]
        %v2720 = vld [vmem:[%s1056 + $0x38] sm:$0xff]
        %v2721 = vld [vmem:[%s1060] sm:$0x3]
        %v2723 = vperm.slane %v2721, 0
        %v2724 = vperm.slane %v2721, 1
        %v2735 = vunpack.c.l.b16 %v2713
        %v2736 = vunpack.c.h.b16 %v2713
        %v2737 = vunpack.c.l.b16 %v2714
        %v2738 = vunpack.c.h.b16 %v2714
        %v2739 = vunpack.c.l.b16 %v2715
        %v2740 = vunpack.c.h.b16 %v2715
        %v2741 = vunpack.c.l.b16 %v2716
        %v2742 = vunpack.c.h.b16 %v2716
        %v2743 = vunpack.c.l.b16 %v2717
        %v2744 = vunpack.c.h.b16 %v2717
        %v2745 = vunpack.c.l.b16 %v2718
        %v2746 = vunpack.c.h.b16 %v2718
        %v2747 = vunpack.c.l.b16 %v2719
        %v2748 = vunpack.c.h.b16 %v2719
        %v2749 = vunpack.c.l.b16 %v2720
        %v2750 = vunpack.c.h.b16 %v2720
        %v2751 = vpack.c.b16 %v2737, %v2735
        %v2752 = vpack.c.b16 %v2738, %v2736
        %v2753 = vpack.c.b16 %v2741, %v2739
        %v2754 = vpack.c.b16 %v2742, %v2740
        %v2755 = vpack.c.b16 %v2745, %v2743
        %v2756 = vpack.c.b16 %v2746, %v2744
        %v2757 = vpack.c.b16 %v2749, %v2747
        %v2758 = vpack.c.b16 %v2750, %v2748
        %v2768 = vsel %vm1148, %v2712, 0
        %2770 = vmatpush.bf16.msra.mxu0 0
        %2771 = vmatpush.bf16.msra.mxu0 0
        %2772 = vmatpush.bf16.msra.mxu0 0
        %2773 = vmatpush.bf16.msra.mxu0 0
        %2774 = vmatpush.bf16.msra.mxu0 %v2757
        %2775 = vmatpush.bf16.msra.mxu0 %v2755
        %2776 = vmatpush.bf16.msra.mxu0 %v2753
        %2777 = vmatpush.bf16.msra.mxu0 %v2751
        %2778 = vmatmul.bf16.gmra.mxu0 %v2768
        %v2779 = vpop.f32.mrf.mxu0
        %v2780 = vadd.f32 %v2723, %v2779
        %v2781 = vpop.f32.mrf.mxu0
        %v2782 = vadd.f32 %v2723, %v2781
        %2783 = vdwg.mxu0
        %2784 = vmatpush.bf16.msra.mxu0 0
        %2785 = vmatpush.bf16.msra.mxu0 0
        %2786 = vmatpush.bf16.msra.mxu0 0
        %2787 = vmatpush.bf16.msra.mxu0 0
        %2788 = vmatpush.bf16.msra.mxu0 %v2758
        %2789 = vmatpush.bf16.msra.mxu0 %v2756
        %2790 = vmatpush.bf16.msra.mxu0 %v2754
        %2791 = vmatpush.bf16.msra.mxu0 %v2752
        %2792 = vmatmul.bf16.gmra.mxu0 %v2768
        %v2793 = vpop.f32.mrf.mxu0
        %v2794 = vadd.f32 %v2724, %v2793
        %v2795 = vpop.f32.mrf.mxu0
        %v2796 = vadd.f32 %v2724, %v2795
        %2797 = vdwg.mxu0
        %v2798 = vmax.f32 %v2780, 0.0
        %v2799 = vmax.f32 %v2794, 0.0
        %v2800 = vmax.f32 %v2782, 0.0
        %v2801 = vmax.f32 %v2796, 0.0
        %v2802 = vpack.c.bf16 %v2800, %v2798
        %v2803 = vpack.c.bf16 %v2801, %v2799
        %v2804 = vld [vmem:[%s1065] sm:$0xf]
        %v2805 = vld [vmem:[%s1065 + $0x4] sm:$0xf]
        %v2806 = vld [vmem:[%s1065 + $0x8] sm:$0xf]
        %v2807 = vld [vmem:[%s1065 + $0xc] sm:$0xf]
        %v2808 = vld [vmem:[%s1065 + $0x10] sm:$0xf]
        %v2809 = vld [vmem:[%s1065 + $0x14] sm:$0xf]
        %v2810 = vld [vmem:[%s1065 + $0x18] sm:$0xf]
        %v2811 = vld [vmem:[%s1065 + $0x1c] sm:$0xf]
        %v2812 = vld [vmem:[%s1065 + $0x20] sm:$0xf]
        %v2813 = vld [vmem:[%s1065 + $0x24] sm:$0xf]
        %v2814 = vld [vmem:[%s1065 + $0x28] sm:$0xf]
        %v2815 = vld [vmem:[%s1065 + $0x2c] sm:$0xf]
        %v2816 = vld [vmem:[%s1065 + $0x30] sm:$0xf]
        %v2817 = vld [vmem:[%s1065 + $0x34] sm:$0xf]
        %v2818 = vld [vmem:[%s1065 + $0x38] sm:$0xf]
        %v2819 = vld [vmem:[%s1065 + $0x3c] sm:$0xf]
        %v2820 = vld [vmem:[%s1065 + $0x40] sm:$0xf]
        %v2821 = vld [vmem:[%s1065 + $0x44] sm:$0xf]
        %v2822 = vld [vmem:[%s1065 + $0x48] sm:$0xf]
        %v2823 = vld [vmem:[%s1065 + $0x4c] sm:$0xf]
        %v2824 = vld [vmem:[%s1065 + $0x50] sm:$0xf]
        %v2825 = vld [vmem:[%s1065 + $0x54] sm:$0xf]
        %v2826 = vld [vmem:[%s1065 + $0x58] sm:$0xf]
        %v2827 = vld [vmem:[%s1065 + $0x5c] sm:$0xf]
        %v2828 = vld [vmem:[%s1065 + $0x60] sm:$0xf]
        %v2829 = vld [vmem:[%s1065 + $0x64] sm:$0xf]
        %v2830 = vld [vmem:[%s1065 + $0x68] sm:$0xf]
        %v2831 = vld [vmem:[%s1065 + $0x6c] sm:$0xf]
        %v2832 = vld [vmem:[%s1065 + $0x70] sm:$0xf]
        %v2833 = vld [vmem:[%s1065 + $0x74] sm:$0xf]
        %v2834 = vld [vmem:[%s1065 + $0x78] sm:$0xf]
        %v2835 = vld [vmem:[%s1065 + $0x7c] sm:$0xf]
        %v2868 = vunpack.c.l.b16 %v2804
        %v2869 = vunpack.c.l.b16 %v2805
        %v2870 = vunpack.c.l.b16 %v2806
        %v2871 = vunpack.c.l.b16 %v2807
        %v2872 = vunpack.c.l.b16 %v2808
        %v2873 = vunpack.c.l.b16 %v2809
        %v2874 = vunpack.c.l.b16 %v2810
        %v2875 = vunpack.c.l.b16 %v2811
        %v2876 = vunpack.c.l.b16 %v2812
        %v2877 = vunpack.c.l.b16 %v2813
        %v2878 = vunpack.c.l.b16 %v2814
        %v2879 = vunpack.c.l.b16 %v2815
        %v2880 = vunpack.c.l.b16 %v2816
        %v2881 = vunpack.c.l.b16 %v2817
        %v2882 = vunpack.c.l.b16 %v2818
        %v2883 = vunpack.c.l.b16 %v2819
        %v2884 = vunpack.c.l.b16 %v2820
        %v2885 = vunpack.c.l.b16 %v2821
        %v2886 = vunpack.c.l.b16 %v2822
        %v2887 = vunpack.c.l.b16 %v2823
        %v2888 = vunpack.c.l.b16 %v2824
        %v2889 = vunpack.c.l.b16 %v2825
        %v2890 = vunpack.c.l.b16 %v2826
        %v2891 = vunpack.c.l.b16 %v2827
        %v2892 = vunpack.c.l.b16 %v2828
        %v2893 = vunpack.c.l.b16 %v2829
        %v2894 = vunpack.c.l.b16 %v2830
        %v2895 = vunpack.c.l.b16 %v2831
        %v2896 = vunpack.c.l.b16 %v2832
        %v2897 = vunpack.c.l.b16 %v2833
        %v2898 = vunpack.c.l.b16 %v2834
        %v2899 = vunpack.c.l.b16 %v2835
        %v2900 = vpack.c.b16 %v2869, %v2868
        %v2901 = vpack.c.b16 %v2871, %v2870
        %v2902 = vpack.c.b16 %v2873, %v2872
        %v2903 = vpack.c.b16 %v2875, %v2874
        %v2904 = vpack.c.b16 %v2877, %v2876
        %v2905 = vpack.c.b16 %v2879, %v2878
        %v2906 = vpack.c.b16 %v2881, %v2880
        %v2907 = vpack.c.b16 %v2883, %v2882
        %v2908 = vpack.c.b16 %v2885, %v2884
        %v2909 = vpack.c.b16 %v2887, %v2886
        %v2910 = vpack.c.b16 %v2889, %v2888
        %v2911 = vpack.c.b16 %v2891, %v2890
        %v2912 = vpack.c.b16 %v2893, %v2892
        %v2913 = vpack.c.b16 %v2895, %v2894
        %v2914 = vpack.c.b16 %v2897, %v2896
        %v2915 = vpack.c.b16 %v2899, %v2898
        %2932 = vmatpush.bf16.msra.mxu0 %v2907
        %2933 = vmatpush.bf16.msra.mxu0 %v2906
        %2934 = vmatpush.bf16.msra.mxu0 %v2905
        %2935 = vmatpush.bf16.msra.mxu0 %v2904
        %2936 = vmatpush.bf16.msra.mxu0 %v2903
        %2937 = vmatpush.bf16.msra.mxu0 %v2902
        %2938 = vmatpush.bf16.msra.mxu0 %v2901
        %2939 = vmatpush.bf16.msra.mxu0 %v2900
        %2940 = vmatmul.bf16.gmra.mxu0 %v2802
        %v2941 = vpop.f32.mrf.mxu0
        %v2942 = vadd.f32 0.0, %v2941
        %v2943 = vpop.f32.mrf.mxu0
        %v2944 = vadd.f32 0.0, %v2943
        %2945 = vdwg.mxu0
        %2946 = vmatpush.bf16.msra.mxu0 %v2915
        %2947 = vmatpush.bf16.msra.mxu0 %v2914
        %2948 = vmatpush.bf16.msra.mxu0 %v2913
        %2949 = vmatpush.bf16.msra.mxu0 %v2912
        %2950 = vmatpush.bf16.msra.mxu0 %v2911
        %2951 = vmatpush.bf16.msra.mxu0 %v2910
        %2952 = vmatpush.bf16.msra.mxu0 %v2909
        %2953 = vmatpush.bf16.msra.mxu0 %v2908
        %2954 = vmatmul.bf16.gmra.mxu0 %v2803
        %v2955 = vpop.f32.mrf.mxu0
        %v2956 = vadd.f32 %v2942, %v2955
        %v2957 = vpop.f32.mrf.mxu0
        %v2958 = vadd.f32 %v2944, %v2957
        %2959 = vdwg.mxu0
        %v2960 = vadd.f32 %v2710, %v2956
        %v2961 = vadd.f32 %v2711, %v2958
        %v2962 = vld [vmem:[%s1068] sm:$0x1]
        %v2964 = vperm.slane %v2962, 0
        %v2966 = vadd.f32 %v2960, %v2964
        %v2967 = vadd.f32 %v2961, %v2964
        %v2968 = vld [vmem:[%s1071] sm:$0x1]
        %v2969 = vld [vmem:[%s1074] sm:$0x1]
        %v2970 = vsel %vm1148, %v2966, 0.0
        %2971 = vadd.xlane.f32.xlu0 %v2970
        %v2972 = vpop.xlane.xlu0 %2971
        %v2973 = vsel %vm1148, %v2967, 0.0
        %2974 = vadd.xlane.f32.xlu0 %v2973
        %v2975 = vpop.xlane.xlu0 %2974
        %v2976 = vmul.f32 %v2972, %v1842
        %v2977 = vmul.f32 %v2975, %v1842
        %v2978 = vsub.f32 %v2966, %v2976
        %v2979 = vsub.f32 %v2967, %v2977
        %v2980 = vmul.f32 %v2978, %v2978
        %v2981 = vmul.f32 %v2979, %v2979
        %v2982 = vsel %vm1148, %v2980, 0.0
        %2983 = vadd.xlane.f32.xlu0 %v2982
        %v2984 = vpop.xlane.xlu0 %2983
        %v2985 = vsel %vm1148, %v2981, 0.0
        %2986 = vadd.xlane.f32.xlu0 %v2985
        %v2987 = vpop.xlane.xlu0 %2986
        %v2988 = vmul.f32 %v2984, %v1842
        %v2989 = vmul.f32 %v2987, %v1842
        %v2990 = vadd.f32 %v2988, 1e-05
        %v2991 = vadd.f32 %v2989, 1e-05
        %v2992 = vrsqrt.pop %v2990
        %v2993 = vmul.f32 %v2992, %v2990
        %v2994 = vmul.f32 %v2993, %v2992
        %v2995 = vmul.f32 0.5, %v2994
        %v2996 = vsub.f32 1.5, %v2995
        %v2997 = vmul.f32 %v2992, %v2996
        %vm2998 = vweird.f32 %v2990
        %vm2999 = vweird.f32 %v2992
        %vm3000 = vmor %vm2998, %vm2999
        %v3001 = vsel %vm3000, %v2992, %v2997
        %v3002 = vrsqrt.pop %v2991
        %v3003 = vmul.f32 %v3002, %v2991
        %v3004 = vmul.f32 %v3003, %v3002
        %v3005 = vmul.f32 0.5, %v3004
        %v3006 = vsub.f32 1.5, %v3005
        %v3007 = vmul.f32 %v3002, %v3006
        %vm3008 = vweird.f32 %v2991
        %vm3009 = vweird.f32 %v3002
        %vm3010 = vmor %vm3008, %vm3009
        %v3011 = vsel %vm3010, %v3002, %v3007
        %v3012 = vmul.f32 %v2978, %v3001
        %v3013 = vmul.f32 %v2979, %v3011
        %v3015 = vperm.slane %v2968, 0
        %v3017 = vmul.f32 %v3012, %v3015
        %v3018 = vmul.f32 %v3013, %v3015
        %v3020 = vperm.slane %v2969, 0
        %v3022 = vadd.f32 %v3017, %v3020
        %v3023 = vadd.f32 %v3018, %v3020
        %3024 = vst.msk [vmem:[#allocation2] sm:$0xff] %vm1148, %v3022
        %3025 = vst.msk [vmem:[#allocation2 + $0x8] sm:$0xff] %vm1148, %v3023
        %p3026 = scmp.eq.s32.totalorder %s37, 1
        // Predicated region
        $region129: #{transformer_forward.3} parent=119 // pred_check
          %p3027 = pneg %p3026
        $region130: #{transformer_forward.3} parent=119 // pred_check_branch
          %3029 = sbr.rel (%p3027) target = $region132
        $region131: #{transformer_forward.3} parent=119 // pred_region
          %v3030 = vpack.c.bf16 %v3023, %v3022
          %v3031 = vld [vmem:[#allocation3] sm:$0xf]
          %v3032 = vld [vmem:[#allocation3 + $0x4] sm:$0xf]
          %v3033 = vld [vmem:[#allocation3 + $0x8] sm:$0xf]
          %v3034 = vld [vmem:[#allocation3 + $0xc] sm:$0xf]
          %v3035 = vld [vmem:[#allocation3 + $0x10] sm:$0xf]
          %v3036 = vld [vmem:[#allocation3 + $0x14] sm:$0xf]
          %v3037 = vld [vmem:[#allocation3 + $0x18] sm:$0xf]
          %v3038 = vld [vmem:[#allocation3 + $0x1c] sm:$0xf]
          %v3039 = vld [vmem:[%s24] sm:$0x1]
          %v3041 = vperm.slane %v3039, 0
          %v3051 = vunpack.c.l.b16 %v3031
          %v3052 = vunpack.c.l.b16 %v3032
          %v3053 = vunpack.c.l.b16 %v3033
          %v3054 = vunpack.c.l.b16 %v3034
          %v3055 = vunpack.c.l.b16 %v3035
          %v3056 = vunpack.c.l.b16 %v3036
          %v3057 = vunpack.c.l.b16 %v3037
          %v3058 = vunpack.c.l.b16 %v3038
          %v3059 = vpack.c.b16 %v3052, %v3051
          %v3060 = vpack.c.b16 %v3054, %v3053
          %v3061 = vpack.c.b16 %v3056, %v3055
          %v3062 = vpack.c.b16 %v3058, %v3057
          %v3068 = vsel %vm1148, %v3030, 0
          %3070 = vmatpush.bf16.msra.mxu0 0
          %3071 = vmatpush.bf16.msra.mxu0 0
          %3072 = vmatpush.bf16.msra.mxu0 0
          %3073 = vmatpush.bf16.msra.mxu0 0
          %3074 = vmatpush.bf16.msra.mxu0 %v3062
          %3075 = vmatpush.bf16.msra.mxu0 %v3061
          %3076 = vmatpush.bf16.msra.mxu0 %v3060
          %3077 = vmatpush.bf16.msra.mxu0 %v3059
          %3078 = vmatmul.bf16.gmra.mxu0 %v3068
          %v3079 = vpop.f32.mrf.mxu0
          %v3080 = vadd.f32 %v3041, %v3079
          %v3081 = vpop.f32.mrf.mxu0
          %v3082 = vadd.f32 %v3041, %v3081
          %3083 = vdwg.mxu0
          %3084 = vst [vmem:[%s25] sm:$0xff] %v3080
          %3085 = vst [vmem:[%s25 + $0x8] sm:$0xff] %v3082
        $region132: #{transformer_forward.3} parent=119 // pred_fallthru
          _
        // Predicated region
        $region133: #{transformer_forward.3} parent=119 // pred_check
          %p3086 = pneg %p675
        $region134: #{transformer_forward.3} parent=119 // pred_check_branch
          %3088 = sbr.rel (%p3086) target = $region136
        $region135: #{transformer_forward.3} parent=119 // pred_region
          _
        $region136: #{transformer_forward.3} parent=119 // pred_fallthru
          _
        // Predicated region
        $region137: #{transformer_forward.3} parent=119 // pred_check
          %p3089 = pneg %p675
        $region138: #{transformer_forward.3} parent=119 // pred_check_branch
          %3091 = sbr.rel (%p3089) target = $region140
        $region139: #{transformer_forward.3} parent=119 // pred_region
          _
        $region140: #{transformer_forward.3} parent=119 // pred_fallthru
          _
      $region120: #{transformer_forward.3} parent=5 // pred_fallthru
        _
      %p3092 = scmp.le.s32.totalorder 2, %s32
      // Predicated region
      $region141: #{transformer_forward.3} parent=5 // pred_check
        %p3093 = pneg %p3092
      $region142: #{transformer_forward.3} parent=5 // pred_check_branch
        %3095 = sbr.rel (%p3093) target = $region144
      $region143: #{transformer_forward.3} parent=5 // pred_region
        %s3096 = ssub.s32 %s32, 2
      $region144: #{transformer_forward.3} parent=5 // pred_fallthru
        _
    $region6: #{transformer_forward.3} parent=1 // loop_footer
      %s36 = sadd.s32 1, %s32
    $region7: #{transformer_forward.3} parent=1 // loop_footer_branch
      %31 = sbr.rel target = $region3
    $region8: #{transformer_forward.3} parent=1 // loop_exit
      _
    %3097 = vsyncpa [#allocation4], 1
    %s3098 = scalar_lea.sflag [#allocation4], 1
    %3099 = vsyncpa %s3098, 1

</llo_original>
